<compile_context>
chip_gen: v7x
topology: tpu7x:2x2x1
jax: 0.10.0
libtpu: 0.0.40
codegen_flags: <defaults>
</compile_context>

<pallas_src>
import math

import jax
import jax.numpy as jnp
from jax.experimental import pallas as pl
from jax.experimental.pallas import tpu as pltpu


def _round_up(v, m):
    return ((v + m - 1) // m) * m


# ------------------------------ fused kernel -------------------------------- #

def _build_forward_kernel(*, num_layers, T, P, k, W, N, cin_list, chid_list,
                          cin_pad_list, chid_pad_list, pred_input_dim, mxu_dtype):
    """Whole ConvLSTM forward (T encode + P predict steps) for one batch group."""
    pad = (k - 1) // 2
    kk = k * k
    offsets = [(dy, dx) for dy in range(k) for dx in range(k)]
    pid = pred_input_dim

    def kernel(*args):
        # ---------------- unpack refs (inputs then outputs) -------------------
        ai = 0
        x_ref = args[ai]; ai += 1
        masks_ref = args[ai]; ai += 1
        w_refs, b_refs = [], []
        for _ in range(num_layers):
            w_refs.append(args[ai]); b_refs.append(args[ai + 1]); ai += 2
        if P > 0:
            wp_ref = args[ai]; bp_ref = args[ai + 1]; ai += 2
            preds_ref = args[ai]; state_ref = args[ai + 1]; ai += 2
        else:
            hseq_ref = args[ai]; ai += 1

        # Halo masks: host-precomputed, loaded once (hoisted out of the step body).
        masks_v = masks_ref[...]                                   # (k*k, N) f32
        mask_rows = [masks_v[o:o + 1, :] for o in range(kk)]

        # Recurrent state lives as traced values across the fully-unrolled time loop.
        h_state = [jnp.zeros((chid_list[l], N), jnp.float32) for l in range(num_layers)]
        c_state = [jnp.zeros((chid_list[l], N), jnp.float32) for l in range(num_layers)]

        def cell(l, x):
            cin, chid = cin_list[l], chid_list[l]
            cin_p, chid_p = cin_pad_list[l], chid_pad_list[l]
            parts = [x]
            if cin_p > cin:
                parts.append(jnp.zeros((cin_p - cin, N), jnp.float32))
            parts.append(h_state[l])
            if chid_p > chid:
                parts.append(jnp.zeros((chid_p - chid, N), jnp.float32))
            xh = jnp.concatenate(parts, axis=0)                    # (cin_p+chid_p, N)
            # im2col stack: one masked lane rotation (XLU) per conv tap.
            pieces = []
            for o, (dy, dx) in enumerate(offsets):
                s = (dy - pad) * W + (dx - pad)
                if s == 0:
                    pieces.append(xh)                              # center tap: always valid
                else:
                    pieces.append(pltpu.roll(xh, (-s) % N, axis=1) * mask_rows[o])
            stack = jnp.concatenate(pieces, axis=0)                # (K, N), K = kk*(cin_p+chid_p)
            if mxu_dtype != jnp.float32:
                stack = stack.astype(mxu_dtype)                    # bf16 MXU operands (v6e/v7x)
            acc = jnp.dot(w_refs[l][...], stack,
                          preferred_element_type=jnp.float32) + b_refs[l][...]
            # gate order [i, f, g, o]; c*Wci / c*Wcf / c*Wco peephole terms are exactly 0.
            ig = jax.nn.sigmoid(acc[0 * chid:1 * chid])
            fg = jax.nn.sigmoid(acc[1 * chid:2 * chid])
            gg = jnp.tanh(acc[2 * chid:3 * chid])
            og = jax.nn.sigmoid(acc[3 * chid:4 * chid])
            c_new = fg * c_state[l] + ig * gg
            h_new = og * jnp.tanh(c_new)
            c_state[l] = c_new
            h_state[l] = h_new
            return h_new

        # ----------------------------- encoding -------------------------------
        slots = []                                  # internal_state, logical slot order
        for t in range(T):
            cur = x_ref[0, t]                       # (Cin, N)
            for l in range(num_layers):
                cur = cell(l, cur)
            if P > 0:
                if t < pid:
                    slots.append(cur)
                else:
                    slots = slots[1:] + [cur]
            else:
                hseq_ref[0, t] = cur

        # ---------------------- autoregressive prediction ---------------------
        for p in range(P):
            state_cat = jnp.concatenate(slots, axis=0)             # (pid*ch_last, N)
            if mxu_dtype != jnp.float32:
                state_cat = state_cat.astype(mxu_dtype)
            pred = jnp.tanh(jnp.dot(wp_ref[...], state_cat,
                                    preferred_element_type=jnp.float32) + bp_ref[...])
            preds_ref[0, p] = pred
            cur = pred
            for l in range(num_layers):
                cur = cell(l, cur)
            slots = slots[1:] + [cur]

        if P > 0:
            for i in range(pid):
                state_ref[0, i] = slots[i]

    return kernel


def _unfold_lanes(a, b_tile, H, W):
    """(G, *mid, b_tile*H*W) with batch folded on lanes -> (G*b_tile, *mid, H, W)."""
    G = a.shape[0]
    mid = a.shape[1:-1]
    m = len(mid)
    a = a.reshape((G,) + mid + (b_tile, H * W))
    perm = (0, m + 1) + tuple(range(1, m + 1)) + (m + 2,)
    return jnp.transpose(a, perm).reshape((G * b_tile,) + mid + (H, W))


# -------------------------------- model glue -------------------------------- #

class ConvLSTMPallas:
    """JAX/Pallas port of the PyTorch ConvLSTM prediction model (forward only)."""
    # TODO(synk): forward_with_gt (teacher forcing) is not ported; only forward().

    def __init__(self, input_channels, hidden_channels, kernel_size, pred_input_dim, key):
        self.input_channels = [input_channels] + list(hidden_channels)
        self.hidden_channels = list(hidden_channels)
        self.kernel_size = kernel_size
        self.num_layers = len(hidden_channels)
        self.pred_input_dim = pred_input_dim
        k = kernel_size

        keys = jax.random.split(key, self.num_layers + 1)
        self.cell_raw = []       # torch-layout weights (used by the pure-JAX reference)
        self.cell_kernel = []    # fused kernel-layout weights (f32)
        self.cin_pad, self.chid_pad = [], []
        for i in range(self.num_layers):
            cin, chid = self.input_channels[i], self.hidden_channels[i]
            ks = jax.random.split(keys[i], 12)
            sx = 1.0 / math.sqrt(cin * k * k)
            sh = 1.0 / math.sqrt(chid * k * k)
            # PyTorch conv weights: Wx*: (chid, cin, k, k), Wh*: (chid, chid, k, k)
            Wx = [jax.random.normal(ks[j], (chid, cin, k, k), jnp.float32) * sx
                  for j in range(4)]                     # gate order [i, f, c, o]
            Wh = [jax.random.normal(ks[4 + j], (chid, chid, k, k), jnp.float32) * sh
                  for j in range(4)]
            bx = [jax.random.normal(ks[8 + j], (chid,), jnp.float32) * 0.01
                  for j in range(4)]
            self.cell_raw.append((Wx, Wh, bx))

            # TODO(synk): hidden_channels not divisible by 8 would make the gate slices
            # sublane-misaligned; pad chid (and the bias rows) in that case.
            cin_p, chid_p = _round_up(cin, 8), _round_up(chid, 8)
            self.cin_pad.append(cin_p)
            self.chid_pad.append(chid_p)
            # Fused weight: rows gate-major (4*chid), columns offset-major, within each
            # offset [x-cols | zero pad | h-cols | zero pad] -> matches the in-kernel
            # im2col stack; zero columns keep every sub-block 8-aligned and K >= 128.
            Wx_off = jnp.transpose(jnp.concatenate(Wx, axis=0),
                                   (2, 3, 0, 1)).reshape(k * k, 4 * chid, cin)
            Wh_off = jnp.transpose(jnp.concatenate(Wh, axis=0),
                                   (2, 3, 0, 1)).reshape(k * k, 4 * chid, chid)
            blocks = [Wx_off]
            if cin_p > cin:
                blocks.append(jnp.zeros((k * k, 4 * chid, cin_p - cin), jnp.float32))
            blocks.append(Wh_off)
            if chid_p > chid:
                blocks.append(jnp.zeros((k * k, 4 * chid, chid_p - chid), jnp.float32))
            blk = jnp.concatenate(blocks, axis=2)        # (k*k, 4*chid, cin_p+chid_p)
            w_fused = jnp.transpose(blk, (1, 0, 2)).reshape(
                4 * chid, k * k * (cin_p + chid_p))
            b_fused = jnp.concatenate(bx, axis=0).reshape(4 * chid, 1)
            self.cell_kernel.append((w_fused, b_fused))

        ch_last = self.hidden_channels[-1]
        cpred = pred_input_dim * ch_last
        kw, kb = jax.random.split(keys[-1])
        # PyTorch 1x1 conv weight (Cout, Cin, 1, 1)
        w_pred = jax.random.normal(kw, (input_channels, cpred, 1, 1),
                                   jnp.float32) * (1.0 / math.sqrt(cpred))
        b_pred = jax.random.normal(kb, (input_channels,), jnp.float32) * 0.01
        self.pred_w = w_pred[:, :, 0, 0]                 # (C, cpred), slot-major columns
        self.pred_b = b_pred
        self.pred_b_ker = b_pred.reshape(input_channels, 1)

    # ------------------------------- public API ----------------------------- #

    def forward(self, input_tensor, pred_length, use_pallas=True,
                b_tile=None, mxu_dtype=jnp.float32):
        if use_pallas:
            return self._forward_pallas(input_tensor, pred_length,
                                        b_tile=b_tile, mxu_dtype=mxu_dtype)
        return self._forward_reference(input_tensor, pred_length)

    # ------------------------------- Pallas path ---------------------------- #

    def _forward_pallas(self, input_tensor, pred_length, b_tile=None,
                        mxu_dtype=jnp.float32):
        B, T, C, H, W = input_tensor.shape
        HW = H * W
        L = self.num_layers
        chid_list = self.hidden_channels
        ch_last = chid_list[-1]
        pid = self.pred_input_dim
        k = self.kernel_size
        pad = (k - 1) // 2
        P = int(pred_length)

        if P > 0:
            # TODO(synk): torch uses an *uninitialized* Tensor for internal_state;
            # zero-init is only equivalent when every slot is written during encoding.
            assert T >= pid, "pred_length > 0 requires seq_len >= pred_input_dim"

        if b_tile is None:
            # Keep a >=2-point parallel batch axis when possible (v7x has 2 TensorCores);
            # on v5e/v6e (1 TC) the extra grid step costs ~0.35us -- negligible.
            b_tile = B // 2 if (B >= 2 and B % 2 == 0) else 1
        assert B % b_tile == 0
        G = B // b_tile
        N = b_tile * HW                                  # lane width (multiple of 128)

        # Channel-major layout, batch folded onto the lane axis: (G, T, C, b_tile*HW).
        x_k = (input_tensor.astype(jnp.float32)
               .reshape(G, b_tile, T, C, HW)
               .transpose(0, 2, 3, 1, 4)
               .reshape(G, T, C, N))

        # Halo masks for the k*k conv taps, built once on the host (hoisted out of
        # the kernel body).  Per-image pattern tiled over the folded batch lanes.
        pos = jnp.arange(HW, dtype=jnp.int32)
        row, col = pos // W, pos % W
        mrows = []
        for dy in range(k):
            for dx in range(k):
                r, q = row + dy - pad, col + dx - pad
                mrows.append(((r >= 0) & (r < H) & (q >= 0) & (q < W))
                             .astype(jnp.float32))
        masks = jnp.tile(jnp.stack(mrows, axis=0), (1, b_tile))     # (k*k, N)

        kernel = _build_forward_kernel(
            num_layers=L, T=T, P=P, k=k, W=W, N=N,
            cin_list=self.input_channels[:L], chid_list=chid_list,
            cin_pad_list=self.cin_pad, chid_pad_list=self.chid_pad,
            pred_input_dim=pid, mxu_dtype=mxu_dtype)

        const2 = lambda g: (0, 0)
        inputs = [x_k, masks]
        in_specs = [pl.BlockSpec((1, T, C, N), lambda g: (g, 0, 0, 0)),
                    pl.BlockSpec(masks.shape, const2)]
        for l in range(L):
            w_f, b_f = self.cell_kernel[l]
            w_f = w_f.astype(mxu_dtype)                  # bf16 MXU operands on request
            inputs += [w_f, b_f]
            in_specs += [pl.BlockSpec(w_f.shape, const2),
                         pl.BlockSpec(b_f.shape, const2)]

        if P > 0:
            wp = self.pred_w.astype(mxu_dtype)
            bp = self.pred_b_ker
            inputs += [wp, bp]
            in_specs += [pl.BlockSpec(wp.shape, const2),
                         pl.BlockSpec(bp.shape, const2)]
            out_shape = (jax.ShapeDtypeStruct((G, P, C, N), jnp.float32),
                         jax.ShapeDtypeStruct((G, pid, ch_last, N), jnp.float32))
            out_specs = (pl.BlockSpec((1, P, C, N), lambda g: (g, 0, 0, 0)),
                         pl.BlockSpec((1, pid, ch_last, N), lambda g: (g, 0, 0, 0)))
        else:
            out_shape = jax.ShapeDtypeStruct((G, T, ch_last, N), jnp.float32)
            out_specs = pl.BlockSpec((1, T, ch_last, N), lambda g: (g, 0, 0, 0))

        outs = pl.pallas_call(
            kernel,
            out_shape=out_shape,
            grid=(G,),
            in_specs=in_specs,
            out_specs=out_specs,
            compiler_params=pltpu.CompilerParams(
                dimension_semantics=("parallel",)),
        )(*inputs)

        if P > 0:
            preds_k, state_k = outs
            predictions = _unfold_lanes(preds_k, b_tile, H, W)       # (B, P, C, H, W)
            internal_state = _unfold_lanes(state_k, b_tile, H, W).reshape(
                B, pid * ch_last, H, W)
            return predictions, internal_state
        hseq = _unfold_lanes(outs, b_tile, H, W)                     # (B, T, ch, H, W)
        internal_state = jnp.concatenate(
            [jnp.zeros((B, 1, ch_last, H, W), jnp.float32), hseq], axis=1)
        predictions = jnp.zeros((B, 0, C, H, W), jnp.float32)
        return predictions, internal_state

    # --------------------------- pure-JAX reference ------------------------- #

    def _forward_reference(self, input_tensor, pred_length):
        B, T, C, H, W = input_tensor.shape
        L = self.num_layers
        ch_last = self.hidden_channels[-1]
        cpred = self.pred_input_dim * ch_last
        pad = (self.kernel_size - 1) // 2

        def conv(inp, w):
            return jax.lax.conv_general_dilated(
                inp, w, window_strides=(1, 1), padding=[(pad, pad), (pad, pad)],
                dimension_numbers=('NCHW', 'OIHW', 'NCHW'))

        def cell(x, h, c, Wx, Wh, bx):
            bi = lambda j: bx[j].reshape(1, -1, 1, 1)
            ci = jax.nn.sigmoid(conv(x, Wx[0]) + bi(0) + conv(h, Wh[0]))
            cf = jax.nn.sigmoid(conv(x, Wx[1]) + bi(1) + conv(h, Wh[1]))
            cc = cf * c + ci * jnp.tanh(conv(x, Wx[2]) + bi(2) + conv(h, Wh[2]))
            co = jax.nn.sigmoid(conv(x, Wx[3]) + bi(3) + conv(h, Wh[3]))
            return co * jnp.tanh(cc), cc

        if pred_length == 0:
            internal_state = jnp.zeros((B, T + 1, ch_last, H, W), jnp.float32)
        else:
            internal_state = jnp.zeros((B, cpred, H, W), jnp.float32)

        hidden = [None] * L
        for step in range(T):
            x = input_tensor[:, step]
            for i in range(L):
                if step == 0:
                    h0 = jnp.zeros((B, self.hidden_channels[i], H, W), jnp.float32)
                    hidden[i] = (h0, jnp.zeros_like(h0))
                h, c = hidden[i]
                Wx, Wh, bx = self.cell_raw[i]
                x, c_new = cell(x, h, c, Wx, Wh, bx)
                hidden[i] = (x, c_new)
            start = step * ch_last
            stop = start + ch_last
            if pred_length != 0:
                if start < cpred:
                    internal_state = internal_state.at[:, start:stop].set(x)
                else:
                    internal_state = jnp.concatenate(
                        [internal_state[:, ch_last:], x], axis=1)
            else:
                internal_state = internal_state.at[:, step + 1].set(x)

        preds = []
        for _ in range(pred_length):
            pred = jnp.tanh(
                jnp.einsum('bchw,oc->bohw', internal_state, self.pred_w)
                + self.pred_b.reshape(1, -1, 1, 1))
            preds.append(pred)
            x = pred
            for i in range(L):
                h, c = hidden[i]
                Wx, Wh, bx = self.cell_raw[i]
                x, c_new = cell(x, h, c, Wx, Wh, bx)
                hidden[i] = (x, c_new)
            internal_state = jnp.concatenate(
                [internal_state[:, ch_last:], x], axis=1)

        if pred_length > 0:
            predictions = jnp.stack(preds, axis=1)
        else:
            predictions = jnp.zeros((B, 0, C, H, W), jnp.float32)
        return predictions, internal_state


# ----------------------------------- main ------------------------------------ #

if __name__ == "__main__":
    key = jax.random.PRNGKey(0)
    kparam, kx = jax.random.split(key)

    B, T, C, H, W = 2, 4, 4, 16, 16
    hidden_channels = [8, 8]
    kernel_size = 3
    pred_input_dim = 4       # == seq_len so every internal_state slot is written
    pred_length = 2

    model = ConvLSTMPallas(C, hidden_channels, kernel_size, pred_input_dim, kparam)
    x = jax.random.normal(kx, (B, T, C, H, W), jnp.float32)

    preds_ref, state_ref = model.forward(x, pred_length, use_pallas=False)

    # Default: grid=(2,) (2-way parallel batch axis for v7x's dual TCs), f32 MXU.
    preds, state = model.forward(x, pred_length, use_pallas=True)
    jax.block_until_ready((preds, state))
    assert preds.shape == (B, pred_length, C, H, W)
    assert state.shape == (B, hidden_channels[-1] * pred_input_dim, H, W)
    assert jnp.allclose(preds, preds_ref, rtol=1e-4, atol=1e-4), "predictions mismatch"
    assert jnp.allclose(state, state_ref, rtol=1e-4, atol=1e-4), "internal_state mismatch"

    # Batch fully folded onto the lane axis: grid=(1,), N=512 lanes (v5e/v6e-style:
    # fewest grid steps, widest MXU N).
    preds2, state2 = model.forward(x, pred_length, use_pallas=True, b_tile=B)
    jax.block_until_ready((preds2, state2))
    assert jnp.allclose(preds2, preds_ref, rtol=1e-4, atol=1e-4), "b_tile preds mismatch"
    assert jnp.allclose(state2, state_ref, rtol=1e-4, atol=1e-4), "b_tile state mismatch"

    # bf16 MXU operands (v6e/v7x fast path); f32 accumulation + f32 gate math.
    predsb, stateb = model.forward(x, pred_length, use_pallas=True,
                                   mxu_dtype=jnp.bfloat16)
    jax.block_until_ready((predsb, stateb))
    assert bool(jnp.all(jnp.isfinite(predsb)))
    assert jnp.allclose(predsb, preds_ref, rtol=1e-1, atol=1e-1), "bf16 preds mismatch"
    assert jnp.allclose(stateb, state_ref, rtol=1e-1, atol=1e-1), "bf16 state mismatch"

    # Encoder-only path (pred_length == 0, per-step hidden-state output).
    preds0, state0 = model.forward(x, 0, use_pallas=True)
    jax.block_until_ready((preds0, state0))
    preds0_ref, state0_ref = model.forward(x, 0, use_pallas=False)
    assert preds0.shape == (B, 0, C, H, W)
    assert state0.shape == (B, T + 1, hidden_channels[-1], H, W)
    assert jnp.allclose(state0, state0_ref, rtol=1e-4, atol=1e-4), "encoder state mismatch"

    print("KERNEL_OK")
</pallas_src>

<mosaic_0001>
module attributes {stable_mosaic.version = 11 : i64} {
  func.func @kernel(%arg0: i32, %arg1: memref<1x4x4x256xf32, #tpu.memory_space<vmem>>, %arg2: memref<9x256xf32, #tpu.memory_space<vmem>>, %arg3: memref<32x144xf32, #tpu.memory_space<vmem>>, %arg4: memref<32x1xf32, #tpu.memory_space<vmem>>, %arg5: memref<32x144xf32, #tpu.memory_space<vmem>>, %arg6: memref<32x1xf32, #tpu.memory_space<vmem>>, %arg7: memref<4x32xf32, #tpu.memory_space<vmem>>, %arg8: memref<4x1xf32, #tpu.memory_space<vmem>>, %arg9: memref<1x2x4x256xf32, #tpu.memory_space<vmem>>, %arg10: memref<1x4x8x256xf32, #tpu.memory_space<vmem>>) attributes {dimension_semantics = [#tpu.dimension_semantics<parallel>], iteration_bounds = array<i64: 2>, scalar_prefetch = 0 : i64, scratch_operands = 0 : i64, tpu.core_type = #tpu.core_type<tc>, window_params = [{transform_indices = @transform_0, window_bounds = array<i64: 1, 4, 4, 256>}, {pipeline_mode = #tpu.pipeline_mode<synchronous>, transform_indices = @transform_1, window_bounds = array<i64: 9, 256>}, {pipeline_mode = #tpu.pipeline_mode<synchronous>, transform_indices = @transform_2, window_bounds = array<i64: 32, 144>}, {pipeline_mode = #tpu.pipeline_mode<synchronous>, transform_indices = @transform_3, window_bounds = array<i64: 32, 1>}, {pipeline_mode = #tpu.pipeline_mode<synchronous>, transform_indices = @transform_4, window_bounds = array<i64: 32, 144>}, {pipeline_mode = #tpu.pipeline_mode<synchronous>, transform_indices = @transform_5, window_bounds = array<i64: 32, 1>}, {pipeline_mode = #tpu.pipeline_mode<synchronous>, transform_indices = @transform_6, window_bounds = array<i64: 4, 32>}, {pipeline_mode = #tpu.pipeline_mode<synchronous>, transform_indices = @transform_7, window_bounds = array<i64: 4, 1>}, {transform_indices = @transform_8, window_bounds = array<i64: 1, 2, 4, 256>}, {transform_indices = @transform_9, window_bounds = array<i64: 1, 4, 8, 256>}]} {
    %c0 = arith.constant 0 : index
    %c0_0 = arith.constant 0 : index
    %0 = vector.load %arg2[%c0, %c0_0] : memref<9x256xf32, #tpu.memory_space<vmem>>, vector<9x256xf32>
    %1 = vector.extract_strided_slice %0 {offsets = [0, 0], sizes = [1, 256], strides = [1, 1]} : vector<9x256xf32> to vector<1x256xf32>
    %2 = vector.extract_strided_slice %0 {offsets = [1, 0], sizes = [1, 256], strides = [1, 1]} : vector<9x256xf32> to vector<1x256xf32>
    %3 = vector.extract_strided_slice %0 {offsets = [2, 0], sizes = [1, 256], strides = [1, 1]} : vector<9x256xf32> to vector<1x256xf32>
    %4 = vector.extract_strided_slice %0 {offsets = [3, 0], sizes = [1, 256], strides = [1, 1]} : vector<9x256xf32> to vector<1x256xf32>
    %5 = vector.extract_strided_slice %0 {offsets = [5, 0], sizes = [1, 256], strides = [1, 1]} : vector<9x256xf32> to vector<1x256xf32>
    %6 = vector.extract_strided_slice %0 {offsets = [6, 0], sizes = [1, 256], strides = [1, 1]} : vector<9x256xf32> to vector<1x256xf32>
    %7 = vector.extract_strided_slice %0 {offsets = [7, 0], sizes = [1, 256], strides = [1, 1]} : vector<9x256xf32> to vector<1x256xf32>
    %8 = vector.extract_strided_slice %0 {offsets = [8, 0], sizes = [1, 256], strides = [1, 1]} : vector<9x256xf32> to vector<1x256xf32>
    %cst = arith.constant 0.000000e+00 : f32
    %9 = vector.broadcast %cst : f32 to vector<8x256xf32>
    %cst_1 = arith.constant 0.000000e+00 : f32
    %10 = vector.broadcast %cst_1 : f32 to vector<8x256xf32>
    %cst_2 = arith.constant 0.000000e+00 : f32
    %11 = vector.broadcast %cst_2 : f32 to vector<8x256xf32>
    %cst_3 = arith.constant 0.000000e+00 : f32
    %12 = vector.broadcast %cst_3 : f32 to vector<8x256xf32>
    %c0_4 = arith.constant 0 : index
    %c0_5 = arith.constant 0 : index
    %c0_6 = arith.constant 0 : index
    %c0_7 = arith.constant 0 : index
    %13 = vector.load %arg1[%c0_4, %c0_5, %c0_6, %c0_7] : memref<1x4x4x256xf32, #tpu.memory_space<vmem>>, vector<1x1x4x256xf32>
    %14 = vector.shape_cast %13 : vector<1x1x4x256xf32> to vector<4x256xf32>
    %cst_8 = arith.constant 0.000000e+00 : f32
    %15 = vector.broadcast %cst_8 : f32 to vector<4x256xf32>
    %16 = tpu.concatenate %14, %15, %9 in 0 : vector<4x256xf32>, vector<4x256xf32>, vector<8x256xf32> -> vector<16x256xf32>
    %c17_i32 = arith.constant 17 : i32
    %17 = tpu.dynamic_rotate %16 by %c17_i32 dim 1 : vector<16x256xf32>, i32 -> vector<16x256xf32>
    %18 = vector.broadcast %1 : vector<1x256xf32> to vector<16x256xf32>
    %19 = arith.mulf %17, %18 : vector<16x256xf32>
    %c16_i32 = arith.constant 16 : i32
    %20 = tpu.dynamic_rotate %16 by %c16_i32 dim 1 : vector<16x256xf32>, i32 -> vector<16x256xf32>
    %21 = vector.broadcast %2 : vector<1x256xf32> to vector<16x256xf32>
    %22 = arith.mulf %20, %21 : vector<16x256xf32>
    %c15_i32 = arith.constant 15 : i32
    %23 = tpu.dynamic_rotate %16 by %c15_i32 dim 1 : vector<16x256xf32>, i32 -> vector<16x256xf32>
    %24 = vector.broadcast %3 : vector<1x256xf32> to vector<16x256xf32>
    %25 = arith.mulf %23, %24 : vector<16x256xf32>
    %c1_i32 = arith.constant 1 : i32
    %26 = tpu.dynamic_rotate %16 by %c1_i32 dim 1 : vector<16x256xf32>, i32 -> vector<16x256xf32>
    %27 = vector.broadcast %4 : vector<1x256xf32> to vector<16x256xf32>
    %28 = arith.mulf %26, %27 : vector<16x256xf32>
    %c255_i32 = arith.constant 255 : i32
    %29 = tpu.dynamic_rotate %16 by %c255_i32 dim 1 : vector<16x256xf32>, i32 -> vector<16x256xf32>
    %30 = vector.broadcast %5 : vector<1x256xf32> to vector<16x256xf32>
    %31 = arith.mulf %29, %30 : vector<16x256xf32>
    %c241_i32 = arith.constant 241 : i32
    %32 = tpu.dynamic_rotate %16 by %c241_i32 dim 1 : vector<16x256xf32>, i32 -> vector<16x256xf32>
    %33 = vector.broadcast %6 : vector<1x256xf32> to vector<16x256xf32>
    %34 = arith.mulf %32, %33 : vector<16x256xf32>
    %c240_i32 = arith.constant 240 : i32
    %35 = tpu.dynamic_rotate %16 by %c240_i32 dim 1 : vector<16x256xf32>, i32 -> vector<16x256xf32>
    %36 = vector.broadcast %7 : vector<1x256xf32> to vector<16x256xf32>
    %37 = arith.mulf %35, %36 : vector<16x256xf32>
    %c239_i32 = arith.constant 239 : i32
    %38 = tpu.dynamic_rotate %16 by %c239_i32 dim 1 : vector<16x256xf32>, i32 -> vector<16x256xf32>
    %39 = vector.broadcast %8 : vector<1x256xf32> to vector<16x256xf32>
    %40 = arith.mulf %38, %39 : vector<16x256xf32>
    %41 = tpu.concatenate %19, %22, %25, %28, %16, %31, %34, %37, %40 in 0 : vector<16x256xf32>, vector<16x256xf32>, vector<16x256xf32>, vector<16x256xf32>, vector<16x256xf32>, vector<16x256xf32>, vector<16x256xf32>, vector<16x256xf32>, vector<16x256xf32> -> vector<144x256xf32>
    %c0_9 = arith.constant 0 : index
    %c0_10 = arith.constant 0 : index
    %42 = vector.load %arg3[%c0_9, %c0_10] : memref<32x144xf32, #tpu.memory_space<vmem>>, vector<32x144xf32>
    %cst_11 = arith.constant dense<0.000000e+00> : vector<32x256xf32>
    %43 = tpu.matmul %42, %41, %cst_11 {dimension_numbers = #tpu.dot_dimension_numbers<[1], [0], [0], [1], [0, 0, 1, 1], [], []>} : vector<32x144xf32>, vector<144x256xf32>, vector<32x256xf32> -> vector<32x256xf32>
    %c0_12 = arith.constant 0 : index
    %c0_13 = arith.constant 0 : index
    %44 = vector.load %arg4[%c0_12, %c0_13] : memref<32x1xf32, #tpu.memory_space<vmem>>, vector<32x1xf32>
    %45 = vector.broadcast %44 : vector<32x1xf32> to vector<32x256xf32>
    %46 = arith.addf %43, %45 : vector<32x256xf32>
    %47 = vector.extract_strided_slice %46 {offsets = [0, 0], sizes = [8, 256], strides = [1, 1]} : vector<32x256xf32> to vector<8x256xf32>
    %48 = arith.negf %47 : vector<8x256xf32>
    %49 = math.exp %48 : vector<8x256xf32>
    %cst_14 = arith.constant 1.000000e+00 : f32
    %50 = vector.broadcast %cst_14 : f32 to vector<8x256xf32>
    %51 = arith.addf %50, %49 : vector<8x256xf32>
    %52 = arith.divf %50, %51 : vector<8x256xf32>
    %53 = vector.extract_strided_slice %46 {offsets = [8, 0], sizes = [8, 256], strides = [1, 1]} : vector<32x256xf32> to vector<8x256xf32>
    %54 = arith.negf %53 : vector<8x256xf32>
    %55 = math.exp %54 : vector<8x256xf32>
    %cst_15 = arith.constant 1.000000e+00 : f32
    %56 = vector.broadcast %cst_15 : f32 to vector<8x256xf32>
    %57 = arith.addf %56, %55 : vector<8x256xf32>
    %58 = arith.divf %56, %57 : vector<8x256xf32>
    %59 = vector.extract_strided_slice %46 {offsets = [16, 0], sizes = [8, 256], strides = [1, 1]} : vector<32x256xf32> to vector<8x256xf32>
    %60 = math.tanh %59 : vector<8x256xf32>
    %61 = vector.extract_strided_slice %46 {offsets = [24, 0], sizes = [8, 256], strides = [1, 1]} : vector<32x256xf32> to vector<8x256xf32>
    %62 = arith.negf %61 : vector<8x256xf32>
    %63 = math.exp %62 : vector<8x256xf32>
    %cst_16 = arith.constant 1.000000e+00 : f32
    %64 = vector.broadcast %cst_16 : f32 to vector<8x256xf32>
    %65 = arith.addf %64, %63 : vector<8x256xf32>
    %66 = arith.divf %64, %65 : vector<8x256xf32>
    %67 = arith.mulf %58, %11 : vector<8x256xf32>
    %68 = arith.mulf %52, %60 : vector<8x256xf32>
    %69 = arith.addf %67, %68 : vector<8x256xf32>
    %70 = math.tanh %69 : vector<8x256xf32>
    %71 = arith.mulf %66, %70 : vector<8x256xf32>
    %72 = tpu.concatenate %71, %10 in 0 : vector<8x256xf32>, vector<8x256xf32> -> vector<16x256xf32>
    %c17_i32_17 = arith.constant 17 : i32
    %73 = tpu.dynamic_rotate %72 by %c17_i32_17 dim 1 : vector<16x256xf32>, i32 -> vector<16x256xf32>
    %74 = vector.broadcast %1 : vector<1x256xf32> to vector<16x256xf32>
    %75 = arith.mulf %73, %74 : vector<16x256xf32>
    %c16_i32_18 = arith.constant 16 : i32
    %76 = tpu.dynamic_rotate %72 by %c16_i32_18 dim 1 : vector<16x256xf32>, i32 -> vector<16x256xf32>
    %77 = vector.broadcast %2 : vector<1x256xf32> to vector<16x256xf32>
    %78 = arith.mulf %76, %77 : vector<16x256xf32>
    %c15_i32_19 = arith.constant 15 : i32
    %79 = tpu.dynamic_rotate %72 by %c15_i32_19 dim 1 : vector<16x256xf32>, i32 -> vector<16x256xf32>
    %80 = vector.broadcast %3 : vector<1x256xf32> to vector<16x256xf32>
    %81 = arith.mulf %79, %80 : vector<16x256xf32>
    %c1_i32_20 = arith.constant 1 : i32
    %82 = tpu.dynamic_rotate %72 by %c1_i32_20 dim 1 : vector<16x256xf32>, i32 -> vector<16x256xf32>
    %83 = vector.broadcast %4 : vector<1x256xf32> to vector<16x256xf32>
    %84 = arith.mulf %82, %83 : vector<16x256xf32>
    %c255_i32_21 = arith.constant 255 : i32
    %85 = tpu.dynamic_rotate %72 by %c255_i32_21 dim 1 : vector<16x256xf32>, i32 -> vector<16x256xf32>
    %86 = vector.broadcast %5 : vector<1x256xf32> to vector<16x256xf32>
    %87 = arith.mulf %85, %86 : vector<16x256xf32>
    %c241_i32_22 = arith.constant 241 : i32
    %88 = tpu.dynamic_rotate %72 by %c241_i32_22 dim 1 : vector<16x256xf32>, i32 -> vector<16x256xf32>
    %89 = vector.broadcast %6 : vector<1x256xf32> to vector<16x256xf32>
    %90 = arith.mulf %88, %89 : vector<16x256xf32>
    %c240_i32_23 = arith.constant 240 : i32
    %91 = tpu.dynamic_rotate %72 by %c240_i32_23 dim 1 : vector<16x256xf32>, i32 -> vector<16x256xf32>
    %92 = vector.broadcast %7 : vector<1x256xf32> to vector<16x256xf32>
    %93 = arith.mulf %91, %92 : vector<16x256xf32>
    %c239_i32_24 = arith.constant 239 : i32
    %94 = tpu.dynamic_rotate %72 by %c239_i32_24 dim 1 : vector<16x256xf32>, i32 -> vector<16x256xf32>
    %95 = vector.broadcast %8 : vector<1x256xf32> to vector<16x256xf32>
    %96 = arith.mulf %94, %95 : vector<16x256xf32>
    %97 = tpu.concatenate %75, %78, %81, %84, %72, %87, %90, %93, %96 in 0 : vector<16x256xf32>, vector<16x256xf32>, vector<16x256xf32>, vector<16x256xf32>, vector<16x256xf32>, vector<16x256xf32>, vector<16x256xf32>, vector<16x256xf32>, vector<16x256xf32> -> vector<144x256xf32>
    %c0_25 = arith.constant 0 : index
    %c0_26 = arith.constant 0 : index
    %98 = vector.load %arg5[%c0_25, %c0_26] : memref<32x144xf32, #tpu.memory_space<vmem>>, vector<32x144xf32>
    %cst_27 = arith.constant dense<0.000000e+00> : vector<32x256xf32>
    %99 = tpu.matmul %98, %97, %cst_27 {dimension_numbers = #tpu.dot_dimension_numbers<[1], [0], [0], [1], [0, 0, 1, 1], [], []>} : vector<32x144xf32>, vector<144x256xf32>, vector<32x256xf32> -> vector<32x256xf32>
    %c0_28 = arith.constant 0 : index
    %c0_29 = arith.constant 0 : index
    %100 = vector.load %arg6[%c0_28, %c0_29] : memref<32x1xf32, #tpu.memory_space<vmem>>, vector<32x1xf32>
    %101 = vector.broadcast %100 : vector<32x1xf32> to vector<32x256xf32>
    %102 = arith.addf %99, %101 : vector<32x256xf32>
    %103 = vector.extract_strided_slice %102 {offsets = [0, 0], sizes = [8, 256], strides = [1, 1]} : vector<32x256xf32> to vector<8x256xf32>
    %104 = arith.negf %103 : vector<8x256xf32>
    %105 = math.exp %104 : vector<8x256xf32>
    %cst_30 = arith.constant 1.000000e+00 : f32
    %106 = vector.broadcast %cst_30 : f32 to vector<8x256xf32>
    %107 = arith.addf %106, %105 : vector<8x256xf32>
    %108 = arith.divf %106, %107 : vector<8x256xf32>
    %109 = vector.extract_strided_slice %102 {offsets = [8, 0], sizes = [8, 256], strides = [1, 1]} : vector<32x256xf32> to vector<8x256xf32>
    %110 = arith.negf %109 : vector<8x256xf32>
    %111 = math.exp %110 : vector<8x256xf32>
    %cst_31 = arith.constant 1.000000e+00 : f32
    %112 = vector.broadcast %cst_31 : f32 to vector<8x256xf32>
    %113 = arith.addf %112, %111 : vector<8x256xf32>
    %114 = arith.divf %112, %113 : vector<8x256xf32>
    %115 = vector.extract_strided_slice %102 {offsets = [16, 0], sizes = [8, 256], strides = [1, 1]} : vector<32x256xf32> to vector<8x256xf32>
    %116 = math.tanh %115 : vector<8x256xf32>
    %117 = vector.extract_strided_slice %102 {offsets = [24, 0], sizes = [8, 256], strides = [1, 1]} : vector<32x256xf32> to vector<8x256xf32>
    %118 = arith.negf %117 : vector<8x256xf32>
    %119 = math.exp %118 : vector<8x256xf32>
    %cst_32 = arith.constant 1.000000e+00 : f32
    %120 = vector.broadcast %cst_32 : f32 to vector<8x256xf32>
    %121 = arith.addf %120, %119 : vector<8x256xf32>
    %122 = arith.divf %120, %121 : vector<8x256xf32>
    %123 = arith.mulf %114, %12 : vector<8x256xf32>
    %124 = arith.mulf %108, %116 : vector<8x256xf32>
    %125 = arith.addf %123, %124 : vector<8x256xf32>
    %126 = math.tanh %125 : vector<8x256xf32>
    %127 = arith.mulf %122, %126 : vector<8x256xf32>
    %c0_33 = arith.constant 0 : index
    %c1 = arith.constant 1 : index
    %c0_34 = arith.constant 0 : index
    %c0_35 = arith.constant 0 : index
    %128 = vector.load %arg1[%c0_33, %c1, %c0_34, %c0_35] : memref<1x4x4x256xf32, #tpu.memory_space<vmem>>, vector<1x1x4x256xf32>
    %129 = vector.shape_cast %128 : vector<1x1x4x256xf32> to vector<4x256xf32>
    %cst_36 = arith.constant 0.000000e+00 : f32
    %130 = vector.broadcast %cst_36 : f32 to vector<4x256xf32>
    %131 = tpu.concatenate %129, %130, %71 in 0 : vector<4x256xf32>, vector<4x256xf32>, vector<8x256xf32> -> vector<16x256xf32>
    %c17_i32_37 = arith.constant 17 : i32
    %132 = tpu.dynamic_rotate %131 by %c17_i32_37 dim 1 : vector<16x256xf32>, i32 -> vector<16x256xf32>
    %133 = vector.broadcast %1 : vector<1x256xf32> to vector<16x256xf32>
    %134 = arith.mulf %132, %133 : vector<16x256xf32>
    %c16_i32_38 = arith.constant 16 : i32
    %135 = tpu.dynamic_rotate %131 by %c16_i32_38 dim 1 : vector<16x256xf32>, i32 -> vector<16x256xf32>
    %136 = vector.broadcast %2 : vector<1x256xf32> to vector<16x256xf32>
    %137 = arith.mulf %135, %136 : vector<16x256xf32>
    %c15_i32_39 = arith.constant 15 : i32
    %138 = tpu.dynamic_rotate %131 by %c15_i32_39 dim 1 : vector<16x256xf32>, i32 -> vector<16x256xf32>
    %139 = vector.broadcast %3 : vector<1x256xf32> to vector<16x256xf32>
    %140 = arith.mulf %138, %139 : vector<16x256xf32>
    %c1_i32_40 = arith.constant 1 : i32
    %141 = tpu.dynamic_rotate %131 by %c1_i32_40 dim 1 : vector<16x256xf32>, i32 -> vector<16x256xf32>
    %142 = vector.broadcast %4 : vector<1x256xf32> to vector<16x256xf32>
    %143 = arith.mulf %141, %142 : vector<16x256xf32>
    %c255_i32_41 = arith.constant 255 : i32
    %144 = tpu.dynamic_rotate %131 by %c255_i32_41 dim 1 : vector<16x256xf32>, i32 -> vector<16x256xf32>
    %145 = vector.broadcast %5 : vector<1x256xf32> to vector<16x256xf32>
    %146 = arith.mulf %144, %145 : vector<16x256xf32>
    %c241_i32_42 = arith.constant 241 : i32
    %147 = tpu.dynamic_rotate %131 by %c241_i32_42 dim 1 : vector<16x256xf32>, i32 -> vector<16x256xf32>
    %148 = vector.broadcast %6 : vector<1x256xf32> to vector<16x256xf32>
    %149 = arith.mulf %147, %148 : vector<16x256xf32>
    %c240_i32_43 = arith.constant 240 : i32
    %150 = tpu.dynamic_rotate %131 by %c240_i32_43 dim 1 : vector<16x256xf32>, i32 -> vector<16x256xf32>
    %151 = vector.broadcast %7 : vector<1x256xf32> to vector<16x256xf32>
    %152 = arith.mulf %150, %151 : vector<16x256xf32>
    %c239_i32_44 = arith.constant 239 : i32
    %153 = tpu.dynamic_rotate %131 by %c239_i32_44 dim 1 : vector<16x256xf32>, i32 -> vector<16x256xf32>
    %154 = vector.broadcast %8 : vector<1x256xf32> to vector<16x256xf32>
    %155 = arith.mulf %153, %154 : vector<16x256xf32>
    %156 = tpu.concatenate %134, %137, %140, %143, %131, %146, %149, %152, %155 in 0 : vector<16x256xf32>, vector<16x256xf32>, vector<16x256xf32>, vector<16x256xf32>, vector<16x256xf32>, vector<16x256xf32>, vector<16x256xf32>, vector<16x256xf32>, vector<16x256xf32> -> vector<144x256xf32>
    %c0_45 = arith.constant 0 : index
    %c0_46 = arith.constant 0 : index
    %157 = vector.load %arg3[%c0_45, %c0_46] : memref<32x144xf32, #tpu.memory_space<vmem>>, vector<32x144xf32>
    %cst_47 = arith.constant dense<0.000000e+00> : vector<32x256xf32>
    %158 = tpu.matmul %157, %156, %cst_47 {dimension_numbers = #tpu.dot_dimension_numbers<[1], [0], [0], [1], [0, 0, 1, 1], [], []>} : vector<32x144xf32>, vector<144x256xf32>, vector<32x256xf32> -> vector<32x256xf32>
    %c0_48 = arith.constant 0 : index
    %c0_49 = arith.constant 0 : index
    %159 = vector.load %arg4[%c0_48, %c0_49] : memref<32x1xf32, #tpu.memory_space<vmem>>, vector<32x1xf32>
    %160 = vector.broadcast %159 : vector<32x1xf32> to vector<32x256xf32>
    %161 = arith.addf %158, %160 : vector<32x256xf32>
    %162 = vector.extract_strided_slice %161 {offsets = [0, 0], sizes = [8, 256], strides = [1, 1]} : vector<32x256xf32> to vector<8x256xf32>
    %163 = arith.negf %162 : vector<8x256xf32>
    %164 = math.exp %163 : vector<8x256xf32>
    %cst_50 = arith.constant 1.000000e+00 : f32
    %165 = vector.broadcast %cst_50 : f32 to vector<8x256xf32>
    %166 = arith.addf %165, %164 : vector<8x256xf32>
    %167 = arith.divf %165, %166 : vector<8x256xf32>
    %168 = vector.extract_strided_slice %161 {offsets = [8, 0], sizes = [8, 256], strides = [1, 1]} : vector<32x256xf32> to vector<8x256xf32>
    %169 = arith.negf %168 : vector<8x256xf32>
    %170 = math.exp %169 : vector<8x256xf32>
    %cst_51 = arith.constant 1.000000e+00 : f32
    %171 = vector.broadcast %cst_51 : f32 to vector<8x256xf32>
    %172 = arith.addf %171, %170 : vector<8x256xf32>
    %173 = arith.divf %171, %172 : vector<8x256xf32>
    %174 = vector.extract_strided_slice %161 {offsets = [16, 0], sizes = [8, 256], strides = [1, 1]} : vector<32x256xf32> to vector<8x256xf32>
    %175 = math.tanh %174 : vector<8x256xf32>
    %176 = vector.extract_strided_slice %161 {offsets = [24, 0], sizes = [8, 256], strides = [1, 1]} : vector<32x256xf32> to vector<8x256xf32>
    %177 = arith.negf %176 : vector<8x256xf32>
    %178 = math.exp %177 : vector<8x256xf32>
    %cst_52 = arith.constant 1.000000e+00 : f32
    %179 = vector.broadcast %cst_52 : f32 to vector<8x256xf32>
    %180 = arith.addf %179, %178 : vector<8x256xf32>
    %181 = arith.divf %179, %180 : vector<8x256xf32>
    %182 = arith.mulf %173, %69 : vector<8x256xf32>
    %183 = arith.mulf %167, %175 : vector<8x256xf32>
    %184 = arith.addf %182, %183 : vector<8x256xf32>
    %185 = math.tanh %184 : vector<8x256xf32>
    %186 = arith.mulf %181, %185 : vector<8x256xf32>
    %187 = tpu.concatenate %186, %127 in 0 : vector<8x256xf32>, vector<8x256xf32> -> vector<16x256xf32>
    %c17_i32_53 = arith.constant 17 : i32
    %188 = tpu.dynamic_rotate %187 by %c17_i32_53 dim 1 : vector<16x256xf32>, i32 -> vector<16x256xf32>
    %189 = vector.broadcast %1 : vector<1x256xf32> to vector<16x256xf32>
    %190 = arith.mulf %188, %189 : vector<16x256xf32>
    %c16_i32_54 = arith.constant 16 : i32
    %191 = tpu.dynamic_rotate %187 by %c16_i32_54 dim 1 : vector<16x256xf32>, i32 -> vector<16x256xf32>
    %192 = vector.broadcast %2 : vector<1x256xf32> to vector<16x256xf32>
    %193 = arith.mulf %191, %192 : vector<16x256xf32>
    %c15_i32_55 = arith.constant 15 : i32
    %194 = tpu.dynamic_rotate %187 by %c15_i32_55 dim 1 : vector<16x256xf32>, i32 -> vector<16x256xf32>
    %195 = vector.broadcast %3 : vector<1x256xf32> to vector<16x256xf32>
    %196 = arith.mulf %194, %195 : vector<16x256xf32>
    %c1_i32_56 = arith.constant 1 : i32
    %197 = tpu.dynamic_rotate %187 by %c1_i32_56 dim 1 : vector<16x256xf32>, i32 -> vector<16x256xf32>
    %198 = vector.broadcast %4 : vector<1x256xf32> to vector<16x256xf32>
    %199 = arith.mulf %197, %198 : vector<16x256xf32>
    %c255_i32_57 = arith.constant 255 : i32
    %200 = tpu.dynamic_rotate %187 by %c255_i32_57 dim 1 : vector<16x256xf32>, i32 -> vector<16x256xf32>
    %201 = vector.broadcast %5 : vector<1x256xf32> to vector<16x256xf32>
    %202 = arith.mulf %200, %201 : vector<16x256xf32>
    %c241_i32_58 = arith.constant 241 : i32
    %203 = tpu.dynamic_rotate %187 by %c241_i32_58 dim 1 : vector<16x256xf32>, i32 -> vector<16x256xf32>
    %204 = vector.broadcast %6 : vector<1x256xf32> to vector<16x256xf32>
    %205 = arith.mulf %203, %204 : vector<16x256xf32>
    %c240_i32_59 = arith.constant 240 : i32
    %206 = tpu.dynamic_rotate %187 by %c240_i32_59 dim 1 : vector<16x256xf32>, i32 -> vector<16x256xf32>
    %207 = vector.broadcast %7 : vector<1x256xf32> to vector<16x256xf32>
    %208 = arith.mulf %206, %207 : vector<16x256xf32>
    %c239_i32_60 = arith.constant 239 : i32
    %209 = tpu.dynamic_rotate %187 by %c239_i32_60 dim 1 : vector<16x256xf32>, i32 -> vector<16x256xf32>
    %210 = vector.broadcast %8 : vector<1x256xf32> to vector<16x256xf32>
    %211 = arith.mulf %209, %210 : vector<16x256xf32>
    %212 = tpu.concatenate %190, %193, %196, %199, %187, %202, %205, %208, %211 in 0 : vector<16x256xf32>, vector<16x256xf32>, vector<16x256xf32>, vector<16x256xf32>, vector<16x256xf32>, vector<16x256xf32>, vector<16x256xf32>, vector<16x256xf32>, vector<16x256xf32> -> vector<144x256xf32>
    %c0_61 = arith.constant 0 : index
    %c0_62 = arith.constant 0 : index
    %213 = vector.load %arg5[%c0_61, %c0_62] : memref<32x144xf32, #tpu.memory_space<vmem>>, vector<32x144xf32>
    %cst_63 = arith.constant dense<0.000000e+00> : vector<32x256xf32>
    %214 = tpu.matmul %213, %212, %cst_63 {dimension_numbers = #tpu.dot_dimension_numbers<[1], [0], [0], [1], [0, 0, 1, 1], [], []>} : vector<32x144xf32>, vector<144x256xf32>, vector<32x256xf32> -> vector<32x256xf32>
    %c0_64 = arith.constant 0 : index
    %c0_65 = arith.constant 0 : index
    %215 = vector.load %arg6[%c0_64, %c0_65] : memref<32x1xf32, #tpu.memory_space<vmem>>, vector<32x1xf32>
    %216 = vector.broadcast %215 : vector<32x1xf32> to vector<32x256xf32>
    %217 = arith.addf %214, %216 : vector<32x256xf32>
    %218 = vector.extract_strided_slice %217 {offsets = [0, 0], sizes = [8, 256], strides = [1, 1]} : vector<32x256xf32> to vector<8x256xf32>
    %219 = arith.negf %218 : vector<8x256xf32>
    %220 = math.exp %219 : vector<8x256xf32>
    %cst_66 = arith.constant 1.000000e+00 : f32
    %221 = vector.broadcast %cst_66 : f32 to vector<8x256xf32>
    %222 = arith.addf %221, %220 : vector<8x256xf32>
    %223 = arith.divf %221, %222 : vector<8x256xf32>
    %224 = vector.extract_strided_slice %217 {offsets = [8, 0], sizes = [8, 256], strides = [1, 1]} : vector<32x256xf32> to vector<8x256xf32>
    %225 = arith.negf %224 : vector<8x256xf32>
    %226 = math.exp %225 : vector<8x256xf32>
    %cst_67 = arith.constant 1.000000e+00 : f32
    %227 = vector.broadcast %cst_67 : f32 to vector<8x256xf32>
    %228 = arith.addf %227, %226 : vector<8x256xf32>
    %229 = arith.divf %227, %228 : vector<8x256xf32>
    %230 = vector.extract_strided_slice %217 {offsets = [16, 0], sizes = [8, 256], strides = [1, 1]} : vector<32x256xf32> to vector<8x256xf32>
    %231 = math.tanh %230 : vector<8x256xf32>
    %232 = vector.extract_strided_slice %217 {offsets = [24, 0], sizes = [8, 256], strides = [1, 1]} : vector<32x256xf32> to vector<8x256xf32>
    %233 = arith.negf %232 : vector<8x256xf32>
    %234 = math.exp %233 : vector<8x256xf32>
    %cst_68 = arith.constant 1.000000e+00 : f32
    %235 = vector.broadcast %cst_68 : f32 to vector<8x256xf32>
    %236 = arith.addf %235, %234 : vector<8x256xf32>
    %237 = arith.divf %235, %236 : vector<8x256xf32>
    %238 = arith.mulf %229, %125 : vector<8x256xf32>
    %239 = arith.mulf %223, %231 : vector<8x256xf32>
    %240 = arith.addf %238, %239 : vector<8x256xf32>
    %241 = math.tanh %240 : vector<8x256xf32>
    %242 = arith.mulf %237, %241 : vector<8x256xf32>
    %c0_69 = arith.constant 0 : index
    %c2 = arith.constant 2 : index
    %c0_70 = arith.constant 0 : index
    %c0_71 = arith.constant 0 : index
    %243 = vector.load %arg1[%c0_69, %c2, %c0_70, %c0_71] : memref<1x4x4x256xf32, #tpu.memory_space<vmem>>, vector<1x1x4x256xf32>
    %244 = vector.shape_cast %243 : vector<1x1x4x256xf32> to vector<4x256xf32>
    %cst_72 = arith.constant 0.000000e+00 : f32
    %245 = vector.broadcast %cst_72 : f32 to vector<4x256xf32>
    %246 = tpu.concatenate %244, %245, %186 in 0 : vector<4x256xf32>, vector<4x256xf32>, vector<8x256xf32> -> vector<16x256xf32>
    %c17_i32_73 = arith.constant 17 : i32
    %247 = tpu.dynamic_rotate %246 by %c17_i32_73 dim 1 : vector<16x256xf32>, i32 -> vector<16x256xf32>
    %248 = vector.broadcast %1 : vector<1x256xf32> to vector<16x256xf32>
    %249 = arith.mulf %247, %248 : vector<16x256xf32>
    %c16_i32_74 = arith.constant 16 : i32
    %250 = tpu.dynamic_rotate %246 by %c16_i32_74 dim 1 : vector<16x256xf32>, i32 -> vector<16x256xf32>
    %251 = vector.broadcast %2 : vector<1x256xf32> to vector<16x256xf32>
    %252 = arith.mulf %250, %251 : vector<16x256xf32>
    %c15_i32_75 = arith.constant 15 : i32
    %253 = tpu.dynamic_rotate %246 by %c15_i32_75 dim 1 : vector<16x256xf32>, i32 -> vector<16x256xf32>
    %254 = vector.broadcast %3 : vector<1x256xf32> to vector<16x256xf32>
    %255 = arith.mulf %253, %254 : vector<16x256xf32>
    %c1_i32_76 = arith.constant 1 : i32
    %256 = tpu.dynamic_rotate %246 by %c1_i32_76 dim 1 : vector<16x256xf32>, i32 -> vector<16x256xf32>
    %257 = vector.broadcast %4 : vector<1x256xf32> to vector<16x256xf32>
    %258 = arith.mulf %256, %257 : vector<16x256xf32>
    %c255_i32_77 = arith.constant 255 : i32
    %259 = tpu.dynamic_rotate %246 by %c255_i32_77 dim 1 : vector<16x256xf32>, i32 -> vector<16x256xf32>
    %260 = vector.broadcast %5 : vector<1x256xf32> to vector<16x256xf32>
    %261 = arith.mulf %259, %260 : vector<16x256xf32>
    %c241_i32_78 = arith.constant 241 : i32
    %262 = tpu.dynamic_rotate %246 by %c241_i32_78 dim 1 : vector<16x256xf32>, i32 -> vector<16x256xf32>
    %263 = vector.broadcast %6 : vector<1x256xf32> to vector<16x256xf32>
    %264 = arith.mulf %262, %263 : vector<16x256xf32>
    %c240_i32_79 = arith.constant 240 : i32
    %265 = tpu.dynamic_rotate %246 by %c240_i32_79 dim 1 : vector<16x256xf32>, i32 -> vector<16x256xf32>
    %266 = vector.broadcast %7 : vector<1x256xf32> to vector<16x256xf32>
    %267 = arith.mulf %265, %266 : vector<16x256xf32>
    %c239_i32_80 = arith.constant 239 : i32
    %268 = tpu.dynamic_rotate %246 by %c239_i32_80 dim 1 : vector<16x256xf32>, i32 -> vector<16x256xf32>
    %269 = vector.broadcast %8 : vector<1x256xf32> to vector<16x256xf32>
    %270 = arith.mulf %268, %269 : vector<16x256xf32>
    %271 = tpu.concatenate %249, %252, %255, %258, %246, %261, %264, %267, %270 in 0 : vector<16x256xf32>, vector<16x256xf32>, vector<16x256xf32>, vector<16x256xf32>, vector<16x256xf32>, vector<16x256xf32>, vector<16x256xf32>, vector<16x256xf32>, vector<16x256xf32> -> vector<144x256xf32>
    %c0_81 = arith.constant 0 : index
    %c0_82 = arith.constant 0 : index
    %272 = vector.load %arg3[%c0_81, %c0_82] : memref<32x144xf32, #tpu.memory_space<vmem>>, vector<32x144xf32>
    %cst_83 = arith.constant dense<0.000000e+00> : vector<32x256xf32>
    %273 = tpu.matmul %272, %271, %cst_83 {dimension_numbers = #tpu.dot_dimension_numbers<[1], [0], [0], [1], [0, 0, 1, 1], [], []>} : vector<32x144xf32>, vector<144x256xf32>, vector<32x256xf32> -> vector<32x256xf32>
    %c0_84 = arith.constant 0 : index
    %c0_85 = arith.constant 0 : index
    %274 = vector.load %arg4[%c0_84, %c0_85] : memref<32x1xf32, #tpu.memory_space<vmem>>, vector<32x1xf32>
    %275 = vector.broadcast %274 : vector<32x1xf32> to vector<32x256xf32>
    %276 = arith.addf %273, %275 : vector<32x256xf32>
    %277 = vector.extract_strided_slice %276 {offsets = [0, 0], sizes = [8, 256], strides = [1, 1]} : vector<32x256xf32> to vector<8x256xf32>
    %278 = arith.negf %277 : vector<8x256xf32>
    %279 = math.exp %278 : vector<8x256xf32>
    %cst_86 = arith.constant 1.000000e+00 : f32
    %280 = vector.broadcast %cst_86 : f32 to vector<8x256xf32>
    %281 = arith.addf %280, %279 : vector<8x256xf32>
    %282 = arith.divf %280, %281 : vector<8x256xf32>
    %283 = vector.extract_strided_slice %276 {offsets = [8, 0], sizes = [8, 256], strides = [1, 1]} : vector<32x256xf32> to vector<8x256xf32>
    %284 = arith.negf %283 : vector<8x256xf32>
    %285 = math.exp %284 : vector<8x256xf32>
    %cst_87 = arith.constant 1.000000e+00 : f32
    %286 = vector.broadcast %cst_87 : f32 to vector<8x256xf32>
    %287 = arith.addf %286, %285 : vector<8x256xf32>
    %288 = arith.divf %286, %287 : vector<8x256xf32>
    %289 = vector.extract_strided_slice %276 {offsets = [16, 0], sizes = [8, 256], strides = [1, 1]} : vector<32x256xf32> to vector<8x256xf32>
    %290 = math.tanh %289 : vector<8x256xf32>
    %291 = vector.extract_strided_slice %276 {offsets = [24, 0], sizes = [8, 256], strides = [1, 1]} : vector<32x256xf32> to vector<8x256xf32>
    %292 = arith.negf %291 : vector<8x256xf32>
    %293 = math.exp %292 : vector<8x256xf32>
    %cst_88 = arith.constant 1.000000e+00 : f32
    %294 = vector.broadcast %cst_88 : f32 to vector<8x256xf32>
    %295 = arith.addf %294, %293 : vector<8x256xf32>
    %296 = arith.divf %294, %295 : vector<8x256xf32>
    %297 = arith.mulf %288, %184 : vector<8x256xf32>
    %298 = arith.mulf %282, %290 : vector<8x256xf32>
    %299 = arith.addf %297, %298 : vector<8x256xf32>
    %300 = math.tanh %299 : vector<8x256xf32>
    %301 = arith.mulf %296, %300 : vector<8x256xf32>
    %302 = tpu.concatenate %301, %242 in 0 : vector<8x256xf32>, vector<8x256xf32> -> vector<16x256xf32>
    %c17_i32_89 = arith.constant 17 : i32
    %303 = tpu.dynamic_rotate %302 by %c17_i32_89 dim 1 : vector<16x256xf32>, i32 -> vector<16x256xf32>
    %304 = vector.broadcast %1 : vector<1x256xf32> to vector<16x256xf32>
    %305 = arith.mulf %303, %304 : vector<16x256xf32>
    %c16_i32_90 = arith.constant 16 : i32
    %306 = tpu.dynamic_rotate %302 by %c16_i32_90 dim 1 : vector<16x256xf32>, i32 -> vector<16x256xf32>
    %307 = vector.broadcast %2 : vector<1x256xf32> to vector<16x256xf32>
    %308 = arith.mulf %306, %307 : vector<16x256xf32>
    %c15_i32_91 = arith.constant 15 : i32
    %309 = tpu.dynamic_rotate %302 by %c15_i32_91 dim 1 : vector<16x256xf32>, i32 -> vector<16x256xf32>
    %310 = vector.broadcast %3 : vector<1x256xf32> to vector<16x256xf32>
    %311 = arith.mulf %309, %310 : vector<16x256xf32>
    %c1_i32_92 = arith.constant 1 : i32
    %312 = tpu.dynamic_rotate %302 by %c1_i32_92 dim 1 : vector<16x256xf32>, i32 -> vector<16x256xf32>
    %313 = vector.broadcast %4 : vector<1x256xf32> to vector<16x256xf32>
    %314 = arith.mulf %312, %313 : vector<16x256xf32>
    %c255_i32_93 = arith.constant 255 : i32
    %315 = tpu.dynamic_rotate %302 by %c255_i32_93 dim 1 : vector<16x256xf32>, i32 -> vector<16x256xf32>
    %316 = vector.broadcast %5 : vector<1x256xf32> to vector<16x256xf32>
    %317 = arith.mulf %315, %316 : vector<16x256xf32>
    %c241_i32_94 = arith.constant 241 : i32
    %318 = tpu.dynamic_rotate %302 by %c241_i32_94 dim 1 : vector<16x256xf32>, i32 -> vector<16x256xf32>
    %319 = vector.broadcast %6 : vector<1x256xf32> to vector<16x256xf32>
    %320 = arith.mulf %318, %319 : vector<16x256xf32>
    %c240_i32_95 = arith.constant 240 : i32
    %321 = tpu.dynamic_rotate %302 by %c240_i32_95 dim 1 : vector<16x256xf32>, i32 -> vector<16x256xf32>
    %322 = vector.broadcast %7 : vector<1x256xf32> to vector<16x256xf32>
    %323 = arith.mulf %321, %322 : vector<16x256xf32>
    %c239_i32_96 = arith.constant 239 : i32
    %324 = tpu.dynamic_rotate %302 by %c239_i32_96 dim 1 : vector<16x256xf32>, i32 -> vector<16x256xf32>
    %325 = vector.broadcast %8 : vector<1x256xf32> to vector<16x256xf32>
    %326 = arith.mulf %324, %325 : vector<16x256xf32>
    %327 = tpu.concatenate %305, %308, %311, %314, %302, %317, %320, %323, %326 in 0 : vector<16x256xf32>, vector<16x256xf32>, vector<16x256xf32>, vector<16x256xf32>, vector<16x256xf32>, vector<16x256xf32>, vector<16x256xf32>, vector<16x256xf32>, vector<16x256xf32> -> vector<144x256xf32>
    %c0_97 = arith.constant 0 : index
    %c0_98 = arith.constant 0 : index
    %328 = vector.load %arg5[%c0_97, %c0_98] : memref<32x144xf32, #tpu.memory_space<vmem>>, vector<32x144xf32>
    %cst_99 = arith.constant dense<0.000000e+00> : vector<32x256xf32>
    %329 = tpu.matmul %328, %327, %cst_99 {dimension_numbers = #tpu.dot_dimension_numbers<[1], [0], [0], [1], [0, 0, 1, 1], [], []>} : vector<32x144xf32>, vector<144x256xf32>, vector<32x256xf32> -> vector<32x256xf32>
    %c0_100 = arith.constant 0 : index
    %c0_101 = arith.constant 0 : index
    %330 = vector.load %arg6[%c0_100, %c0_101] : memref<32x1xf32, #tpu.memory_space<vmem>>, vector<32x1xf32>
    %331 = vector.broadcast %330 : vector<32x1xf32> to vector<32x256xf32>
    %332 = arith.addf %329, %331 : vector<32x256xf32>
    %333 = vector.extract_strided_slice %332 {offsets = [0, 0], sizes = [8, 256], strides = [1, 1]} : vector<32x256xf32> to vector<8x256xf32>
    %334 = arith.negf %333 : vector<8x256xf32>
    %335 = math.exp %334 : vector<8x256xf32>
    %cst_102 = arith.constant 1.000000e+00 : f32
    %336 = vector.broadcast %cst_102 : f32 to vector<8x256xf32>
    %337 = arith.addf %336, %335 : vector<8x256xf32>
    %338 = arith.divf %336, %337 : vector<8x256xf32>
    %339 = vector.extract_strided_slice %332 {offsets = [8, 0], sizes = [8, 256], strides = [1, 1]} : vector<32x256xf32> to vector<8x256xf32>
    %340 = arith.negf %339 : vector<8x256xf32>
    %341 = math.exp %340 : vector<8x256xf32>
    %cst_103 = arith.constant 1.000000e+00 : f32
    %342 = vector.broadcast %cst_103 : f32 to vector<8x256xf32>
    %343 = arith.addf %342, %341 : vector<8x256xf32>
    %344 = arith.divf %342, %343 : vector<8x256xf32>
    %345 = vector.extract_strided_slice %332 {offsets = [16, 0], sizes = [8, 256], strides = [1, 1]} : vector<32x256xf32> to vector<8x256xf32>
    %346 = math.tanh %345 : vector<8x256xf32>
    %347 = vector.extract_strided_slice %332 {offsets = [24, 0], sizes = [8, 256], strides = [1, 1]} : vector<32x256xf32> to vector<8x256xf32>
    %348 = arith.negf %347 : vector<8x256xf32>
    %349 = math.exp %348 : vector<8x256xf32>
    %cst_104 = arith.constant 1.000000e+00 : f32
    %350 = vector.broadcast %cst_104 : f32 to vector<8x256xf32>
    %351 = arith.addf %350, %349 : vector<8x256xf32>
    %352 = arith.divf %350, %351 : vector<8x256xf32>
    %353 = arith.mulf %344, %240 : vector<8x256xf32>
    %354 = arith.mulf %338, %346 : vector<8x256xf32>
    %355 = arith.addf %353, %354 : vector<8x256xf32>
    %356 = math.tanh %355 : vector<8x256xf32>
    %357 = arith.mulf %352, %356 : vector<8x256xf32>
    %c0_105 = arith.constant 0 : index
    %c3 = arith.constant 3 : index
    %c0_106 = arith.constant 0 : index
    %c0_107 = arith.constant 0 : index
    %358 = vector.load %arg1[%c0_105, %c3, %c0_106, %c0_107] : memref<1x4x4x256xf32, #tpu.memory_space<vmem>>, vector<1x1x4x256xf32>
    %359 = vector.shape_cast %358 : vector<1x1x4x256xf32> to vector<4x256xf32>
    %cst_108 = arith.constant 0.000000e+00 : f32
    %360 = vector.broadcast %cst_108 : f32 to vector<4x256xf32>
    %361 = tpu.concatenate %359, %360, %301 in 0 : vector<4x256xf32>, vector<4x256xf32>, vector<8x256xf32> -> vector<16x256xf32>
    %c17_i32_109 = arith.constant 17 : i32
    %362 = tpu.dynamic_rotate %361 by %c17_i32_109 dim 1 : vector<16x256xf32>, i32 -> vector<16x256xf32>
    %363 = vector.broadcast %1 : vector<1x256xf32> to vector<16x256xf32>
    %364 = arith.mulf %362, %363 : vector<16x256xf32>
    %c16_i32_110 = arith.constant 16 : i32
    %365 = tpu.dynamic_rotate %361 by %c16_i32_110 dim 1 : vector<16x256xf32>, i32 -> vector<16x256xf32>
    %366 = vector.broadcast %2 : vector<1x256xf32> to vector<16x256xf32>
    %367 = arith.mulf %365, %366 : vector<16x256xf32>
    %c15_i32_111 = arith.constant 15 : i32
    %368 = tpu.dynamic_rotate %361 by %c15_i32_111 dim 1 : vector<16x256xf32>, i32 -> vector<16x256xf32>
    %369 = vector.broadcast %3 : vector<1x256xf32> to vector<16x256xf32>
    %370 = arith.mulf %368, %369 : vector<16x256xf32>
    %c1_i32_112 = arith.constant 1 : i32
    %371 = tpu.dynamic_rotate %361 by %c1_i32_112 dim 1 : vector<16x256xf32>, i32 -> vector<16x256xf32>
    %372 = vector.broadcast %4 : vector<1x256xf32> to vector<16x256xf32>
    %373 = arith.mulf %371, %372 : vector<16x256xf32>
    %c255_i32_113 = arith.constant 255 : i32
    %374 = tpu.dynamic_rotate %361 by %c255_i32_113 dim 1 : vector<16x256xf32>, i32 -> vector<16x256xf32>
    %375 = vector.broadcast %5 : vector<1x256xf32> to vector<16x256xf32>
    %376 = arith.mulf %374, %375 : vector<16x256xf32>
    %c241_i32_114 = arith.constant 241 : i32
    %377 = tpu.dynamic_rotate %361 by %c241_i32_114 dim 1 : vector<16x256xf32>, i32 -> vector<16x256xf32>
    %378 = vector.broadcast %6 : vector<1x256xf32> to vector<16x256xf32>
    %379 = arith.mulf %377, %378 : vector<16x256xf32>
    %c240_i32_115 = arith.constant 240 : i32
    %380 = tpu.dynamic_rotate %361 by %c240_i32_115 dim 1 : vector<16x256xf32>, i32 -> vector<16x256xf32>
    %381 = vector.broadcast %7 : vector<1x256xf32> to vector<16x256xf32>
    %382 = arith.mulf %380, %381 : vector<16x256xf32>
    %c239_i32_116 = arith.constant 239 : i32
    %383 = tpu.dynamic_rotate %361 by %c239_i32_116 dim 1 : vector<16x256xf32>, i32 -> vector<16x256xf32>
    %384 = vector.broadcast %8 : vector<1x256xf32> to vector<16x256xf32>
    %385 = arith.mulf %383, %384 : vector<16x256xf32>
    %386 = tpu.concatenate %364, %367, %370, %373, %361, %376, %379, %382, %385 in 0 : vector<16x256xf32>, vector<16x256xf32>, vector<16x256xf32>, vector<16x256xf32>, vector<16x256xf32>, vector<16x256xf32>, vector<16x256xf32>, vector<16x256xf32>, vector<16x256xf32> -> vector<144x256xf32>
    %c0_117 = arith.constant 0 : index
    %c0_118 = arith.constant 0 : index
    %387 = vector.load %arg3[%c0_117, %c0_118] : memref<32x144xf32, #tpu.memory_space<vmem>>, vector<32x144xf32>
    %cst_119 = arith.constant dense<0.000000e+00> : vector<32x256xf32>
    %388 = tpu.matmul %387, %386, %cst_119 {dimension_numbers = #tpu.dot_dimension_numbers<[1], [0], [0], [1], [0, 0, 1, 1], [], []>} : vector<32x144xf32>, vector<144x256xf32>, vector<32x256xf32> -> vector<32x256xf32>
    %c0_120 = arith.constant 0 : index
    %c0_121 = arith.constant 0 : index
    %389 = vector.load %arg4[%c0_120, %c0_121] : memref<32x1xf32, #tpu.memory_space<vmem>>, vector<32x1xf32>
    %390 = vector.broadcast %389 : vector<32x1xf32> to vector<32x256xf32>
    %391 = arith.addf %388, %390 : vector<32x256xf32>
    %392 = vector.extract_strided_slice %391 {offsets = [0, 0], sizes = [8, 256], strides = [1, 1]} : vector<32x256xf32> to vector<8x256xf32>
    %393 = arith.negf %392 : vector<8x256xf32>
    %394 = math.exp %393 : vector<8x256xf32>
    %cst_122 = arith.constant 1.000000e+00 : f32
    %395 = vector.broadcast %cst_122 : f32 to vector<8x256xf32>
    %396 = arith.addf %395, %394 : vector<8x256xf32>
    %397 = arith.divf %395, %396 : vector<8x256xf32>
    %398 = vector.extract_strided_slice %391 {offsets = [8, 0], sizes = [8, 256], strides = [1, 1]} : vector<32x256xf32> to vector<8x256xf32>
    %399 = arith.negf %398 : vector<8x256xf32>
    %400 = math.exp %399 : vector<8x256xf32>
    %cst_123 = arith.constant 1.000000e+00 : f32
    %401 = vector.broadcast %cst_123 : f32 to vector<8x256xf32>
    %402 = arith.addf %401, %400 : vector<8x256xf32>
    %403 = arith.divf %401, %402 : vector<8x256xf32>
    %404 = vector.extract_strided_slice %391 {offsets = [16, 0], sizes = [8, 256], strides = [1, 1]} : vector<32x256xf32> to vector<8x256xf32>
    %405 = math.tanh %404 : vector<8x256xf32>
    %406 = vector.extract_strided_slice %391 {offsets = [24, 0], sizes = [8, 256], strides = [1, 1]} : vector<32x256xf32> to vector<8x256xf32>
    %407 = arith.negf %406 : vector<8x256xf32>
    %408 = math.exp %407 : vector<8x256xf32>
    %cst_124 = arith.constant 1.000000e+00 : f32
    %409 = vector.broadcast %cst_124 : f32 to vector<8x256xf32>
    %410 = arith.addf %409, %408 : vector<8x256xf32>
    %411 = arith.divf %409, %410 : vector<8x256xf32>
    %412 = arith.mulf %403, %299 : vector<8x256xf32>
    %413 = arith.mulf %397, %405 : vector<8x256xf32>
    %414 = arith.addf %412, %413 : vector<8x256xf32>
    %415 = math.tanh %414 : vector<8x256xf32>
    %416 = arith.mulf %411, %415 : vector<8x256xf32>
    %417 = tpu.concatenate %416, %357 in 0 : vector<8x256xf32>, vector<8x256xf32> -> vector<16x256xf32>
    %c17_i32_125 = arith.constant 17 : i32
    %418 = tpu.dynamic_rotate %417 by %c17_i32_125 dim 1 : vector<16x256xf32>, i32 -> vector<16x256xf32>
    %419 = vector.broadcast %1 : vector<1x256xf32> to vector<16x256xf32>
    %420 = arith.mulf %418, %419 : vector<16x256xf32>
    %c16_i32_126 = arith.constant 16 : i32
    %421 = tpu.dynamic_rotate %417 by %c16_i32_126 dim 1 : vector<16x256xf32>, i32 -> vector<16x256xf32>
    %422 = vector.broadcast %2 : vector<1x256xf32> to vector<16x256xf32>
    %423 = arith.mulf %421, %422 : vector<16x256xf32>
    %c15_i32_127 = arith.constant 15 : i32
    %424 = tpu.dynamic_rotate %417 by %c15_i32_127 dim 1 : vector<16x256xf32>, i32 -> vector<16x256xf32>
    %425 = vector.broadcast %3 : vector<1x256xf32> to vector<16x256xf32>
    %426 = arith.mulf %424, %425 : vector<16x256xf32>
    %c1_i32_128 = arith.constant 1 : i32
    %427 = tpu.dynamic_rotate %417 by %c1_i32_128 dim 1 : vector<16x256xf32>, i32 -> vector<16x256xf32>
    %428 = vector.broadcast %4 : vector<1x256xf32> to vector<16x256xf32>
    %429 = arith.mulf %427, %428 : vector<16x256xf32>
    %c255_i32_129 = arith.constant 255 : i32
    %430 = tpu.dynamic_rotate %417 by %c255_i32_129 dim 1 : vector<16x256xf32>, i32 -> vector<16x256xf32>
    %431 = vector.broadcast %5 : vector<1x256xf32> to vector<16x256xf32>
    %432 = arith.mulf %430, %431 : vector<16x256xf32>
    %c241_i32_130 = arith.constant 241 : i32
    %433 = tpu.dynamic_rotate %417 by %c241_i32_130 dim 1 : vector<16x256xf32>, i32 -> vector<16x256xf32>
    %434 = vector.broadcast %6 : vector<1x256xf32> to vector<16x256xf32>
    %435 = arith.mulf %433, %434 : vector<16x256xf32>
    %c240_i32_131 = arith.constant 240 : i32
    %436 = tpu.dynamic_rotate %417 by %c240_i32_131 dim 1 : vector<16x256xf32>, i32 -> vector<16x256xf32>
    %437 = vector.broadcast %7 : vector<1x256xf32> to vector<16x256xf32>
    %438 = arith.mulf %436, %437 : vector<16x256xf32>
    %c239_i32_132 = arith.constant 239 : i32
    %439 = tpu.dynamic_rotate %417 by %c239_i32_132 dim 1 : vector<16x256xf32>, i32 -> vector<16x256xf32>
    %440 = vector.broadcast %8 : vector<1x256xf32> to vector<16x256xf32>
    %441 = arith.mulf %439, %440 : vector<16x256xf32>
    %442 = tpu.concatenate %420, %423, %426, %429, %417, %432, %435, %438, %441 in 0 : vector<16x256xf32>, vector<16x256xf32>, vector<16x256xf32>, vector<16x256xf32>, vector<16x256xf32>, vector<16x256xf32>, vector<16x256xf32>, vector<16x256xf32>, vector<16x256xf32> -> vector<144x256xf32>
    %c0_133 = arith.constant 0 : index
    %c0_134 = arith.constant 0 : index
    %443 = vector.load %arg5[%c0_133, %c0_134] : memref<32x144xf32, #tpu.memory_space<vmem>>, vector<32x144xf32>
    %cst_135 = arith.constant dense<0.000000e+00> : vector<32x256xf32>
    %444 = tpu.matmul %443, %442, %cst_135 {dimension_numbers = #tpu.dot_dimension_numbers<[1], [0], [0], [1], [0, 0, 1, 1], [], []>} : vector<32x144xf32>, vector<144x256xf32>, vector<32x256xf32> -> vector<32x256xf32>
    %c0_136 = arith.constant 0 : index
    %c0_137 = arith.constant 0 : index
    %445 = vector.load %arg6[%c0_136, %c0_137] : memref<32x1xf32, #tpu.memory_space<vmem>>, vector<32x1xf32>
    %446 = vector.broadcast %445 : vector<32x1xf32> to vector<32x256xf32>
    %447 = arith.addf %444, %446 : vector<32x256xf32>
    %448 = vector.extract_strided_slice %447 {offsets = [0, 0], sizes = [8, 256], strides = [1, 1]} : vector<32x256xf32> to vector<8x256xf32>
    %449 = arith.negf %448 : vector<8x256xf32>
    %450 = math.exp %449 : vector<8x256xf32>
    %cst_138 = arith.constant 1.000000e+00 : f32
    %451 = vector.broadcast %cst_138 : f32 to vector<8x256xf32>
    %452 = arith.addf %451, %450 : vector<8x256xf32>
    %453 = arith.divf %451, %452 : vector<8x256xf32>
    %454 = vector.extract_strided_slice %447 {offsets = [8, 0], sizes = [8, 256], strides = [1, 1]} : vector<32x256xf32> to vector<8x256xf32>
    %455 = arith.negf %454 : vector<8x256xf32>
    %456 = math.exp %455 : vector<8x256xf32>
    %cst_139 = arith.constant 1.000000e+00 : f32
    %457 = vector.broadcast %cst_139 : f32 to vector<8x256xf32>
    %458 = arith.addf %457, %456 : vector<8x256xf32>
    %459 = arith.divf %457, %458 : vector<8x256xf32>
    %460 = vector.extract_strided_slice %447 {offsets = [16, 0], sizes = [8, 256], strides = [1, 1]} : vector<32x256xf32> to vector<8x256xf32>
    %461 = math.tanh %460 : vector<8x256xf32>
    %462 = vector.extract_strided_slice %447 {offsets = [24, 0], sizes = [8, 256], strides = [1, 1]} : vector<32x256xf32> to vector<8x256xf32>
    %463 = arith.negf %462 : vector<8x256xf32>
    %464 = math.exp %463 : vector<8x256xf32>
    %cst_140 = arith.constant 1.000000e+00 : f32
    %465 = vector.broadcast %cst_140 : f32 to vector<8x256xf32>
    %466 = arith.addf %465, %464 : vector<8x256xf32>
    %467 = arith.divf %465, %466 : vector<8x256xf32>
    %468 = arith.mulf %459, %355 : vector<8x256xf32>
    %469 = arith.mulf %453, %461 : vector<8x256xf32>
    %470 = arith.addf %468, %469 : vector<8x256xf32>
    %471 = math.tanh %470 : vector<8x256xf32>
    %472 = arith.mulf %467, %471 : vector<8x256xf32>
    %473 = tpu.concatenate %127, %242, %357, %472 in 0 : vector<8x256xf32>, vector<8x256xf32>, vector<8x256xf32>, vector<8x256xf32> -> vector<32x256xf32>
    %c0_141 = arith.constant 0 : index
    %c0_142 = arith.constant 0 : index
    %474 = vector.load %arg7[%c0_141, %c0_142] : memref<4x32xf32, #tpu.memory_space<vmem>>, vector<4x32xf32>
    %cst_143 = arith.constant dense<0.000000e+00> : vector<4x256xf32>
    %475 = tpu.matmul %474, %473, %cst_143 {dimension_numbers = #tpu.dot_dimension_numbers<[1], [0], [0], [1], [0, 0, 1, 1], [], []>} : vector<4x32xf32>, vector<32x256xf32>, vector<4x256xf32> -> vector<4x256xf32>
    %c0_144 = arith.constant 0 : index
    %c0_145 = arith.constant 0 : index
    %476 = vector.load %arg8[%c0_144, %c0_145] : memref<4x1xf32, #tpu.memory_space<vmem>>, vector<4x1xf32>
    %477 = vector.broadcast %476 : vector<4x1xf32> to vector<4x256xf32>
    %478 = arith.addf %475, %477 : vector<4x256xf32>
    %479 = math.tanh %478 : vector<4x256xf32>
    %c0_146 = arith.constant 0 : index
    %c0_147 = arith.constant 0 : index
    %c0_148 = arith.constant 0 : index
    %c0_149 = arith.constant 0 : index
    %480 = vector.load %arg9[%c0_146, %c0_147, %c0_148, %c0_149] : memref<1x2x4x256xf32, #tpu.memory_space<vmem>>, vector<1x1x4x256xf32>
    %481 = vector.shape_cast %480 : vector<1x1x4x256xf32> to vector<4x256xf32>
    %482 = vector.shape_cast %479 : vector<4x256xf32> to vector<1x1x4x256xf32>
    tpu.vector_store %arg9[%c0_146, %c0_147, %c0_148, %c0_149], %482 {strides = array<i32>} : memref<1x2x4x256xf32, #tpu.memory_space<vmem>>, vector<1x1x4x256xf32>,
    %cst_150 = arith.constant 0.000000e+00 : f32
    %483 = vector.broadcast %cst_150 : f32 to vector<4x256xf32>
    %484 = tpu.concatenate %479, %483, %416 in 0 : vector<4x256xf32>, vector<4x256xf32>, vector<8x256xf32> -> vector<16x256xf32>
    %c17_i32_151 = arith.constant 17 : i32
    %485 = tpu.dynamic_rotate %484 by %c17_i32_151 dim 1 : vector<16x256xf32>, i32 -> vector<16x256xf32>
    %486 = vector.broadcast %1 : vector<1x256xf32> to vector<16x256xf32>
    %487 = arith.mulf %485, %486 : vector<16x256xf32>
    %c16_i32_152 = arith.constant 16 : i32
    %488 = tpu.dynamic_rotate %484 by %c16_i32_152 dim 1 : vector<16x256xf32>, i32 -> vector<16x256xf32>
    %489 = vector.broadcast %2 : vector<1x256xf32> to vector<16x256xf32>
    %490 = arith.mulf %488, %489 : vector<16x256xf32>
    %c15_i32_153 = arith.constant 15 : i32
    %491 = tpu.dynamic_rotate %484 by %c15_i32_153 dim 1 : vector<16x256xf32>, i32 -> vector<16x256xf32>
    %492 = vector.broadcast %3 : vector<1x256xf32> to vector<16x256xf32>
    %493 = arith.mulf %491, %492 : vector<16x256xf32>
    %c1_i32_154 = arith.constant 1 : i32
    %494 = tpu.dynamic_rotate %484 by %c1_i32_154 dim 1 : vector<16x256xf32>, i32 -> vector<16x256xf32>
    %495 = vector.broadcast %4 : vector<1x256xf32> to vector<16x256xf32>
    %496 = arith.mulf %494, %495 : vector<16x256xf32>
    %c255_i32_155 = arith.constant 255 : i32
    %497 = tpu.dynamic_rotate %484 by %c255_i32_155 dim 1 : vector<16x256xf32>, i32 -> vector<16x256xf32>
    %498 = vector.broadcast %5 : vector<1x256xf32> to vector<16x256xf32>
    %499 = arith.mulf %497, %498 : vector<16x256xf32>
    %c241_i32_156 = arith.constant 241 : i32
    %500 = tpu.dynamic_rotate %484 by %c241_i32_156 dim 1 : vector<16x256xf32>, i32 -> vector<16x256xf32>
    %501 = vector.broadcast %6 : vector<1x256xf32> to vector<16x256xf32>
    %502 = arith.mulf %500, %501 : vector<16x256xf32>
    %c240_i32_157 = arith.constant 240 : i32
    %503 = tpu.dynamic_rotate %484 by %c240_i32_157 dim 1 : vector<16x256xf32>, i32 -> vector<16x256xf32>
    %504 = vector.broadcast %7 : vector<1x256xf32> to vector<16x256xf32>
    %505 = arith.mulf %503, %504 : vector<16x256xf32>
    %c239_i32_158 = arith.constant 239 : i32
    %506 = tpu.dynamic_rotate %484 by %c239_i32_158 dim 1 : vector<16x256xf32>, i32 -> vector<16x256xf32>
    %507 = vector.broadcast %8 : vector<1x256xf32> to vector<16x256xf32>
    %508 = arith.mulf %506, %507 : vector<16x256xf32>
    %509 = tpu.concatenate %487, %490, %493, %496, %484, %499, %502, %505, %508 in 0 : vector<16x256xf32>, vector<16x256xf32>, vector<16x256xf32>, vector<16x256xf32>, vector<16x256xf32>, vector<16x256xf32>, vector<16x256xf32>, vector<16x256xf32>, vector<16x256xf32> -> vector<144x256xf32>
    %c0_159 = arith.constant 0 : index
    %c0_160 = arith.constant 0 : index
    %510 = vector.load %arg3[%c0_159, %c0_160] : memref<32x144xf32, #tpu.memory_space<vmem>>, vector<32x144xf32>
    %cst_161 = arith.constant dense<0.000000e+00> : vector<32x256xf32>
    %511 = tpu.matmul %510, %509, %cst_161 {dimension_numbers = #tpu.dot_dimension_numbers<[1], [0], [0], [1], [0, 0, 1, 1], [], []>} : vector<32x144xf32>, vector<144x256xf32>, vector<32x256xf32> -> vector<32x256xf32>
    %c0_162 = arith.constant 0 : index
    %c0_163 = arith.constant 0 : index
    %512 = vector.load %arg4[%c0_162, %c0_163] : memref<32x1xf32, #tpu.memory_space<vmem>>, vector<32x1xf32>
    %513 = vector.broadcast %512 : vector<32x1xf32> to vector<32x256xf32>
    %514 = arith.addf %511, %513 : vector<32x256xf32>
    %515 = vector.extract_strided_slice %514 {offsets = [0, 0], sizes = [8, 256], strides = [1, 1]} : vector<32x256xf32> to vector<8x256xf32>
    %516 = arith.negf %515 : vector<8x256xf32>
    %517 = math.exp %516 : vector<8x256xf32>
    %cst_164 = arith.constant 1.000000e+00 : f32
    %518 = vector.broadcast %cst_164 : f32 to vector<8x256xf32>
    %519 = arith.addf %518, %517 : vector<8x256xf32>
    %520 = arith.divf %518, %519 : vector<8x256xf32>
    %521 = vector.extract_strided_slice %514 {offsets = [8, 0], sizes = [8, 256], strides = [1, 1]} : vector<32x256xf32> to vector<8x256xf32>
    %522 = arith.negf %521 : vector<8x256xf32>
    %523 = math.exp %522 : vector<8x256xf32>
    %cst_165 = arith.constant 1.000000e+00 : f32
    %524 = vector.broadcast %cst_165 : f32 to vector<8x256xf32>
    %525 = arith.addf %524, %523 : vector<8x256xf32>
    %526 = arith.divf %524, %525 : vector<8x256xf32>
    %527 = vector.extract_strided_slice %514 {offsets = [16, 0], sizes = [8, 256], strides = [1, 1]} : vector<32x256xf32> to vector<8x256xf32>
    %528 = math.tanh %527 : vector<8x256xf32>
    %529 = vector.extract_strided_slice %514 {offsets = [24, 0], sizes = [8, 256], strides = [1, 1]} : vector<32x256xf32> to vector<8x256xf32>
    %530 = arith.negf %529 : vector<8x256xf32>
    %531 = math.exp %530 : vector<8x256xf32>
    %cst_166 = arith.constant 1.000000e+00 : f32
    %532 = vector.broadcast %cst_166 : f32 to vector<8x256xf32>
    %533 = arith.addf %532, %531 : vector<8x256xf32>
    %534 = arith.divf %532, %533 : vector<8x256xf32>
    %535 = arith.mulf %526, %414 : vector<8x256xf32>
    %536 = arith.mulf %520, %528 : vector<8x256xf32>
    %537 = arith.addf %535, %536 : vector<8x256xf32>
    %538 = math.tanh %537 : vector<8x256xf32>
    %539 = arith.mulf %534, %538 : vector<8x256xf32>
    %540 = tpu.concatenate %539, %472 in 0 : vector<8x256xf32>, vector<8x256xf32> -> vector<16x256xf32>
    %c17_i32_167 = arith.constant 17 : i32
    %541 = tpu.dynamic_rotate %540 by %c17_i32_167 dim 1 : vector<16x256xf32>, i32 -> vector<16x256xf32>
    %542 = vector.broadcast %1 : vector<1x256xf32> to vector<16x256xf32>
    %543 = arith.mulf %541, %542 : vector<16x256xf32>
    %c16_i32_168 = arith.constant 16 : i32
    %544 = tpu.dynamic_rotate %540 by %c16_i32_168 dim 1 : vector<16x256xf32>, i32 -> vector<16x256xf32>
    %545 = vector.broadcast %2 : vector<1x256xf32> to vector<16x256xf32>
    %546 = arith.mulf %544, %545 : vector<16x256xf32>
    %c15_i32_169 = arith.constant 15 : i32
    %547 = tpu.dynamic_rotate %540 by %c15_i32_169 dim 1 : vector<16x256xf32>, i32 -> vector<16x256xf32>
    %548 = vector.broadcast %3 : vector<1x256xf32> to vector<16x256xf32>
    %549 = arith.mulf %547, %548 : vector<16x256xf32>
    %c1_i32_170 = arith.constant 1 : i32
    %550 = tpu.dynamic_rotate %540 by %c1_i32_170 dim 1 : vector<16x256xf32>, i32 -> vector<16x256xf32>
    %551 = vector.broadcast %4 : vector<1x256xf32> to vector<16x256xf32>
    %552 = arith.mulf %550, %551 : vector<16x256xf32>
    %c255_i32_171 = arith.constant 255 : i32
    %553 = tpu.dynamic_rotate %540 by %c255_i32_171 dim 1 : vector<16x256xf32>, i32 -> vector<16x256xf32>
    %554 = vector.broadcast %5 : vector<1x256xf32> to vector<16x256xf32>
    %555 = arith.mulf %553, %554 : vector<16x256xf32>
    %c241_i32_172 = arith.constant 241 : i32
    %556 = tpu.dynamic_rotate %540 by %c241_i32_172 dim 1 : vector<16x256xf32>, i32 -> vector<16x256xf32>
    %557 = vector.broadcast %6 : vector<1x256xf32> to vector<16x256xf32>
    %558 = arith.mulf %556, %557 : vector<16x256xf32>
    %c240_i32_173 = arith.constant 240 : i32
    %559 = tpu.dynamic_rotate %540 by %c240_i32_173 dim 1 : vector<16x256xf32>, i32 -> vector<16x256xf32>
    %560 = vector.broadcast %7 : vector<1x256xf32> to vector<16x256xf32>
    %561 = arith.mulf %559, %560 : vector<16x256xf32>
    %c239_i32_174 = arith.constant 239 : i32
    %562 = tpu.dynamic_rotate %540 by %c239_i32_174 dim 1 : vector<16x256xf32>, i32 -> vector<16x256xf32>
    %563 = vector.broadcast %8 : vector<1x256xf32> to vector<16x256xf32>
    %564 = arith.mulf %562, %563 : vector<16x256xf32>
    %565 = tpu.concatenate %543, %546, %549, %552, %540, %555, %558, %561, %564 in 0 : vector<16x256xf32>, vector<16x256xf32>, vector<16x256xf32>, vector<16x256xf32>, vector<16x256xf32>, vector<16x256xf32>, vector<16x256xf32>, vector<16x256xf32>, vector<16x256xf32> -> vector<144x256xf32>
    %c0_175 = arith.constant 0 : index
    %c0_176 = arith.constant 0 : index
    %566 = vector.load %arg5[%c0_175, %c0_176] : memref<32x144xf32, #tpu.memory_space<vmem>>, vector<32x144xf32>
    %cst_177 = arith.constant dense<0.000000e+00> : vector<32x256xf32>
    %567 = tpu.matmul %566, %565, %cst_177 {dimension_numbers = #tpu.dot_dimension_numbers<[1], [0], [0], [1], [0, 0, 1, 1], [], []>} : vector<32x144xf32>, vector<144x256xf32>, vector<32x256xf32> -> vector<32x256xf32>
    %c0_178 = arith.constant 0 : index
    %c0_179 = arith.constant 0 : index
    %568 = vector.load %arg6[%c0_178, %c0_179] : memref<32x1xf32, #tpu.memory_space<vmem>>, vector<32x1xf32>
    %569 = vector.broadcast %568 : vector<32x1xf32> to vector<32x256xf32>
    %570 = arith.addf %567, %569 : vector<32x256xf32>
    %571 = vector.extract_strided_slice %570 {offsets = [0, 0], sizes = [8, 256], strides = [1, 1]} : vector<32x256xf32> to vector<8x256xf32>
    %572 = arith.negf %571 : vector<8x256xf32>
    %573 = math.exp %572 : vector<8x256xf32>
    %cst_180 = arith.constant 1.000000e+00 : f32
    %574 = vector.broadcast %cst_180 : f32 to vector<8x256xf32>
    %575 = arith.addf %574, %573 : vector<8x256xf32>
    %576 = arith.divf %574, %575 : vector<8x256xf32>
    %577 = vector.extract_strided_slice %570 {offsets = [8, 0], sizes = [8, 256], strides = [1, 1]} : vector<32x256xf32> to vector<8x256xf32>
    %578 = arith.negf %577 : vector<8x256xf32>
    %579 = math.exp %578 : vector<8x256xf32>
    %cst_181 = arith.constant 1.000000e+00 : f32
    %580 = vector.broadcast %cst_181 : f32 to vector<8x256xf32>
    %581 = arith.addf %580, %579 : vector<8x256xf32>
    %582 = arith.divf %580, %581 : vector<8x256xf32>
    %583 = vector.extract_strided_slice %570 {offsets = [16, 0], sizes = [8, 256], strides = [1, 1]} : vector<32x256xf32> to vector<8x256xf32>
    %584 = math.tanh %583 : vector<8x256xf32>
    %585 = vector.extract_strided_slice %570 {offsets = [24, 0], sizes = [8, 256], strides = [1, 1]} : vector<32x256xf32> to vector<8x256xf32>
    %586 = arith.negf %585 : vector<8x256xf32>
    %587 = math.exp %586 : vector<8x256xf32>
    %cst_182 = arith.constant 1.000000e+00 : f32
    %588 = vector.broadcast %cst_182 : f32 to vector<8x256xf32>
    %589 = arith.addf %588, %587 : vector<8x256xf32>
    %590 = arith.divf %588, %589 : vector<8x256xf32>
    %591 = arith.mulf %582, %470 : vector<8x256xf32>
    %592 = arith.mulf %576, %584 : vector<8x256xf32>
    %593 = arith.addf %591, %592 : vector<8x256xf32>
    %594 = math.tanh %593 : vector<8x256xf32>
    %595 = arith.mulf %590, %594 : vector<8x256xf32>
    %596 = tpu.concatenate %242, %357, %472, %595 in 0 : vector<8x256xf32>, vector<8x256xf32>, vector<8x256xf32>, vector<8x256xf32> -> vector<32x256xf32>
    %c0_183 = arith.constant 0 : index
    %c0_184 = arith.constant 0 : index
    %597 = vector.load %arg7[%c0_183, %c0_184] : memref<4x32xf32, #tpu.memory_space<vmem>>, vector<4x32xf32>
    %cst_185 = arith.constant dense<0.000000e+00> : vector<4x256xf32>
    %598 = tpu.matmul %597, %596, %cst_185 {dimension_numbers = #tpu.dot_dimension_numbers<[1], [0], [0], [1], [0, 0, 1, 1], [], []>} : vector<4x32xf32>, vector<32x256xf32>, vector<4x256xf32> -> vector<4x256xf32>
    %c0_186 = arith.constant 0 : index
    %c0_187 = arith.constant 0 : index
    %599 = vector.load %arg8[%c0_186, %c0_187] : memref<4x1xf32, #tpu.memory_space<vmem>>, vector<4x1xf32>
    %600 = vector.broadcast %599 : vector<4x1xf32> to vector<4x256xf32>
    %601 = arith.addf %598, %600 : vector<4x256xf32>
    %602 = math.tanh %601 : vector<4x256xf32>
    %c0_188 = arith.constant 0 : index
    %c1_189 = arith.constant 1 : index
    %c0_190 = arith.constant 0 : index
    %c0_191 = arith.constant 0 : index
    %603 = vector.load %arg9[%c0_188, %c1_189, %c0_190, %c0_191] : memref<1x2x4x256xf32, #tpu.memory_space<vmem>>, vector<1x1x4x256xf32>
    %604 = vector.shape_cast %603 : vector<1x1x4x256xf32> to vector<4x256xf32>
    %605 = vector.shape_cast %602 : vector<4x256xf32> to vector<1x1x4x256xf32>
    tpu.vector_store %arg9[%c0_188, %c1_189, %c0_190, %c0_191], %605 {strides = array<i32>} : memref<1x2x4x256xf32, #tpu.memory_space<vmem>>, vector<1x1x4x256xf32>,
    %cst_192 = arith.constant 0.000000e+00 : f32
    %606 = vector.broadcast %cst_192 : f32 to vector<4x256xf32>
    %607 = tpu.concatenate %602, %606, %539 in 0 : vector<4x256xf32>, vector<4x256xf32>, vector<8x256xf32> -> vector<16x256xf32>
    %c17_i32_193 = arith.constant 17 : i32
    %608 = tpu.dynamic_rotate %607 by %c17_i32_193 dim 1 : vector<16x256xf32>, i32 -> vector<16x256xf32>
    %609 = vector.broadcast %1 : vector<1x256xf32> to vector<16x256xf32>
    %610 = arith.mulf %608, %609 : vector<16x256xf32>
    %c16_i32_194 = arith.constant 16 : i32
    %611 = tpu.dynamic_rotate %607 by %c16_i32_194 dim 1 : vector<16x256xf32>, i32 -> vector<16x256xf32>
    %612 = vector.broadcast %2 : vector<1x256xf32> to vector<16x256xf32>
    %613 = arith.mulf %611, %612 : vector<16x256xf32>
    %c15_i32_195 = arith.constant 15 : i32
    %614 = tpu.dynamic_rotate %607 by %c15_i32_195 dim 1 : vector<16x256xf32>, i32 -> vector<16x256xf32>
    %615 = vector.broadcast %3 : vector<1x256xf32> to vector<16x256xf32>
    %616 = arith.mulf %614, %615 : vector<16x256xf32>
    %c1_i32_196 = arith.constant 1 : i32
    %617 = tpu.dynamic_rotate %607 by %c1_i32_196 dim 1 : vector<16x256xf32>, i32 -> vector<16x256xf32>
    %618 = vector.broadcast %4 : vector<1x256xf32> to vector<16x256xf32>
    %619 = arith.mulf %617, %618 : vector<16x256xf32>
    %c255_i32_197 = arith.constant 255 : i32
    %620 = tpu.dynamic_rotate %607 by %c255_i32_197 dim 1 : vector<16x256xf32>, i32 -> vector<16x256xf32>
    %621 = vector.broadcast %5 : vector<1x256xf32> to vector<16x256xf32>
    %622 = arith.mulf %620, %621 : vector<16x256xf32>
    %c241_i32_198 = arith.constant 241 : i32
    %623 = tpu.dynamic_rotate %607 by %c241_i32_198 dim 1 : vector<16x256xf32>, i32 -> vector<16x256xf32>
    %624 = vector.broadcast %6 : vector<1x256xf32> to vector<16x256xf32>
    %625 = arith.mulf %623, %624 : vector<16x256xf32>
    %c240_i32_199 = arith.constant 240 : i32
    %626 = tpu.dynamic_rotate %607 by %c240_i32_199 dim 1 : vector<16x256xf32>, i32 -> vector<16x256xf32>
    %627 = vector.broadcast %7 : vector<1x256xf32> to vector<16x256xf32>
    %628 = arith.mulf %626, %627 : vector<16x256xf32>
    %c239_i32_200 = arith.constant 239 : i32
    %629 = tpu.dynamic_rotate %607 by %c239_i32_200 dim 1 : vector<16x256xf32>, i32 -> vector<16x256xf32>
    %630 = vector.broadcast %8 : vector<1x256xf32> to vector<16x256xf32>
    %631 = arith.mulf %629, %630 : vector<16x256xf32>
    %632 = tpu.concatenate %610, %613, %616, %619, %607, %622, %625, %628, %631 in 0 : vector<16x256xf32>, vector<16x256xf32>, vector<16x256xf32>, vector<16x256xf32>, vector<16x256xf32>, vector<16x256xf32>, vector<16x256xf32>, vector<16x256xf32>, vector<16x256xf32> -> vector<144x256xf32>
    %c0_201 = arith.constant 0 : index
    %c0_202 = arith.constant 0 : index
    %633 = vector.load %arg3[%c0_201, %c0_202] : memref<32x144xf32, #tpu.memory_space<vmem>>, vector<32x144xf32>
    %cst_203 = arith.constant dense<0.000000e+00> : vector<32x256xf32>
    %634 = tpu.matmul %633, %632, %cst_203 {dimension_numbers = #tpu.dot_dimension_numbers<[1], [0], [0], [1], [0, 0, 1, 1], [], []>} : vector<32x144xf32>, vector<144x256xf32>, vector<32x256xf32> -> vector<32x256xf32>
    %c0_204 = arith.constant 0 : index
    %c0_205 = arith.constant 0 : index
    %635 = vector.load %arg4[%c0_204, %c0_205] : memref<32x1xf32, #tpu.memory_space<vmem>>, vector<32x1xf32>
    %636 = vector.broadcast %635 : vector<32x1xf32> to vector<32x256xf32>
    %637 = arith.addf %634, %636 : vector<32x256xf32>
    %638 = vector.extract_strided_slice %637 {offsets = [0, 0], sizes = [8, 256], strides = [1, 1]} : vector<32x256xf32> to vector<8x256xf32>
    %639 = arith.negf %638 : vector<8x256xf32>
    %640 = math.exp %639 : vector<8x256xf32>
    %cst_206 = arith.constant 1.000000e+00 : f32
    %641 = vector.broadcast %cst_206 : f32 to vector<8x256xf32>
    %642 = arith.addf %641, %640 : vector<8x256xf32>
    %643 = arith.divf %641, %642 : vector<8x256xf32>
    %644 = vector.extract_strided_slice %637 {offsets = [8, 0], sizes = [8, 256], strides = [1, 1]} : vector<32x256xf32> to vector<8x256xf32>
    %645 = arith.negf %644 : vector<8x256xf32>
    %646 = math.exp %645 : vector<8x256xf32>
    %cst_207 = arith.constant 1.000000e+00 : f32
    %647 = vector.broadcast %cst_207 : f32 to vector<8x256xf32>
    %648 = arith.addf %647, %646 : vector<8x256xf32>
    %649 = arith.divf %647, %648 : vector<8x256xf32>
    %650 = vector.extract_strided_slice %637 {offsets = [16, 0], sizes = [8, 256], strides = [1, 1]} : vector<32x256xf32> to vector<8x256xf32>
    %651 = math.tanh %650 : vector<8x256xf32>
    %652 = vector.extract_strided_slice %637 {offsets = [24, 0], sizes = [8, 256], strides = [1, 1]} : vector<32x256xf32> to vector<8x256xf32>
    %653 = arith.negf %652 : vector<8x256xf32>
    %654 = math.exp %653 : vector<8x256xf32>
    %cst_208 = arith.constant 1.000000e+00 : f32
    %655 = vector.broadcast %cst_208 : f32 to vector<8x256xf32>
    %656 = arith.addf %655, %654 : vector<8x256xf32>
    %657 = arith.divf %655, %656 : vector<8x256xf32>
    %658 = arith.mulf %649, %537 : vector<8x256xf32>
    %659 = arith.mulf %643, %651 : vector<8x256xf32>
    %660 = arith.addf %658, %659 : vector<8x256xf32>
    %661 = math.tanh %660 : vector<8x256xf32>
    %662 = arith.mulf %657, %661 : vector<8x256xf32>
    %663 = tpu.concatenate %662, %595 in 0 : vector<8x256xf32>, vector<8x256xf32> -> vector<16x256xf32>
    %c17_i32_209 = arith.constant 17 : i32
    %664 = tpu.dynamic_rotate %663 by %c17_i32_209 dim 1 : vector<16x256xf32>, i32 -> vector<16x256xf32>
    %665 = vector.broadcast %1 : vector<1x256xf32> to vector<16x256xf32>
    %666 = arith.mulf %664, %665 : vector<16x256xf32>
    %c16_i32_210 = arith.constant 16 : i32
    %667 = tpu.dynamic_rotate %663 by %c16_i32_210 dim 1 : vector<16x256xf32>, i32 -> vector<16x256xf32>
    %668 = vector.broadcast %2 : vector<1x256xf32> to vector<16x256xf32>
    %669 = arith.mulf %667, %668 : vector<16x256xf32>
    %c15_i32_211 = arith.constant 15 : i32
    %670 = tpu.dynamic_rotate %663 by %c15_i32_211 dim 1 : vector<16x256xf32>, i32 -> vector<16x256xf32>
    %671 = vector.broadcast %3 : vector<1x256xf32> to vector<16x256xf32>
    %672 = arith.mulf %670, %671 : vector<16x256xf32>
    %c1_i32_212 = arith.constant 1 : i32
    %673 = tpu.dynamic_rotate %663 by %c1_i32_212 dim 1 : vector<16x256xf32>, i32 -> vector<16x256xf32>
    %674 = vector.broadcast %4 : vector<1x256xf32> to vector<16x256xf32>
    %675 = arith.mulf %673, %674 : vector<16x256xf32>
    %c255_i32_213 = arith.constant 255 : i32
    %676 = tpu.dynamic_rotate %663 by %c255_i32_213 dim 1 : vector<16x256xf32>, i32 -> vector<16x256xf32>
    %677 = vector.broadcast %5 : vector<1x256xf32> to vector<16x256xf32>
    %678 = arith.mulf %676, %677 : vector<16x256xf32>
    %c241_i32_214 = arith.constant 241 : i32
    %679 = tpu.dynamic_rotate %663 by %c241_i32_214 dim 1 : vector<16x256xf32>, i32 -> vector<16x256xf32>
    %680 = vector.broadcast %6 : vector<1x256xf32> to vector<16x256xf32>
    %681 = arith.mulf %679, %680 : vector<16x256xf32>
    %c240_i32_215 = arith.constant 240 : i32
    %682 = tpu.dynamic_rotate %663 by %c240_i32_215 dim 1 : vector<16x256xf32>, i32 -> vector<16x256xf32>
    %683 = vector.broadcast %7 : vector<1x256xf32> to vector<16x256xf32>
    %684 = arith.mulf %682, %683 : vector<16x256xf32>
    %c239_i32_216 = arith.constant 239 : i32
    %685 = tpu.dynamic_rotate %663 by %c239_i32_216 dim 1 : vector<16x256xf32>, i32 -> vector<16x256xf32>
    %686 = vector.broadcast %8 : vector<1x256xf32> to vector<16x256xf32>
    %687 = arith.mulf %685, %686 : vector<16x256xf32>
    %688 = tpu.concatenate %666, %669, %672, %675, %663, %678, %681, %684, %687 in 0 : vector<16x256xf32>, vector<16x256xf32>, vector<16x256xf32>, vector<16x256xf32>, vector<16x256xf32>, vector<16x256xf32>, vector<16x256xf32>, vector<16x256xf32>, vector<16x256xf32> -> vector<144x256xf32>
    %c0_217 = arith.constant 0 : index
    %c0_218 = arith.constant 0 : index
    %689 = vector.load %arg5[%c0_217, %c0_218] : memref<32x144xf32, #tpu.memory_space<vmem>>, vector<32x144xf32>
    %cst_219 = arith.constant dense<0.000000e+00> : vector<32x256xf32>
    %690 = tpu.matmul %689, %688, %cst_219 {dimension_numbers = #tpu.dot_dimension_numbers<[1], [0], [0], [1], [0, 0, 1, 1], [], []>} : vector<32x144xf32>, vector<144x256xf32>, vector<32x256xf32> -> vector<32x256xf32>
    %c0_220 = arith.constant 0 : index
    %c0_221 = arith.constant 0 : index
    %691 = vector.load %arg6[%c0_220, %c0_221] : memref<32x1xf32, #tpu.memory_space<vmem>>, vector<32x1xf32>
    %692 = vector.broadcast %691 : vector<32x1xf32> to vector<32x256xf32>
    %693 = arith.addf %690, %692 : vector<32x256xf32>
    %694 = vector.extract_strided_slice %693 {offsets = [0, 0], sizes = [8, 256], strides = [1, 1]} : vector<32x256xf32> to vector<8x256xf32>
    %695 = arith.negf %694 : vector<8x256xf32>
    %696 = math.exp %695 : vector<8x256xf32>
    %cst_222 = arith.constant 1.000000e+00 : f32
    %697 = vector.broadcast %cst_222 : f32 to vector<8x256xf32>
    %698 = arith.addf %697, %696 : vector<8x256xf32>
    %699 = arith.divf %697, %698 : vector<8x256xf32>
    %700 = vector.extract_strided_slice %693 {offsets = [8, 0], sizes = [8, 256], strides = [1, 1]} : vector<32x256xf32> to vector<8x256xf32>
    %701 = arith.negf %700 : vector<8x256xf32>
    %702 = math.exp %701 : vector<8x256xf32>
    %cst_223 = arith.constant 1.000000e+00 : f32
    %703 = vector.broadcast %cst_223 : f32 to vector<8x256xf32>
    %704 = arith.addf %703, %702 : vector<8x256xf32>
    %705 = arith.divf %703, %704 : vector<8x256xf32>
    %706 = vector.extract_strided_slice %693 {offsets = [16, 0], sizes = [8, 256], strides = [1, 1]} : vector<32x256xf32> to vector<8x256xf32>
    %707 = math.tanh %706 : vector<8x256xf32>
    %708 = vector.extract_strided_slice %693 {offsets = [24, 0], sizes = [8, 256], strides = [1, 1]} : vector<32x256xf32> to vector<8x256xf32>
    %709 = arith.negf %708 : vector<8x256xf32>
    %710 = math.exp %709 : vector<8x256xf32>
    %cst_224 = arith.constant 1.000000e+00 : f32
    %711 = vector.broadcast %cst_224 : f32 to vector<8x256xf32>
    %712 = arith.addf %711, %710 : vector<8x256xf32>
    %713 = arith.divf %711, %712 : vector<8x256xf32>
    %714 = arith.mulf %705, %593 : vector<8x256xf32>
    %715 = arith.mulf %699, %707 : vector<8x256xf32>
    %716 = arith.addf %714, %715 : vector<8x256xf32>
    %717 = math.tanh %716 : vector<8x256xf32>
    %718 = arith.mulf %713, %717 : vector<8x256xf32>
    %c0_225 = arith.constant 0 : index
    %c0_226 = arith.constant 0 : index
    %c0_227 = arith.constant 0 : index
    %c0_228 = arith.constant 0 : index
    %719 = vector.load %arg10[%c0_225, %c0_226, %c0_227, %c0_228] : memref<1x4x8x256xf32, #tpu.memory_space<vmem>>, vector<1x1x8x256xf32>
    %720 = vector.shape_cast %719 : vector<1x1x8x256xf32> to vector<8x256xf32>
    %721 = vector.shape_cast %357 : vector<8x256xf32> to vector<1x1x8x256xf32>
    tpu.vector_store %arg10[%c0_225, %c0_226, %c0_227, %c0_228], %721 {strides = array<i32>} : memref<1x4x8x256xf32, #tpu.memory_space<vmem>>, vector<1x1x8x256xf32>,
    %c0_229 = arith.constant 0 : index
    %c1_230 = arith.constant 1 : index
    %c0_231 = arith.constant 0 : index
    %c0_232 = arith.constant 0 : index
    %722 = vector.load %arg10[%c0_229, %c1_230, %c0_231, %c0_232] : memref<1x4x8x256xf32, #tpu.memory_space<vmem>>, vector<1x1x8x256xf32>
    %723 = vector.shape_cast %722 : vector<1x1x8x256xf32> to vector<8x256xf32>
    %724 = vector.shape_cast %472 : vector<8x256xf32> to vector<1x1x8x256xf32>
    tpu.vector_store %arg10[%c0_229, %c1_230, %c0_231, %c0_232], %724 {strides = array<i32>} : memref<1x4x8x256xf32, #tpu.memory_space<vmem>>, vector<1x1x8x256xf32>,
    %c0_233 = arith.constant 0 : index
    %c2_234 = arith.constant 2 : index
    %c0_235 = arith.constant 0 : index
    %c0_236 = arith.constant 0 : index
    %725 = vector.load %arg10[%c0_233, %c2_234, %c0_235, %c0_236] : memref<1x4x8x256xf32, #tpu.memory_space<vmem>>, vector<1x1x8x256xf32>
    %726 = vector.shape_cast %725 : vector<1x1x8x256xf32> to vector<8x256xf32>
    %727 = vector.shape_cast %595 : vector<8x256xf32> to vector<1x1x8x256xf32>
    tpu.vector_store %arg10[%c0_233, %c2_234, %c0_235, %c0_236], %727 {strides = array<i32>} : memref<1x4x8x256xf32, #tpu.memory_space<vmem>>, vector<1x1x8x256xf32>,
    %c0_237 = arith.constant 0 : index
    %c3_238 = arith.constant 3 : index
    %c0_239 = arith.constant 0 : index
    %c0_240 = arith.constant 0 : index
    %728 = vector.load %arg10[%c0_237, %c3_238, %c0_239, %c0_240] : memref<1x4x8x256xf32, #tpu.memory_space<vmem>>, vector<1x1x8x256xf32>
    %729 = vector.shape_cast %728 : vector<1x1x8x256xf32> to vector<8x256xf32>
    %730 = vector.shape_cast %718 : vector<8x256xf32> to vector<1x1x8x256xf32>
    tpu.vector_store %arg10[%c0_237, %c3_238, %c0_239, %c0_240], %730 {strides = array<i32>} : memref<1x4x8x256xf32, #tpu.memory_space<vmem>>, vector<1x1x8x256xf32>,
    return
  }
  func.func @transform_0(%arg0: i32) -> (i32, i32, i32, i32) {
    %c0_i32 = arith.constant 0 : i32
    %c0_i32_0 = arith.constant 0 : i32
    %c0_i32_1 = arith.constant 0 : i32
    %c0_i32_2 = arith.constant 0 : i32
    return %arg0, %c0_i32, %c0_i32_0, %c0_i32_1 : i32, i32, i32, i32
  }
  func.func @transform_1(%arg0: i32) -> (i32, i32) {
    %c0_i32 = arith.constant 0 : i32
    %c0_i32_0 = arith.constant 0 : i32
    %c0_i32_1 = arith.constant 0 : i32
    return %c0_i32, %c0_i32_0 : i32, i32
  }
  func.func @transform_2(%arg0: i32) -> (i32, i32) {
    %c0_i32 = arith.constant 0 : i32
    %c0_i32_0 = arith.constant 0 : i32
    %c0_i32_1 = arith.constant 0 : i32
    return %c0_i32, %c0_i32_0 : i32, i32
  }
  func.func @transform_3(%arg0: i32) -> (i32, i32) {
    %c0_i32 = arith.constant 0 : i32
    %c0_i32_0 = arith.constant 0 : i32
    %c0_i32_1 = arith.constant 0 : i32
    return %c0_i32, %c0_i32_0 : i32, i32
  }
  func.func @transform_4(%arg0: i32) -> (i32, i32) {
    %c0_i32 = arith.constant 0 : i32
    %c0_i32_0 = arith.constant 0 : i32
    %c0_i32_1 = arith.constant 0 : i32
    return %c0_i32, %c0_i32_0 : i32, i32
  }
  func.func @transform_5(%arg0: i32) -> (i32, i32) {
    %c0_i32 = arith.constant 0 : i32
    %c0_i32_0 = arith.constant 0 : i32
    %c0_i32_1 = arith.constant 0 : i32
    return %c0_i32, %c0_i32_0 : i32, i32
  }
  func.func @transform_6(%arg0: i32) -> (i32, i32) {
    %c0_i32 = arith.constant 0 : i32
    %c0_i32_0 = arith.constant 0 : i32
    %c0_i32_1 = arith.constant 0 : i32
    return %c0_i32, %c0_i32_0 : i32, i32
  }
  func.func @transform_7(%arg0: i32) -> (i32, i32) {
    %c0_i32 = arith.constant 0 : i32
    %c0_i32_0 = arith.constant 0 : i32
    %c0_i32_1 = arith.constant 0 : i32
    return %c0_i32, %c0_i32_0 : i32, i32
  }
  func.func @transform_8(%arg0: i32) -> (i32, i32, i32, i32) {
    %c0_i32 = arith.constant 0 : i32
    %c0_i32_0 = arith.constant 0 : i32
    %c0_i32_1 = arith.constant 0 : i32
    %c0_i32_2 = arith.constant 0 : i32
    return %arg0, %c0_i32, %c0_i32_0, %c0_i32_1 : i32, i32, i32, i32
  }
  func.func @transform_9(%arg0: i32) -> (i32, i32, i32, i32) {
    %c0_i32 = arith.constant 0 : i32
    %c0_i32_0 = arith.constant 0 : i32
    %c0_i32_1 = arith.constant 0 : i32
    %c0_i32_2 = arith.constant 0 : i32
    return %arg0, %c0_i32, %c0_i32_0, %c0_i32_1 : i32, i32, i32, i32
  }
}

</mosaic_0001>

<llo_original>
// kernel: tpu_custom_call.1
$region0: #{tpu_custom_call.1}
  #allocation0 [shape = 'u32[]', space=smem, size = 0x4, offset = 0x4, fixed_abs, tag = 'smem constant byte address 0x4 - core index']
  #allocation1 [shape = 'u32[144,128]{1,0:T(1,128)}', space=vmem, size = 0x12000, scoped, tag = 'internal scratch']
  %s0 = inlined_call_operand.vmem [shape: f32[2,4,4,256], index: 0, kind: input, shape index: {}]
  %s1 = inlined_call_operand.hbm [shape: f32[9,256], index: 1, kind: input, shape index: {}]
  %s2 = inlined_call_operand.hbm [shape: f32[32,144], index: 2, kind: input, shape index: {}]
  %s3 = inlined_call_operand.vmem [shape: f32[32,1], index: 3, kind: input, shape index: {}]
  %s4 = inlined_call_operand.hbm [shape: f32[32,144], index: 4, kind: input, shape index: {}]
  %s5 = inlined_call_operand.vmem [shape: f32[32,1], index: 5, kind: input, shape index: {}]
  %s6 = inlined_call_operand.vmem [shape: f32[4,32], index: 6, kind: input, shape index: {}]
  %s7 = inlined_call_operand.vmem [shape: f32[4,1], index: 7, kind: input, shape index: {}]
  %s8 = inlined_call_operand.hbm [shape: f32[2,2,4,256], index: 8, kind: output, shape index: {0}]
  %s9 = inlined_call_operand.hbm [shape: f32[2,4,8,256], index: 9, kind: output, shape index: {1}]
  %10 = xla_tuple %s8, %s9
  %s11 = sld [smem:[#allocation0]]
  $region85: #{tpu_custom_call.1} parent=0
    _
  %s13 = ssub.s32 1, %s11
  %s14 = scalar_select 0, %s13, %s11
  $region1: #{tpu_custom_call.1} parent=0
    #allocation2 [shape = 'u8[16384]{0}', space=vmem, size = 0x4000, scoped, tag = 'input window, operand 1, single buffered']
    #allocation3 [shape = 's32[2]{0}', space=sflag, size = 0x8, scoped, tag = 'scoped memory for tpu_custom_call.1']
    #allocation4 [shape = 's32[2]{0}', space=sflag, size = 0x8, scoped, tag = 'scoped memory for tpu_custom_call.1']
    #allocation5 [shape = 'u8[32768]{0}', space=vmem, size = 0x8000, scoped, tag = 'input window, operand 2, single buffered']
    #allocation6 [shape = 's32[1]{0}', space=sflag, size = 0x4, scoped, tag = 'scoped memory for tpu_custom_call.1']
    #allocation7 [shape = 'u8[32768]{0}', space=vmem, size = 0x8000, scoped, tag = 'input window, operand 4, single buffered']
    #allocation8 [shape = 'u8[16384]{0}', space=vmem, size = 0x4000, scoped, tag = 'output window, operand 0']
    #allocation9 [shape = 'u8[65536]{0}', space=vmem, size = 0x10000, scoped, tag = 'output window, operand 1']
    #allocation10 [shape = 's32[2]{0}', space=sflag, size = 0x8, scoped, tag = 'scoped memory for tpu_custom_call.1']
    %15 = vsyncpa [#allocation3], 0
    %16 = vsyncpa [#allocation6], 0
    %17 = vsyncpa [#allocation4], 0
    %s18 = scalar_lea.sflag [#allocation4], 1
    %19 = vsyncpa %s18, 0
    %20 = vsyncpa [#allocation10], 0
    %s21 = scalar_lea.sflag [#allocation10], 1
    %22 = vsyncpa %s21, 0
    loop: start=0, step=1, limit=4
    $region2: #{tpu_custom_call.1} parent=1 // loop_pre_header
      _
    $region3: #{tpu_custom_call.1} parent=1 // loop_header
      %s24 = sphi 0, %s28
      %p25 = scmp.ge.s32.totalorder %s24, 4
      %s34 = sphi 0, %s36
      %s37 = sphi 0, %s34
      %s38 = sphi 0, %s37
      %s54 = sphi 0, %s38
      %s58 = sphi 0, %s58
      %s60 = sphi 0, %s58
      %s61 = sphi 0, %s60
      %s75 = sphi 0, %s61
      %s79 = sphi 0, %s79
      %s81 = sphi 0, %s79
      %s82 = sphi 0, %s81
      %s96 = sphi 0, %s82
      %s100 = sphi 0, %s100
      %s102 = sphi 0, %s100
      %s103 = sphi 0, %s102
      %s117 = sphi 0, %s103
      %s121 = sphi 0, %s121
      %s123 = sphi 0, %s121
      %s124 = sphi 0, %s123
      %s138 = sphi 0, %s124
      %s142 = sphi 0, %s142
      %s144 = sphi 0, %s142
      %s145 = sphi 0, %s144
      %s159 = sphi 0, %s145
      %s163 = sphi 0, %s163
      %s165 = sphi 0, %s163
      %s166 = sphi 0, %s165
      %s180 = sphi 0, %s166
      %s184 = sphi 0, %s184
      %s186 = sphi 0, %s184
      %s187 = sphi 0, %s186
      %s201 = sphi 0, %s187
      %s207 = sphi 0, %s209
      %s210 = sphi 0, %s207
      %s211 = sphi 0, %s210
      %s227 = sphi 0, %s211
      %s233 = sphi 0, %s235
      %s236 = sphi 0, %s233
      %s237 = sphi 0, %s236
      %s253 = sphi 0, %s237
    $region4: #{tpu_custom_call.1} parent=1 // loop_header_branch
      %27 = sbr.rel (%p25) target = $region8
    $region5: #{tpu_custom_call.1} parent=1 // loop_body
      %s29 = ssub.s32 %s24, 1
      %s30 = ssub.s32 %s24, 2
      %s31 = sadd.s32 %s24, 1
      %s32 = ssub.s32 %s24, %s31
      %p33 = scmp.eq.s32.totalorder %s32, 0
      %s35 = sadd.s32 %s34, 1
      %s36 = scalar_select %p33, %s34, %s35
      %p39 = pneg %p33
      %p40 = scmp.eq.s32.totalorder %s24, 1
      %p41 = por %p39, %p40
      %p42 = scmp.ne.s32.totalorder %s34, %s37
      %p43 = scmp.eq.s32.totalorder %s24, 0
      %p44 = por %p42, %p43
      %p45 = scmp.ne.s32.totalorder %s34, %s37
      %p46 = scmp.eq.s32.totalorder %s29, 1
      %p47 = por %p45, %p46
      %p48 = scmp.ne.s32.totalorder %s37, %s38
      %p49 = scmp.eq.s32.totalorder %s29, 0
      %p50 = por %p48, %p49
      %p51 = scmp.ne.s32.totalorder %s37, %s38
      %p52 = scmp.eq.s32.totalorder %s30, 1
      %p53 = por %p51, %p52
      %p55 = scmp.ne.s32.totalorder %s38, %s54
      %p56 = scmp.eq.s32.totalorder %s30, 0
      %p57 = por %p55, %p56
      %s59 = sadd.s32 %s58, 1
      %p62 = scmp.eq.s32.totalorder %s24, 1
      %p63 = scmp.ne.s32.totalorder %s58, %s60
      %p64 = scmp.eq.s32.totalorder %s24, 0
      %p65 = por %p63, %p64
      %p66 = scmp.ne.s32.totalorder %s58, %s60
      %p67 = scmp.eq.s32.totalorder %s29, 1
      %p68 = por %p66, %p67
      %p69 = scmp.ne.s32.totalorder %s60, %s61
      %p70 = scmp.eq.s32.totalorder %s29, 0
      %p71 = por %p69, %p70
      %p72 = scmp.ne.s32.totalorder %s60, %s61
      %p73 = scmp.eq.s32.totalorder %s30, 1
      %p74 = por %p72, %p73
      %p76 = scmp.ne.s32.totalorder %s61, %s75
      %p77 = scmp.eq.s32.totalorder %s30, 0
      %p78 = por %p76, %p77
      %s80 = sadd.s32 %s79, 1
      %p83 = scmp.eq.s32.totalorder %s24, 1
      %p84 = scmp.ne.s32.totalorder %s79, %s81
      %p85 = scmp.eq.s32.totalorder %s24, 0
      %p86 = por %p84, %p85
      %p87 = scmp.ne.s32.totalorder %s79, %s81
      %p88 = scmp.eq.s32.totalorder %s29, 1
      %p89 = por %p87, %p88
      %p90 = scmp.ne.s32.totalorder %s81, %s82
      %p91 = scmp.eq.s32.totalorder %s29, 0
      %p92 = por %p90, %p91
      %p93 = scmp.ne.s32.totalorder %s81, %s82
      %p94 = scmp.eq.s32.totalorder %s30, 1
      %p95 = por %p93, %p94
      %p97 = scmp.ne.s32.totalorder %s82, %s96
      %p98 = scmp.eq.s32.totalorder %s30, 0
      %p99 = por %p97, %p98
      %s101 = sadd.s32 %s100, 1
      %p104 = scmp.eq.s32.totalorder %s24, 1
      %p105 = scmp.ne.s32.totalorder %s100, %s102
      %p106 = scmp.eq.s32.totalorder %s24, 0
      %p107 = por %p105, %p106
      %p108 = scmp.ne.s32.totalorder %s100, %s102
      %p109 = scmp.eq.s32.totalorder %s29, 1
      %p110 = por %p108, %p109
      %p111 = scmp.ne.s32.totalorder %s102, %s103
      %p112 = scmp.eq.s32.totalorder %s29, 0
      %p113 = por %p111, %p112
      %p114 = scmp.ne.s32.totalorder %s102, %s103
      %p115 = scmp.eq.s32.totalorder %s30, 1
      %p116 = por %p114, %p115
      %p118 = scmp.ne.s32.totalorder %s103, %s117
      %p119 = scmp.eq.s32.totalorder %s30, 0
      %p120 = por %p118, %p119
      %s122 = sadd.s32 %s121, 1
      %p125 = scmp.eq.s32.totalorder %s24, 1
      %p126 = scmp.ne.s32.totalorder %s121, %s123
      %p127 = scmp.eq.s32.totalorder %s24, 0
      %p128 = por %p126, %p127
      %p129 = scmp.ne.s32.totalorder %s121, %s123
      %p130 = scmp.eq.s32.totalorder %s29, 1
      %p131 = por %p129, %p130
      %p132 = scmp.ne.s32.totalorder %s123, %s124
      %p133 = scmp.eq.s32.totalorder %s29, 0
      %p134 = por %p132, %p133
      %p135 = scmp.ne.s32.totalorder %s123, %s124
      %p136 = scmp.eq.s32.totalorder %s30, 1
      %p137 = por %p135, %p136
      %p139 = scmp.ne.s32.totalorder %s124, %s138
      %p140 = scmp.eq.s32.totalorder %s30, 0
      %p141 = por %p139, %p140
      %s143 = sadd.s32 %s142, 1
      %p146 = scmp.eq.s32.totalorder %s24, 1
      %p147 = scmp.ne.s32.totalorder %s142, %s144
      %p148 = scmp.eq.s32.totalorder %s24, 0
      %p149 = por %p147, %p148
      %p150 = scmp.ne.s32.totalorder %s142, %s144
      %p151 = scmp.eq.s32.totalorder %s29, 1
      %p152 = por %p150, %p151
      %p153 = scmp.ne.s32.totalorder %s144, %s145
      %p154 = scmp.eq.s32.totalorder %s29, 0
      %p155 = por %p153, %p154
      %p156 = scmp.ne.s32.totalorder %s144, %s145
      %p157 = scmp.eq.s32.totalorder %s30, 1
      %p158 = por %p156, %p157
      %p160 = scmp.ne.s32.totalorder %s145, %s159
      %p161 = scmp.eq.s32.totalorder %s30, 0
      %p162 = por %p160, %p161
      %s164 = sadd.s32 %s163, 1
      %p167 = scmp.eq.s32.totalorder %s24, 1
      %p168 = scmp.ne.s32.totalorder %s163, %s165
      %p169 = scmp.eq.s32.totalorder %s24, 0
      %p170 = por %p168, %p169
      %p171 = scmp.ne.s32.totalorder %s163, %s165
      %p172 = scmp.eq.s32.totalorder %s29, 1
      %p173 = por %p171, %p172
      %p174 = scmp.ne.s32.totalorder %s165, %s166
      %p175 = scmp.eq.s32.totalorder %s29, 0
      %p176 = por %p174, %p175
      %p177 = scmp.ne.s32.totalorder %s165, %s166
      %p178 = scmp.eq.s32.totalorder %s30, 1
      %p179 = por %p177, %p178
      %p181 = scmp.ne.s32.totalorder %s166, %s180
      %p182 = scmp.eq.s32.totalorder %s30, 0
      %p183 = por %p181, %p182
      %s185 = sadd.s32 %s184, 1
      %p188 = scmp.eq.s32.totalorder %s24, 1
      %p189 = scmp.ne.s32.totalorder %s184, %s186
      %p190 = scmp.eq.s32.totalorder %s24, 0
      %p191 = por %p189, %p190
      %p192 = scmp.ne.s32.totalorder %s184, %s186
      %p193 = scmp.eq.s32.totalorder %s29, 1
      %p194 = por %p192, %p193
      %p195 = scmp.ne.s32.totalorder %s186, %s187
      %p196 = scmp.eq.s32.totalorder %s29, 0
      %p197 = por %p195, %p196
      %p198 = scmp.ne.s32.totalorder %s186, %s187
      %p199 = scmp.eq.s32.totalorder %s30, 1
      %p200 = por %p198, %p199
      %p202 = scmp.ne.s32.totalorder %s187, %s201
      %p203 = scmp.eq.s32.totalorder %s30, 0
      %p204 = por %p202, %p203
      %s205 = ssub.s32 %s24, %s31
      %p206 = scmp.eq.s32.totalorder %s205, 0
      %s208 = sadd.s32 %s207, 1
      %s209 = scalar_select %p206, %s207, %s208
      %p212 = pneg %p206
      %p213 = scmp.eq.s32.totalorder %s24, 1
      %p214 = por %p212, %p213
      %p215 = scmp.ne.s32.totalorder %s207, %s210
      %p216 = scmp.eq.s32.totalorder %s24, 0
      %p217 = por %p215, %p216
      %p218 = scmp.ne.s32.totalorder %s207, %s210
      %p219 = scmp.eq.s32.totalorder %s29, 1
      %p220 = por %p218, %p219
      %p221 = scmp.ne.s32.totalorder %s210, %s211
      %p222 = scmp.eq.s32.totalorder %s29, 0
      %p223 = por %p221, %p222
      %p224 = scmp.ne.s32.totalorder %s210, %s211
      %p225 = scmp.eq.s32.totalorder %s30, 1
      %p226 = por %p224, %p225
      %p228 = scmp.ne.s32.totalorder %s211, %s227
      %p229 = scmp.eq.s32.totalorder %s30, 0
      %p230 = por %p228, %p229
      %s231 = ssub.s32 %s24, %s31
      %p232 = scmp.eq.s32.totalorder %s231, 0
      %s234 = sadd.s32 %s233, 1
      %s235 = scalar_select %p232, %s233, %s234
      %p238 = pneg %p232
      %p239 = scmp.eq.s32.totalorder %s24, 1
      %p240 = por %p238, %p239
      %p241 = scmp.ne.s32.totalorder %s233, %s236
      %p242 = scmp.eq.s32.totalorder %s24, 0
      %p243 = por %p241, %p242
      %p244 = scmp.ne.s32.totalorder %s233, %s236
      %p245 = scmp.eq.s32.totalorder %s29, 1
      %p246 = por %p244, %p245
      %p247 = scmp.ne.s32.totalorder %s236, %s237
      %p248 = scmp.eq.s32.totalorder %s29, 0
      %p249 = por %p247, %p248
      %p250 = scmp.ne.s32.totalorder %s236, %s237
      %p251 = scmp.eq.s32.totalorder %s30, 1
      %p252 = por %p250, %p251
      %p254 = scmp.ne.s32.totalorder %s237, %s253
      %p255 = scmp.eq.s32.totalorder %s30, 0
      %p256 = por %p254, %p255
      %p257 = scmp.le.s32.totalorder 1, %s24
      %p258 = scmp.lt.s32.totalorder %s24, 3
      %p259 = pnand %p257, %p258
      %p260 = pneg %p259
      // Predicated region
      $region9: #{tpu_custom_call.1} parent=5 // pred_check
        _
      $region10: #{tpu_custom_call.1} parent=5 // pred_check_branch
        %262 = sbr.rel (%p259) target = $region12
      $region11: #{tpu_custom_call.1} parent=5 // pred_region
        %s263 = ssub.s32 %s24, 1
        // Predicated region
        $region13: #{tpu_custom_call.1} parent=11 // pred_check
          %p264 = pneg %p71
        $region14: #{tpu_custom_call.1} parent=11 // pred_check_branch
          %266 = sbr.rel (%p264) target = $region16
        $region15: #{tpu_custom_call.1} parent=11 // pred_region
          %s268 = ssub.s32 512, 512
          %269 = vsyncadd [#allocation3], %s268
          %s270 = sshll.u32 [#allocation2], 4
          %s271 = int_to_ptr.vmem [resolvable:$true] %s270
          %276 = dma.hbm_to_vmem [thread:$0]  %s1, 512, %s271, [#allocation3], 256, 256, 16
        $region16: #{tpu_custom_call.1} parent=11 // pred_fallthru
          _
        // Predicated region
        $region17: #{tpu_custom_call.1} parent=11 // pred_check
          %p277 = pneg %p92
        $region18: #{tpu_custom_call.1} parent=11 // pred_check_branch
          %279 = sbr.rel (%p277) target = $region20
        $region19: #{tpu_custom_call.1} parent=11 // pred_region
          %s281 = ssub.s32 1024, 1024
          %282 = vsyncadd [#allocation6], %s281
          %s283 = sshll.u32 [#allocation5], 4
          %s284 = int_to_ptr.vmem [resolvable:$true] %s283
          %289 = dma.hbm_to_vmem [thread:$0]  %s2, 1024, %s284, [#allocation6], 256, 256, 16
        $region20: #{tpu_custom_call.1} parent=11 // pred_fallthru
          _
        // Predicated region
        $region21: #{tpu_custom_call.1} parent=11 // pred_check
          %p290 = pneg %p113
        $region22: #{tpu_custom_call.1} parent=11 // pred_check_branch
          %292 = sbr.rel (%p290) target = $region24
        $region23: #{tpu_custom_call.1} parent=11 // pred_region
          _
        $region24: #{tpu_custom_call.1} parent=11 // pred_fallthru
          _
        // Predicated region
        $region25: #{tpu_custom_call.1} parent=11 // pred_check
          %p293 = pneg %p134
        $region26: #{tpu_custom_call.1} parent=11 // pred_check_branch
          %295 = sbr.rel (%p293) target = $region28
        $region27: #{tpu_custom_call.1} parent=11 // pred_region
          %s297 = ssub.s32 1024, 1024
          %298 = vsyncadd [#allocation6], %s297
          %s299 = sshll.u32 [#allocation7], 4
          %s300 = int_to_ptr.vmem [resolvable:$true] %s299
          %305 = dma.hbm_to_vmem [thread:$0]  %s4, 1024, %s300, [#allocation6], 256, 256, 16
        $region28: #{tpu_custom_call.1} parent=11 // pred_fallthru
          _
        // Predicated region
        $region29: #{tpu_custom_call.1} parent=11 // pred_check
          %p306 = pneg %p155
        $region30: #{tpu_custom_call.1} parent=11 // pred_check_branch
          %308 = sbr.rel (%p306) target = $region32
        $region31: #{tpu_custom_call.1} parent=11 // pred_region
          _
        $region32: #{tpu_custom_call.1} parent=11 // pred_fallthru
          _
        // Predicated region
        $region33: #{tpu_custom_call.1} parent=11 // pred_check
          %p309 = pneg %p176
        $region34: #{tpu_custom_call.1} parent=11 // pred_check_branch
          %311 = sbr.rel (%p309) target = $region36
        $region35: #{tpu_custom_call.1} parent=11 // pred_region
          _
        $region36: #{tpu_custom_call.1} parent=11 // pred_fallthru
          _
        // Predicated region
        $region37: #{tpu_custom_call.1} parent=11 // pred_check
          %p312 = pneg %p197
        $region38: #{tpu_custom_call.1} parent=11 // pred_check_branch
          %314 = sbr.rel (%p312) target = $region40
        $region39: #{tpu_custom_call.1} parent=11 // pred_region
          _
        $region40: #{tpu_custom_call.1} parent=11 // pred_fallthru
          _
      $region12: #{tpu_custom_call.1} parent=5 // pred_fallthru
        _
      %p315 = scmp.lt.s32.totalorder %s24, 2
      // Predicated region
      $region41: #{tpu_custom_call.1} parent=5 // pred_check
        %p316 = pneg %p315
      $region42: #{tpu_custom_call.1} parent=5 // pred_check_branch
        %318 = sbr.rel (%p316) target = $region44
      $region43: #{tpu_custom_call.1} parent=5 // pred_region
        // Predicated region
        $region45: #{tpu_custom_call.1} parent=43 // pred_check
          %p319 = pneg %p44
        $region46: #{tpu_custom_call.1} parent=43 // pred_check_branch
          %321 = sbr.rel (%p319) target = $region48
        $region47: #{tpu_custom_call.1} parent=43 // pred_region
          %p322 = scmp.lt.s32.totalorder %s24, 1
          %s323 = scalar_select %p322, %s24, 1
          %s324 = smul.addr %s323, 8
          %s325 = smul.addr %s324, 4
          %s326 = scalar_lea.vmem %s0, %s325
        $region48: #{tpu_custom_call.1} parent=43 // pred_fallthru
          _
      $region44: #{tpu_custom_call.1} parent=5 // pred_fallthru
        _
      %p327 = scmp.le.s32.totalorder 1, %s24
      %p328 = scmp.lt.s32.totalorder %s24, 3
      %p329 = pnand %p327, %p328
      %p330 = pneg %p329
      // Predicated region
      $region49: #{tpu_custom_call.1} parent=5 // pred_check
        _
      $region50: #{tpu_custom_call.1} parent=5 // pred_check_branch
        %332 = sbr.rel (%p329) target = $region52
      $region51: #{tpu_custom_call.1} parent=5 // pred_region
        %s333 = ssub.s32 %s24, 1
        // Predicated region
        $region53: #{tpu_custom_call.1} parent=51 // pred_check
          %p334 = pneg %p71
        $region54: #{tpu_custom_call.1} parent=51 // pred_check_branch
          %336 = sbr.rel (%p334) target = $region56
        $region55: #{tpu_custom_call.1} parent=51 // pred_region
          %337 = dma.done [#allocation3], 512
        $region56: #{tpu_custom_call.1} parent=51 // pred_fallthru
          _
        // Predicated region
        $region57: #{tpu_custom_call.1} parent=51 // pred_check
          %p338 = pneg %p92
        $region58: #{tpu_custom_call.1} parent=51 // pred_check_branch
          %340 = sbr.rel (%p338) target = $region60
        $region59: #{tpu_custom_call.1} parent=51 // pred_region
          %341 = dma.done [#allocation6], 1024
        $region60: #{tpu_custom_call.1} parent=51 // pred_fallthru
          _
        // Predicated region
        $region61: #{tpu_custom_call.1} parent=51 // pred_check
          %p342 = pneg %p134
        $region62: #{tpu_custom_call.1} parent=51 // pred_check_branch
          %344 = sbr.rel (%p342) target = $region64
        $region63: #{tpu_custom_call.1} parent=51 // pred_region
          %345 = dma.done [#allocation6], 1024
        $region64: #{tpu_custom_call.1} parent=51 // pred_fallthru
          _
        %p346 = scmp.lt.s32.totalorder %s29, 1
        %s347 = scalar_select %p346, %s29, 1
        %s348 = smul.addr %s347, 8
        %s349 = smul.addr %s348, 4
        %s350 = scalar_lea.vmem %s0, %s349
        %p351 = pneg %p50
        %p352 = pneg %p47
        %p353 = pneg %p71
        %p354 = pneg %p68
        %p355 = pneg %p92
        %p356 = pneg %p89
        %p357 = pneg %p113
        %p358 = pneg %p110
        %p359 = pneg %p134
        %p360 = pneg %p131
        %p361 = pneg %p155
        %p362 = pneg %p152
        %p363 = pneg %p176
        %p364 = pneg %p173
        %p365 = pneg %p197
        %p366 = pneg %p194
        %p367 = pneg %p223
        %p368 = pneg %p220
        %s369 = sand.u32 %s210, 1
        %s370 = scalar_lea.sflag [#allocation4], %s369
        %s371 = sand.u32 %s210, 1
        %s372 = smul.addr %s371, 16
        %s373 = scalar_lea.vmem [#allocation8], %s372
        %p374 = pneg %p249
        %p375 = pneg %p246
        %s376 = sand.u32 %s236, 1
        %s377 = scalar_lea.sflag [#allocation10], %s376
        %s378 = sand.u32 %s236, 1
        %s379 = smul.addr %s378, 64
        %s380 = scalar_lea.vmem [#allocation9], %s379
        %p381 = scmp.lt.s32.totalorder %s29, 1
        %s382 = scalar_select %p381, %s29, 1
        %s383 = smul.addr %s382, 8
        %s384 = smul.addr %s383, 4
        %s385 = scalar_lea.vmem %s0, %s384
        %v386 = vld [vmem:[#allocation2] sm:$0xff]
        %v387 = vld [vmem:[#allocation2 + $0x8] sm:$0xff]
        %v388 = vld [vmem:[#allocation2 + $0x10] sm:$0x1]
        %v389 = vld [vmem:[#allocation2 + $0x18] sm:$0x1]
        %v390 = vld [vmem:[%s385] sm:$0xff]
        %v392 = vcombine.high %v390, %v390
        %vm394 = vcmask 1043456
        %v395 = vsel %vm394, %v390, 0.0
        %v396 = vsel %vm394, %v392, 0.0
        %397 = vrot.lane.b32.xlu0 %v395, 17
        %v398 = vpop.permute.xlu0 %397
        %399 = vrot.lane.b32.xlu0 0.0, 17
        %v400 = vpop.permute.xlu0 %399
        %401 = vrot.lane.b32.xlu0 %v396, 17
        %v402 = vpop.permute.xlu0 %401
        %v403 = vlaneseq
        %v404 = vand.u32 %v403, 127
        %vm405 = vcmp.lt.s32.totalorder %v404, 17
        %v406 = vsel %vm405, %v398, %v402
        %v407 = vsel %vm405, %v402, %v398
        %v408 = vlaneseq
        %v409 = vshrl.u32 %v408, 7
        %v410 = vsub.s32 0, %v409
        %v411 = vrot.slane %v386, %v410
        %v412 = vlaneseq
        %v413 = vshrl.u32 %v412, 7
        %v414 = vsub.s32 0, %v413
        %v415 = vrot.slane %v387, %v414
        %v416 = vmul.f32 %v407, %v411
        %v417 = vmul.f32 %v406, %v415
        %v418 = vmul.f32 %v400, %v411
        %v419 = vmul.f32 %v400, %v415
        %420 = vrot.lane.b32.xlu0 %v395, 16
        %v421 = vpop.permute.xlu0 %420
        %422 = vrot.lane.b32.xlu0 0.0, 16
        %v423 = vpop.permute.xlu0 %422
        %424 = vrot.lane.b32.xlu0 %v396, 16
        %v425 = vpop.permute.xlu0 %424
        %vm426 = vcmp.lt.s32.totalorder %v404, 16
        %v427 = vsel %vm426, %v421, %v425
        %v428 = vsel %vm426, %v425, %v421
        %v429 = vlaneseq
        %v430 = vshrl.u32 %v429, 7
        %v431 = vsub.s32 1, %v430
        %v432 = vrot.slane %v386, %v431
        %v433 = vlaneseq
        %v434 = vshrl.u32 %v433, 7
        %v435 = vsub.s32 1, %v434
        %v436 = vrot.slane %v387, %v435
        %v437 = vmul.f32 %v428, %v432
        %v438 = vmul.f32 %v427, %v436
        %v439 = vmul.f32 %v423, %v432
        %v440 = vmul.f32 %v423, %v436
        %441 = vrot.lane.b32.xlu0 %v395, 15
        %v442 = vpop.permute.xlu0 %441
        %443 = vrot.lane.b32.xlu0 0.0, 15
        %v444 = vpop.permute.xlu0 %443
        %445 = vrot.lane.b32.xlu0 %v396, 15
        %v446 = vpop.permute.xlu0 %445
        %vm447 = vcmp.lt.s32.totalorder %v404, 15
        %v448 = vsel %vm447, %v442, %v446
        %v449 = vsel %vm447, %v446, %v442
        %v450 = vlaneseq
        %v451 = vshrl.u32 %v450, 7
        %v452 = vsub.s32 2, %v451
        %v453 = vrot.slane %v386, %v452
        %v454 = vlaneseq
        %v455 = vshrl.u32 %v454, 7
        %v456 = vsub.s32 2, %v455
        %v457 = vrot.slane %v387, %v456
        %v458 = vmul.f32 %v449, %v453
        %v459 = vmul.f32 %v448, %v457
        %v460 = vmul.f32 %v444, %v453
        %v461 = vmul.f32 %v444, %v457
        %462 = vrot.lane.b32.xlu0 %v395, 1
        %v463 = vpop.permute.xlu0 %462
        %464 = vrot.lane.b32.xlu0 0.0, 1
        %v465 = vpop.permute.xlu0 %464
        %466 = vrot.lane.b32.xlu0 %v396, 1
        %v467 = vpop.permute.xlu0 %466
        %vm468 = vcmp.lt.s32.totalorder %v404, 1
        %v469 = vsel %vm468, %v463, %v467
        %v470 = vsel %vm468, %v467, %v463
        %v471 = vlaneseq
        %v472 = vshrl.u32 %v471, 7
        %v473 = vsub.s32 3, %v472
        %v474 = vrot.slane %v386, %v473
        %v475 = vlaneseq
        %v476 = vshrl.u32 %v475, 7
        %v477 = vsub.s32 3, %v476
        %v478 = vrot.slane %v387, %v477
        %v479 = vmul.f32 %v470, %v474
        %v480 = vmul.f32 %v469, %v478
        %v481 = vmul.f32 %v465, %v474
        %v482 = vmul.f32 %v465, %v478
        %483 = vrot.lane.b32.xlu0 %v395, 127
        %v484 = vpop.permute.xlu0 %483
        %485 = vrot.lane.b32.xlu0 0.0, 127
        %v486 = vpop.permute.xlu0 %485
        %487 = vrot.lane.b32.xlu0 %v396, 127
        %v488 = vpop.permute.xlu0 %487
        %vm489 = vcmp.lt.s32.totalorder %v404, 127
        %v490 = vsel %vm489, %v484, %v488
        %v491 = vsel %vm489, %v488, %v484
        %v492 = vlaneseq
        %v493 = vshrl.u32 %v492, 7
        %v494 = vsub.s32 5, %v493
        %v495 = vrot.slane %v386, %v494
        %v496 = vlaneseq
        %v497 = vshrl.u32 %v496, 7
        %v498 = vsub.s32 5, %v497
        %v499 = vrot.slane %v387, %v498
        %v500 = vmul.f32 %v490, %v495
        %v501 = vmul.f32 %v491, %v499
        %v502 = vmul.f32 %v486, %v495
        %v503 = vmul.f32 %v486, %v499
        %504 = vrot.lane.b32.xlu0 %v395, 113
        %v505 = vpop.permute.xlu0 %504
        %506 = vrot.lane.b32.xlu0 0.0, 113
        %v507 = vpop.permute.xlu0 %506
        %508 = vrot.lane.b32.xlu0 %v396, 113
        %v509 = vpop.permute.xlu0 %508
        %vm510 = vcmp.lt.s32.totalorder %v404, 113
        %v511 = vsel %vm510, %v505, %v509
        %v512 = vsel %vm510, %v509, %v505
        %v513 = vlaneseq
        %v514 = vshrl.u32 %v513, 7
        %v515 = vsub.s32 6, %v514
        %v516 = vrot.slane %v386, %v515
        %v517 = vlaneseq
        %v518 = vshrl.u32 %v517, 7
        %v519 = vsub.s32 6, %v518
        %v520 = vrot.slane %v387, %v519
        %v521 = vmul.f32 %v511, %v516
        %v522 = vmul.f32 %v512, %v520
        %v523 = vmul.f32 %v507, %v516
        %v524 = vmul.f32 %v507, %v520
        %525 = vrot.lane.b32.xlu0 %v395, 112
        %v526 = vpop.permute.xlu0 %525
        %527 = vrot.lane.b32.xlu0 0.0, 112
        %v528 = vpop.permute.xlu0 %527
        %529 = vrot.lane.b32.xlu0 %v396, 112
        %v530 = vpop.permute.xlu0 %529
        %vm531 = vcmp.lt.s32.totalorder %v404, 112
        %v532 = vsel %vm531, %v526, %v530
        %v533 = vsel %vm531, %v530, %v526
        %v534 = vlaneseq
        %v535 = vshrl.u32 %v534, 7
        %v536 = vsub.s32 7, %v535
        %v537 = vrot.slane %v386, %v536
        %v538 = vlaneseq
        %v539 = vshrl.u32 %v538, 7
        %v540 = vsub.s32 7, %v539
        %v541 = vrot.slane %v387, %v540
        %v542 = vmul.f32 %v532, %v537
        %v543 = vmul.f32 %v533, %v541
        %v544 = vmul.f32 %v528, %v537
        %v545 = vmul.f32 %v528, %v541
        %546 = vrot.lane.b32.xlu0 %v395, 111
        %v547 = vpop.permute.xlu0 %546
        %548 = vrot.lane.b32.xlu0 0.0, 111
        %v549 = vpop.permute.xlu0 %548
        %550 = vrot.lane.b32.xlu0 %v396, 111
        %v551 = vpop.permute.xlu0 %550
        %vm552 = vcmp.lt.s32.totalorder %v404, 111
        %v553 = vsel %vm552, %v547, %v551
        %v554 = vsel %vm552, %v551, %v547
        %v555 = vlaneseq
        %v556 = vshrl.u32 %v555, 7
        %v557 = vsub.s32 0, %v556
        %v558 = vrot.slane %v388, %v557
        %v559 = vlaneseq
        %v560 = vshrl.u32 %v559, 7
        %v561 = vsub.s32 0, %v560
        %v562 = vrot.slane %v389, %v561
        %v563 = vmul.f32 %v553, %v558
        %v564 = vmul.f32 %v554, %v562
        %v565 = vmul.f32 %v549, %v558
        %v566 = vmul.f32 %v549, %v562
        %v567 = vld [vmem:[#allocation5] sm:$0xff]
        %v568 = vld [vmem:[#allocation5 + $0x8] sm:$0xff]
        %v569 = vld [vmem:[#allocation5 + $0x10] sm:$0xff]
        %v570 = vld [vmem:[#allocation5 + $0x18] sm:$0xff]
        %v571 = vld [vmem:[#allocation5 + $0x20] sm:$0xff]
        %v572 = vld [vmem:[#allocation5 + $0x28] sm:$0xff]
        %v573 = vld [vmem:[#allocation5 + $0x30] sm:$0xff]
        %v574 = vld [vmem:[#allocation5 + $0x38] sm:$0xff]
        %v575 = vld [vmem:[%s3] sm:$0xff]
        %v576 = vld [vmem:[%s3 + $0x8] sm:$0xff]
        %v577 = vld [vmem:[%s3 + $0x10] sm:$0xff]
        %v578 = vld [vmem:[%s3 + $0x18] sm:$0xff]
        %580 = vset.pattern.permute.xlu0 0
        %581 = vperm.xlu0 %580, %v575
        %v582 = vpop.permute.xlu0 %581
        %585 = vset.pattern.permute.xlu0 0
        %586 = vperm.xlu0 %585, %v576
        %v587 = vpop.permute.xlu0 %586
        %590 = vset.pattern.permute.xlu0 0
        %591 = vperm.xlu0 %590, %v577
        %v592 = vpop.permute.xlu0 %591
        %595 = vset.pattern.permute.xlu0 0
        %596 = vperm.xlu0 %595, %v578
        %v597 = vpop.permute.xlu0 %596
        %vm599 = vcmask 130048
        %v601 = vsel %vm599, %v568, 0
        %v604 = vsel %vm599, %v570, 0
        %v607 = vsel %vm599, %v572, 0
        %v610 = vsel %vm599, %v574, 0
        %612 = vmatprep.subr.mxu0 %v417
        %613 = vmatpush1.msra.mxu0 %v416
        %614 = vmatprep.subr.mxu0 %v419
        %615 = vmatpush1.msra.mxu0 %v418
        %616 = vmatprep.subr.mxu0 %v438
        %617 = vmatpush1.msra.mxu0 %v437
        %618 = vmatprep.subr.mxu0 %v440
        %619 = vmatpush1.msra.mxu0 %v439
        %620 = vmatprep.subr.mxu0 %v459
        %621 = vmatpush1.msra.mxu0 %v458
        %622 = vmatprep.subr.mxu0 %v461
        %623 = vmatpush1.msra.mxu0 %v460
        %624 = vmatprep.subr.mxu0 %v480
        %625 = vmatpush1.msra.mxu0 %v479
        %626 = vmatprep.subr.mxu0 %v482
        %627 = vmatpush1.msra.mxu0 %v481
        %628 = vmatprep.subr.mxu0 %v396
        %629 = vmatpush1.msra.mxu0 %v395
        %630 = vmatprep.subr.mxu0 0.0
        %631 = vmatpush1.msra.mxu0 0.0
        %632 = vmatprep.subr.mxu0 %v501
        %633 = vmatpush1.msra.mxu0 %v500
        %634 = vmatprep.subr.mxu0 %v503
        %635 = vmatpush1.msra.mxu0 %v502
        %636 = vmatprep.subr.mxu0 %v522
        %637 = vmatpush1.msra.mxu0 %v521
        %638 = vmatprep.subr.mxu0 %v524
        %639 = vmatpush1.msra.mxu0 %v523
        %640 = vmatprep.subr.mxu0 %v543
        %641 = vmatpush1.msra.mxu0 %v542
        %642 = vmatprep.subr.mxu0 %v545
        %643 = vmatpush1.msra.mxu0 %v544
        %644 = vmatprep.subr.mxu0 %v564
        %645 = vmatpush1.msra.mxu0 %v563
        %646 = vmatprep.subr.mxu0 %v566
        %647 = vmatpush1.msra.mxu0 %v565
        %648 = vmatprep.subr.mxu0 0.0
        %649 = vmatpush1.msra.mxu0 0.0
        %650 = vmatprep.subr.mxu0 0.0
        %651 = vmatpush1.msra.mxu0 0.0
        %652 = vmatprep.subr.mxu0 0.0
        %653 = vmatpush1.msra.mxu0 0.0
        %654 = vmatprep.subr.mxu0 0.0
        %655 = vmatpush1.msra.mxu0 0.0
        %656 = vmatprep.subr.mxu0 0.0
        %657 = vmatpush1.msra.mxu0 0.0
        %658 = vmatprep.subr.mxu0 0.0
        %659 = vmatpush1.msra.mxu0 0.0
        %660 = vmatprep.subr.mxu0 0.0
        %661 = vmatpush1.msra.mxu0 0.0
        %662 = vmatprep.subr.mxu0 0.0
        %663 = vmatpush1.msra.mxu0 0.0
        %664 = vmatprep.subr.mxu0 0.0
        %665 = vmatpush1.msra.mxu0 0.0
        %666 = vmatprep.subr.mxu0 0.0
        %667 = vmatpush1.msra.mxu0 0.0
        %668 = vmatprep.subr.mxu0 0.0
        %669 = vmatpush1.msra.mxu0 0.0
        %670 = vmatprep.subr.mxu0 0.0
        %671 = vmatpush1.msra.mxu0 0.0
        %672 = vmatprep.subr.mxu0 0.0
        %673 = vmatpush1.msra.mxu0 0.0
        %674 = vmatprep.subr.mxu0 0.0
        %675 = vmatpush1.msra.mxu0 0.0
        %676 = vmatprep.mubr.f32.mxu0 %v601
        %677 = vmatmul.mubr.f32.gmra.mrb[0].mxu0 %v567
        %v678 = vpop.f32.mrb[0].mxu0
        %v679 = vadd.f32 %v582, %v678
        %v680 = vpop.f32.mrb[0].mxu0
        %v681 = vadd.f32 %v582, %v680
        %682 = vmatprep.mubr.f32.mxu0 %v604
        %683 = vmatmul.mubr.f32.gmra.mrb[0].mxu0 %v569
        %v684 = vpop.f32.mrb[0].mxu0
        %v685 = vadd.f32 %v587, %v684
        %v686 = vpop.f32.mrb[0].mxu0
        %v687 = vadd.f32 %v587, %v686
        %688 = vmatprep.mubr.f32.mxu0 %v607
        %689 = vmatmul.mubr.f32.gmra.mrb[0].mxu0 %v571
        %v690 = vpop.f32.mrb[0].mxu0
        %v691 = vadd.f32 %v592, %v690
        %v692 = vpop.f32.mrb[0].mxu0
        %v693 = vadd.f32 %v592, %v692
        %694 = vmatprep.mubr.f32.mxu0 %v610
        %695 = vmatmul.mubr.f32.gmra.mrb[0].mxu0 %v573
        %v696 = vpop.f32.mrb[0].mxu0
        %v697 = vadd.f32 %v597, %v696
        %v698 = vpop.f32.mrb[0].mxu0
        %v699 = vadd.f32 %v597, %v698
        %700 = vdwg.mxu0
        %v701 = vxor.u32 %v679, 2147483648
        %v702 = vxor.u32 %v681, 2147483648
        %v703 = vmul.f32 %v701, 1.442695
        %v704 = vpow.pop %v703
        %v705 = vmul.f32 %v702, 1.442695
        %v706 = vpow.pop %v705
        %v707 = vadd.f32 %v704, 1.0
        %v708 = vadd.f32 %v706, 1.0
        %v709 = vrcp.pop %v707
        %v710 = vmul.f32 1.0, %v709
        %v711 = vrcp.pop %v708
        %v712 = vmul.f32 1.0, %v711
        %v713 = vxor.u32 %v685, 2147483648
        %v714 = vxor.u32 %v687, 2147483648
        %v715 = vmul.f32 %v713, 1.442695
        %v716 = vpow.pop %v715
        %v717 = vmul.f32 %v714, 1.442695
        %v718 = vpow.pop %v717
        %v719 = vadd.f32 %v716, 1.0
        %v720 = vadd.f32 %v718, 1.0
        %v721 = vrcp.pop %v719
        %v722 = vmul.f32 1.0, %v721
        %v723 = vrcp.pop %v720
        %v724 = vmul.f32 1.0, %v723
        %v725 = vtanh.pop %v691
        %v726 = vtanh.pop %v693
        %v727 = vxor.u32 %v697, 2147483648
        %v728 = vxor.u32 %v699, 2147483648
        %v729 = vmul.f32 %v727, 1.442695
        %v730 = vpow.pop %v729
        %v731 = vmul.f32 %v728, 1.442695
        %v732 = vpow.pop %v731
        %v733 = vadd.f32 %v730, 1.0
        %v734 = vadd.f32 %v732, 1.0
        %v735 = vrcp.pop %v733
        %v736 = vmul.f32 1.0, %v735
        %v737 = vrcp.pop %v734
        %v738 = vmul.f32 1.0, %v737
        %v739 = vmul.f32 %v722, 0.0
        %v740 = vmul.f32 %v724, 0.0
        %v741 = vmul.f32 %v710, %v725
        %v742 = vmul.f32 %v712, %v726
        %v743 = vadd.f32 %v739, %v741
        %v744 = vadd.f32 %v740, %v742
        %v745 = vtanh.pop %v743
        %v746 = vtanh.pop %v744
        %v747 = vmul.f32 %v736, %v745
        %v748 = vmul.f32 %v738, %v746
        %749 = vrot.lane.b32.xlu0 %v747, 17
        %v750 = vpop.permute.xlu0 %749
        %751 = vrot.lane.b32.xlu0 %v748, 17
        %v752 = vpop.permute.xlu0 %751
        %v753 = vsel %vm405, %v750, %v752
        %v754 = vsel %vm405, %v752, %v750
        %v755 = vmul.f32 %v754, %v411
        %v756 = vmul.f32 %v753, %v415
        %757 = vrot.lane.b32.xlu0 %v747, 16
        %v758 = vpop.permute.xlu0 %757
        %759 = vrot.lane.b32.xlu0 %v748, 16
        %v760 = vpop.permute.xlu0 %759
        %v761 = vsel %vm426, %v758, %v760
        %v762 = vsel %vm426, %v760, %v758
        %v763 = vmul.f32 %v762, %v432
        %v764 = vmul.f32 %v761, %v436
        %765 = vrot.lane.b32.xlu0 %v747, 15
        %v766 = vpop.permute.xlu0 %765
        %767 = vrot.lane.b32.xlu0 %v748, 15
        %v768 = vpop.permute.xlu0 %767
        %v769 = vsel %vm447, %v766, %v768
        %v770 = vsel %vm447, %v768, %v766
        %v771 = vmul.f32 %v770, %v453
        %v772 = vmul.f32 %v769, %v457
        %773 = vrot.lane.b32.xlu0 %v747, 1
        %v774 = vpop.permute.xlu0 %773
        %775 = vrot.lane.b32.xlu0 %v748, 1
        %v776 = vpop.permute.xlu0 %775
        %v777 = vsel %vm468, %v774, %v776
        %v778 = vsel %vm468, %v776, %v774
        %v779 = vmul.f32 %v778, %v474
        %v780 = vmul.f32 %v777, %v478
        %781 = vrot.lane.b32.xlu0 %v747, 127
        %v782 = vpop.permute.xlu0 %781
        %783 = vrot.lane.b32.xlu0 %v748, 127
        %v784 = vpop.permute.xlu0 %783
        %v785 = vsel %vm489, %v782, %v784
        %v786 = vsel %vm489, %v784, %v782
        %v787 = vmul.f32 %v785, %v495
        %v788 = vmul.f32 %v786, %v499
        %789 = vrot.lane.b32.xlu0 %v747, 113
        %v790 = vpop.permute.xlu0 %789
        %791 = vrot.lane.b32.xlu0 %v748, 113
        %v792 = vpop.permute.xlu0 %791
        %v793 = vsel %vm510, %v790, %v792
        %v794 = vsel %vm510, %v792, %v790
        %v795 = vmul.f32 %v793, %v516
        %v796 = vmul.f32 %v794, %v520
        %797 = vrot.lane.b32.xlu0 %v747, 112
        %v798 = vpop.permute.xlu0 %797
        %799 = vrot.lane.b32.xlu0 %v748, 112
        %v800 = vpop.permute.xlu0 %799
        %v801 = vsel %vm531, %v798, %v800
        %v802 = vsel %vm531, %v800, %v798
        %v803 = vmul.f32 %v801, %v537
        %v804 = vmul.f32 %v802, %v541
        %805 = vrot.lane.b32.xlu0 %v747, 111
        %v806 = vpop.permute.xlu0 %805
        %807 = vrot.lane.b32.xlu0 %v748, 111
        %v808 = vpop.permute.xlu0 %807
        %v809 = vsel %vm552, %v806, %v808
        %v810 = vsel %vm552, %v808, %v806
        %v811 = vmul.f32 %v809, %v558
        %v812 = vmul.f32 %v810, %v562
        %v813 = vld [vmem:[#allocation7] sm:$0xff]
        %v814 = vld [vmem:[#allocation7 + $0x8] sm:$0xff]
        %v815 = vld [vmem:[#allocation7 + $0x10] sm:$0xff]
        %v816 = vld [vmem:[#allocation7 + $0x18] sm:$0xff]
        %v817 = vld [vmem:[#allocation7 + $0x20] sm:$0xff]
        %v818 = vld [vmem:[#allocation7 + $0x28] sm:$0xff]
        %v819 = vld [vmem:[#allocation7 + $0x30] sm:$0xff]
        %v820 = vld [vmem:[#allocation7 + $0x38] sm:$0xff]
        %v821 = vld [vmem:[%s5] sm:$0xff]
        %v822 = vld [vmem:[%s5 + $0x8] sm:$0xff]
        %v823 = vld [vmem:[%s5 + $0x10] sm:$0xff]
        %v824 = vld [vmem:[%s5 + $0x18] sm:$0xff]
        %826 = vset.pattern.permute.xlu0 0
        %827 = vperm.xlu0 %826, %v821
        %v828 = vpop.permute.xlu0 %827
        %831 = vset.pattern.permute.xlu0 0
        %832 = vperm.xlu0 %831, %v822
        %v833 = vpop.permute.xlu0 %832
        %836 = vset.pattern.permute.xlu0 0
        %837 = vperm.xlu0 %836, %v823
        %v838 = vpop.permute.xlu0 %837
        %841 = vset.pattern.permute.xlu0 0
        %842 = vperm.xlu0 %841, %v824
        %v843 = vpop.permute.xlu0 %842
        %v846 = vsel %vm599, %v814, 0
        %v849 = vsel %vm599, %v816, 0
        %v852 = vsel %vm599, %v818, 0
        %v855 = vsel %vm599, %v820, 0
        %857 = vmatprep.subr.mxu0 %v756
        %858 = vmatpush1.msra.mxu0 %v755
        %859 = vmatprep.subr.mxu0 %v419
        %860 = vmatpush1.msra.mxu0 %v418
        %861 = vmatprep.subr.mxu0 %v764
        %862 = vmatpush1.msra.mxu0 %v763
        %863 = vmatprep.subr.mxu0 %v440
        %864 = vmatpush1.msra.mxu0 %v439
        %865 = vmatprep.subr.mxu0 %v772
        %866 = vmatpush1.msra.mxu0 %v771
        %867 = vmatprep.subr.mxu0 %v461
        %868 = vmatpush1.msra.mxu0 %v460
        %869 = vmatprep.subr.mxu0 %v780
        %870 = vmatpush1.msra.mxu0 %v779
        %871 = vmatprep.subr.mxu0 %v482
        %872 = vmatpush1.msra.mxu0 %v481
        %873 = vmatprep.subr.mxu0 %v748
        %874 = vmatpush1.msra.mxu0 %v747
        %875 = vmatprep.subr.mxu0 0.0
        %876 = vmatpush1.msra.mxu0 0.0
        %877 = vmatprep.subr.mxu0 %v788
        %878 = vmatpush1.msra.mxu0 %v787
        %879 = vmatprep.subr.mxu0 %v503
        %880 = vmatpush1.msra.mxu0 %v502
        %881 = vmatprep.subr.mxu0 %v796
        %882 = vmatpush1.msra.mxu0 %v795
        %883 = vmatprep.subr.mxu0 %v524
        %884 = vmatpush1.msra.mxu0 %v523
        %885 = vmatprep.subr.mxu0 %v804
        %886 = vmatpush1.msra.mxu0 %v803
        %887 = vmatprep.subr.mxu0 %v545
        %888 = vmatpush1.msra.mxu0 %v544
        %889 = vmatprep.subr.mxu0 %v812
        %890 = vmatpush1.msra.mxu0 %v811
        %891 = vmatprep.subr.mxu0 %v566
        %892 = vmatpush1.msra.mxu0 %v565
        %893 = vmatprep.subr.mxu0 0.0
        %894 = vmatpush1.msra.mxu0 0.0
        %895 = vmatprep.subr.mxu0 0.0
        %896 = vmatpush1.msra.mxu0 0.0
        %897 = vmatprep.subr.mxu0 0.0
        %898 = vmatpush1.msra.mxu0 0.0
        %899 = vmatprep.subr.mxu0 0.0
        %900 = vmatpush1.msra.mxu0 0.0
        %901 = vmatprep.subr.mxu0 0.0
        %902 = vmatpush1.msra.mxu0 0.0
        %903 = vmatprep.subr.mxu0 0.0
        %904 = vmatpush1.msra.mxu0 0.0
        %905 = vmatprep.subr.mxu0 0.0
        %906 = vmatpush1.msra.mxu0 0.0
        %907 = vmatprep.subr.mxu0 0.0
        %908 = vmatpush1.msra.mxu0 0.0
        %909 = vmatprep.subr.mxu0 0.0
        %910 = vmatpush1.msra.mxu0 0.0
        %911 = vmatprep.subr.mxu0 0.0
        %912 = vmatpush1.msra.mxu0 0.0
        %913 = vmatprep.subr.mxu0 0.0
        %914 = vmatpush1.msra.mxu0 0.0
        %915 = vmatprep.subr.mxu0 0.0
        %916 = vmatpush1.msra.mxu0 0.0
        %917 = vmatprep.subr.mxu0 0.0
        %918 = vmatpush1.msra.mxu0 0.0
        %919 = vmatprep.subr.mxu0 0.0
        %920 = vmatpush1.msra.mxu0 0.0
        %921 = vmatprep.mubr.f32.mxu0 %v846
        %922 = vmatmul.mubr.f32.gmra.mrb[0].mxu0 %v813
        %v923 = vpop.f32.mrb[0].mxu0
        %v924 = vadd.f32 %v828, %v923
        %v925 = vpop.f32.mrb[0].mxu0
        %v926 = vadd.f32 %v828, %v925
        %927 = vmatprep.mubr.f32.mxu0 %v849
        %928 = vmatmul.mubr.f32.gmra.mrb[0].mxu0 %v815
        %v929 = vpop.f32.mrb[0].mxu0
        %v930 = vadd.f32 %v833, %v929
        %v931 = vpop.f32.mrb[0].mxu0
        %v932 = vadd.f32 %v833, %v931
        %933 = vmatprep.mubr.f32.mxu0 %v852
        %934 = vmatmul.mubr.f32.gmra.mrb[0].mxu0 %v817
        %v935 = vpop.f32.mrb[0].mxu0
        %v936 = vadd.f32 %v838, %v935
        %v937 = vpop.f32.mrb[0].mxu0
        %v938 = vadd.f32 %v838, %v937
        %939 = vmatprep.mubr.f32.mxu0 %v855
        %940 = vmatmul.mubr.f32.gmra.mrb[0].mxu0 %v819
        %v941 = vpop.f32.mrb[0].mxu0
        %v942 = vadd.f32 %v843, %v941
        %v943 = vpop.f32.mrb[0].mxu0
        %v944 = vadd.f32 %v843, %v943
        %945 = vdwg.mxu0
        %v946 = vxor.u32 %v924, 2147483648
        %v947 = vxor.u32 %v926, 2147483648
        %v948 = vmul.f32 %v946, 1.442695
        %v949 = vpow.pop %v948
        %v950 = vmul.f32 %v947, 1.442695
        %v951 = vpow.pop %v950
        %v952 = vadd.f32 %v949, 1.0
        %v953 = vadd.f32 %v951, 1.0
        %v954 = vrcp.pop %v952
        %v955 = vmul.f32 1.0, %v954
        %v956 = vrcp.pop %v953
        %v957 = vmul.f32 1.0, %v956
        %v958 = vxor.u32 %v930, 2147483648
        %v959 = vxor.u32 %v932, 2147483648
        %v960 = vmul.f32 %v958, 1.442695
        %v961 = vpow.pop %v960
        %v962 = vmul.f32 %v959, 1.442695
        %v963 = vpow.pop %v962
        %v964 = vadd.f32 %v961, 1.0
        %v965 = vadd.f32 %v963, 1.0
        %v966 = vrcp.pop %v964
        %v967 = vmul.f32 1.0, %v966
        %v968 = vrcp.pop %v965
        %v969 = vmul.f32 1.0, %v968
        %v970 = vtanh.pop %v936
        %v971 = vtanh.pop %v938
        %v972 = vxor.u32 %v942, 2147483648
        %v973 = vxor.u32 %v944, 2147483648
        %v974 = vmul.f32 %v972, 1.442695
        %v975 = vpow.pop %v974
        %v976 = vmul.f32 %v973, 1.442695
        %v977 = vpow.pop %v976
        %v978 = vadd.f32 %v975, 1.0
        %v979 = vadd.f32 %v977, 1.0
        %v980 = vrcp.pop %v978
        %v981 = vmul.f32 1.0, %v980
        %v982 = vrcp.pop %v979
        %v983 = vmul.f32 1.0, %v982
        %v984 = vmul.f32 %v967, 0.0
        %v985 = vmul.f32 %v969, 0.0
        %v986 = vmul.f32 %v955, %v970
        %v987 = vmul.f32 %v957, %v971
        %v988 = vadd.f32 %v984, %v986
        %v989 = vadd.f32 %v985, %v987
        %v990 = vtanh.pop %v988
        %v991 = vtanh.pop %v989
        %v992 = vmul.f32 %v981, %v990
        %v993 = vmul.f32 %v983, %v991
        %s994 = scalar_lea.vmem %s385, 8
        %v995 = vld [vmem:[%s994] sm:$0xff]
        %v997 = vcombine.high %v995, %v995
        %v999 = vsel %vm394, %v995, 0.0
        %v1000 = vsel %vm394, %v997, 0.0
        %1001 = vrot.lane.b32.xlu0 %v999, 17
        %v1002 = vpop.permute.xlu0 %1001
        %1003 = vrot.lane.b32.xlu0 %v1000, 17
        %v1004 = vpop.permute.xlu0 %1003
        %v1005 = vsel %vm405, %v1002, %v1004
        %v1006 = vsel %vm405, %v1004, %v1002
        %v1007 = vmul.f32 %v1006, %v411
        %v1008 = vmul.f32 %v1005, %v415
        %1009 = vrot.lane.b32.xlu0 %v999, 16
        %v1010 = vpop.permute.xlu0 %1009
        %1011 = vrot.lane.b32.xlu0 %v1000, 16
        %v1012 = vpop.permute.xlu0 %1011
        %v1013 = vsel %vm426, %v1010, %v1012
        %v1014 = vsel %vm426, %v1012, %v1010
        %v1015 = vmul.f32 %v1014, %v432
        %v1016 = vmul.f32 %v1013, %v436
        %1017 = vrot.lane.b32.xlu0 %v999, 15
        %v1018 = vpop.permute.xlu0 %1017
        %1019 = vrot.lane.b32.xlu0 %v1000, 15
        %v1020 = vpop.permute.xlu0 %1019
        %v1021 = vsel %vm447, %v1018, %v1020
        %v1022 = vsel %vm447, %v1020, %v1018
        %v1023 = vmul.f32 %v1022, %v453
        %v1024 = vmul.f32 %v1021, %v457
        %1025 = vrot.lane.b32.xlu0 %v999, 1
        %v1026 = vpop.permute.xlu0 %1025
        %1027 = vrot.lane.b32.xlu0 %v1000, 1
        %v1028 = vpop.permute.xlu0 %1027
        %v1029 = vsel %vm468, %v1026, %v1028
        %v1030 = vsel %vm468, %v1028, %v1026
        %v1031 = vmul.f32 %v1030, %v474
        %v1032 = vmul.f32 %v1029, %v478
        %1033 = vrot.lane.b32.xlu0 %v999, 127
        %v1034 = vpop.permute.xlu0 %1033
        %1035 = vrot.lane.b32.xlu0 %v1000, 127
        %v1036 = vpop.permute.xlu0 %1035
        %v1037 = vsel %vm489, %v1034, %v1036
        %v1038 = vsel %vm489, %v1036, %v1034
        %v1039 = vmul.f32 %v1037, %v495
        %v1040 = vmul.f32 %v1038, %v499
        %1041 = vrot.lane.b32.xlu0 %v999, 113
        %v1042 = vpop.permute.xlu0 %1041
        %1043 = vrot.lane.b32.xlu0 %v1000, 113
        %v1044 = vpop.permute.xlu0 %1043
        %v1045 = vsel %vm510, %v1042, %v1044
        %v1046 = vsel %vm510, %v1044, %v1042
        %v1047 = vmul.f32 %v1045, %v516
        %v1048 = vmul.f32 %v1046, %v520
        %1049 = vrot.lane.b32.xlu0 %v999, 112
        %v1050 = vpop.permute.xlu0 %1049
        %1051 = vrot.lane.b32.xlu0 %v1000, 112
        %v1052 = vpop.permute.xlu0 %1051
        %v1053 = vsel %vm531, %v1050, %v1052
        %v1054 = vsel %vm531, %v1052, %v1050
        %v1055 = vmul.f32 %v1053, %v537
        %v1056 = vmul.f32 %v1054, %v541
        %1057 = vrot.lane.b32.xlu0 %v999, 111
        %v1058 = vpop.permute.xlu0 %1057
        %1059 = vrot.lane.b32.xlu0 %v1000, 111
        %v1060 = vpop.permute.xlu0 %1059
        %v1061 = vsel %vm552, %v1058, %v1060
        %v1062 = vsel %vm552, %v1060, %v1058
        %v1063 = vmul.f32 %v1061, %v558
        %v1064 = vmul.f32 %v1062, %v562
        %1065 = vmatprep.subr.mxu0 %v1008
        %1066 = vmatpush1.msra.mxu0 %v1007
        %1067 = vmatprep.subr.mxu0 %v756
        %1068 = vmatpush1.msra.mxu0 %v755
        %1069 = vmatprep.subr.mxu0 %v1016
        %1070 = vmatpush1.msra.mxu0 %v1015
        %1071 = vmatprep.subr.mxu0 %v764
        %1072 = vmatpush1.msra.mxu0 %v763
        %1073 = vmatprep.subr.mxu0 %v1024
        %1074 = vmatpush1.msra.mxu0 %v1023
        %1075 = vmatprep.subr.mxu0 %v772
        %1076 = vmatpush1.msra.mxu0 %v771
        %1077 = vmatprep.subr.mxu0 %v1032
        %1078 = vmatpush1.msra.mxu0 %v1031
        %1079 = vmatprep.subr.mxu0 %v780
        %1080 = vmatpush1.msra.mxu0 %v779
        %1081 = vmatprep.subr.mxu0 %v1000
        %1082 = vmatpush1.msra.mxu0 %v999
        %1083 = vmatprep.subr.mxu0 %v748
        %1084 = vmatpush1.msra.mxu0 %v747
        %1085 = vmatprep.subr.mxu0 %v1040
        %1086 = vmatpush1.msra.mxu0 %v1039
        %1087 = vmatprep.subr.mxu0 %v788
        %1088 = vmatpush1.msra.mxu0 %v787
        %1089 = vmatprep.subr.mxu0 %v1048
        %1090 = vmatpush1.msra.mxu0 %v1047
        %1091 = vmatprep.subr.mxu0 %v796
        %1092 = vmatpush1.msra.mxu0 %v795
        %1093 = vmatprep.subr.mxu0 %v1056
        %1094 = vmatpush1.msra.mxu0 %v1055
        %1095 = vmatprep.subr.mxu0 %v804
        %1096 = vmatpush1.msra.mxu0 %v803
        %1097 = vmatprep.subr.mxu0 %v1064
        %1098 = vmatpush1.msra.mxu0 %v1063
        %1099 = vmatprep.subr.mxu0 %v812
        %1100 = vmatpush1.msra.mxu0 %v811
        %1101 = vmatprep.subr.mxu0 0.0
        %1102 = vmatpush1.msra.mxu0 0.0
        %1103 = vmatprep.subr.mxu0 0.0
        %1104 = vmatpush1.msra.mxu0 0.0
        %1105 = vmatprep.subr.mxu0 0.0
        %1106 = vmatpush1.msra.mxu0 0.0
        %1107 = vmatprep.subr.mxu0 0.0
        %1108 = vmatpush1.msra.mxu0 0.0
        %1109 = vmatprep.subr.mxu0 0.0
        %1110 = vmatpush1.msra.mxu0 0.0
        %1111 = vmatprep.subr.mxu0 0.0
        %1112 = vmatpush1.msra.mxu0 0.0
        %1113 = vmatprep.subr.mxu0 0.0
        %1114 = vmatpush1.msra.mxu0 0.0
        %1115 = vmatprep.subr.mxu0 0.0
        %1116 = vmatpush1.msra.mxu0 0.0
        %1117 = vmatprep.subr.mxu0 0.0
        %1118 = vmatpush1.msra.mxu0 0.0
        %1119 = vmatprep.subr.mxu0 0.0
        %1120 = vmatpush1.msra.mxu0 0.0
        %1121 = vmatprep.subr.mxu0 0.0
        %1122 = vmatpush1.msra.mxu0 0.0
        %1123 = vmatprep.subr.mxu0 0.0
        %1124 = vmatpush1.msra.mxu0 0.0
        %1125 = vmatprep.subr.mxu0 0.0
        %1126 = vmatpush1.msra.mxu0 0.0
        %1127 = vmatprep.subr.mxu0 0.0
        %1128 = vmatpush1.msra.mxu0 0.0
        %1129 = vmatprep.mubr.f32.mxu0 %v601
        %1130 = vmatmul.mubr.f32.gmra.mrb[0].mxu0 %v567
        %v1131 = vpop.f32.mrb[0].mxu0
        %v1132 = vadd.f32 %v582, %v1131
        %v1133 = vpop.f32.mrb[0].mxu0
        %v1134 = vadd.f32 %v582, %v1133
        %1135 = vmatprep.mubr.f32.mxu0 %v604
        %1136 = vmatmul.mubr.f32.gmra.mrb[0].mxu0 %v569
        %v1137 = vpop.f32.mrb[0].mxu0
        %v1138 = vadd.f32 %v587, %v1137
        %v1139 = vpop.f32.mrb[0].mxu0
        %v1140 = vadd.f32 %v587, %v1139
        %1141 = vmatprep.mubr.f32.mxu0 %v607
        %1142 = vmatmul.mubr.f32.gmra.mrb[0].mxu0 %v571
        %v1143 = vpop.f32.mrb[0].mxu0
        %v1144 = vadd.f32 %v592, %v1143
        %v1145 = vpop.f32.mrb[0].mxu0
        %v1146 = vadd.f32 %v592, %v1145
        %1147 = vmatprep.mubr.f32.mxu0 %v610
        %1148 = vmatmul.mubr.f32.gmra.mrb[0].mxu0 %v573
        %v1149 = vpop.f32.mrb[0].mxu0
        %v1150 = vadd.f32 %v597, %v1149
        %v1151 = vpop.f32.mrb[0].mxu0
        %v1152 = vadd.f32 %v597, %v1151
        %1153 = vdwg.mxu0
        %v1154 = vxor.u32 %v1132, 2147483648
        %v1155 = vxor.u32 %v1134, 2147483648
        %v1156 = vmul.f32 %v1154, 1.442695
        %v1157 = vpow.pop %v1156
        %v1158 = vmul.f32 %v1155, 1.442695
        %v1159 = vpow.pop %v1158
        %v1160 = vadd.f32 %v1157, 1.0
        %v1161 = vadd.f32 %v1159, 1.0
        %v1162 = vrcp.pop %v1160
        %v1163 = vmul.f32 1.0, %v1162
        %v1164 = vrcp.pop %v1161
        %v1165 = vmul.f32 1.0, %v1164
        %v1166 = vxor.u32 %v1138, 2147483648
        %v1167 = vxor.u32 %v1140, 2147483648
        %v1168 = vmul.f32 %v1166, 1.442695
        %v1169 = vpow.pop %v1168
        %v1170 = vmul.f32 %v1167, 1.442695
        %v1171 = vpow.pop %v1170
        %v1172 = vadd.f32 %v1169, 1.0
        %v1173 = vadd.f32 %v1171, 1.0
        %v1174 = vrcp.pop %v1172
        %v1175 = vmul.f32 1.0, %v1174
        %v1176 = vrcp.pop %v1173
        %v1177 = vmul.f32 1.0, %v1176
        %v1178 = vtanh.pop %v1144
        %v1179 = vtanh.pop %v1146
        %v1180 = vxor.u32 %v1150, 2147483648
        %v1181 = vxor.u32 %v1152, 2147483648
        %v1182 = vmul.f32 %v1180, 1.442695
        %v1183 = vpow.pop %v1182
        %v1184 = vmul.f32 %v1181, 1.442695
        %v1185 = vpow.pop %v1184
        %v1186 = vadd.f32 %v1183, 1.0
        %v1187 = vadd.f32 %v1185, 1.0
        %v1188 = vrcp.pop %v1186
        %v1189 = vmul.f32 1.0, %v1188
        %v1190 = vrcp.pop %v1187
        %v1191 = vmul.f32 1.0, %v1190
        %v1192 = vmul.f32 %v1175, %v743
        %v1193 = vmul.f32 %v1177, %v744
        %v1194 = vmul.f32 %v1163, %v1178
        %v1195 = vmul.f32 %v1165, %v1179
        %v1196 = vadd.f32 %v1192, %v1194
        %v1197 = vadd.f32 %v1193, %v1195
        %v1198 = vtanh.pop %v1196
        %v1199 = vtanh.pop %v1197
        %v1200 = vmul.f32 %v1189, %v1198
        %v1201 = vmul.f32 %v1191, %v1199
        %1202 = vrot.lane.b32.xlu0 %v1200, 17
        %v1203 = vpop.permute.xlu0 %1202
        %1204 = vrot.lane.b32.xlu0 %v992, 17
        %v1205 = vpop.permute.xlu0 %1204
        %1206 = vrot.lane.b32.xlu0 %v1201, 17
        %v1207 = vpop.permute.xlu0 %1206
        %1208 = vrot.lane.b32.xlu0 %v993, 17
        %v1209 = vpop.permute.xlu0 %1208
        %v1210 = vsel %vm405, %v1203, %v1207
        %v1211 = vsel %vm405, %v1205, %v1209
        %v1212 = vsel %vm405, %v1207, %v1203
        %v1213 = vsel %vm405, %v1209, %v1205
        %v1214 = vmul.f32 %v1212, %v411
        %v1215 = vmul.f32 %v1210, %v415
        %v1216 = vmul.f32 %v1213, %v411
        %v1217 = vmul.f32 %v1211, %v415
        %1218 = vrot.lane.b32.xlu0 %v1200, 16
        %v1219 = vpop.permute.xlu0 %1218
        %1220 = vrot.lane.b32.xlu0 %v992, 16
        %v1221 = vpop.permute.xlu0 %1220
        %1222 = vrot.lane.b32.xlu0 %v1201, 16
        %v1223 = vpop.permute.xlu0 %1222
        %1224 = vrot.lane.b32.xlu0 %v993, 16
        %v1225 = vpop.permute.xlu0 %1224
        %v1226 = vsel %vm426, %v1219, %v1223
        %v1227 = vsel %vm426, %v1221, %v1225
        %v1228 = vsel %vm426, %v1223, %v1219
        %v1229 = vsel %vm426, %v1225, %v1221
        %v1230 = vmul.f32 %v1228, %v432
        %v1231 = vmul.f32 %v1226, %v436
        %v1232 = vmul.f32 %v1229, %v432
        %v1233 = vmul.f32 %v1227, %v436
        %1234 = vrot.lane.b32.xlu0 %v1200, 15
        %v1235 = vpop.permute.xlu0 %1234
        %1236 = vrot.lane.b32.xlu0 %v992, 15
        %v1237 = vpop.permute.xlu0 %1236
        %1238 = vrot.lane.b32.xlu0 %v1201, 15
        %v1239 = vpop.permute.xlu0 %1238
        %1240 = vrot.lane.b32.xlu0 %v993, 15
        %v1241 = vpop.permute.xlu0 %1240
        %v1242 = vsel %vm447, %v1235, %v1239
        %v1243 = vsel %vm447, %v1237, %v1241
        %v1244 = vsel %vm447, %v1239, %v1235
        %v1245 = vsel %vm447, %v1241, %v1237
        %v1246 = vmul.f32 %v1244, %v453
        %v1247 = vmul.f32 %v1242, %v457
        %v1248 = vmul.f32 %v1245, %v453
        %v1249 = vmul.f32 %v1243, %v457
        %1250 = vrot.lane.b32.xlu0 %v1200, 1
        %v1251 = vpop.permute.xlu0 %1250
        %1252 = vrot.lane.b32.xlu0 %v992, 1
        %v1253 = vpop.permute.xlu0 %1252
        %1254 = vrot.lane.b32.xlu0 %v1201, 1
        %v1255 = vpop.permute.xlu0 %1254
        %1256 = vrot.lane.b32.xlu0 %v993, 1
        %v1257 = vpop.permute.xlu0 %1256
        %v1258 = vsel %vm468, %v1251, %v1255
        %v1259 = vsel %vm468, %v1253, %v1257
        %v1260 = vsel %vm468, %v1255, %v1251
        %v1261 = vsel %vm468, %v1257, %v1253
        %v1262 = vmul.f32 %v1260, %v474
        %v1263 = vmul.f32 %v1258, %v478
        %v1264 = vmul.f32 %v1261, %v474
        %v1265 = vmul.f32 %v1259, %v478
        %1266 = vrot.lane.b32.xlu0 %v1200, 127
        %v1267 = vpop.permute.xlu0 %1266
        %1268 = vrot.lane.b32.xlu0 %v992, 127
        %v1269 = vpop.permute.xlu0 %1268
        %1270 = vrot.lane.b32.xlu0 %v1201, 127
        %v1271 = vpop.permute.xlu0 %1270
        %1272 = vrot.lane.b32.xlu0 %v993, 127
        %v1273 = vpop.permute.xlu0 %1272
        %v1274 = vsel %vm489, %v1267, %v1271
        %v1275 = vsel %vm489, %v1269, %v1273
        %v1276 = vsel %vm489, %v1271, %v1267
        %v1277 = vsel %vm489, %v1273, %v1269
        %v1278 = vmul.f32 %v1274, %v495
        %v1279 = vmul.f32 %v1276, %v499
        %v1280 = vmul.f32 %v1275, %v495
        %v1281 = vmul.f32 %v1277, %v499
        %1282 = vrot.lane.b32.xlu0 %v1200, 113
        %v1283 = vpop.permute.xlu0 %1282
        %1284 = vrot.lane.b32.xlu0 %v992, 113
        %v1285 = vpop.permute.xlu0 %1284
        %1286 = vrot.lane.b32.xlu0 %v1201, 113
        %v1287 = vpop.permute.xlu0 %1286
        %1288 = vrot.lane.b32.xlu0 %v993, 113
        %v1289 = vpop.permute.xlu0 %1288
        %v1290 = vsel %vm510, %v1283, %v1287
        %v1291 = vsel %vm510, %v1285, %v1289
        %v1292 = vsel %vm510, %v1287, %v1283
        %v1293 = vsel %vm510, %v1289, %v1285
        %v1294 = vmul.f32 %v1290, %v516
        %v1295 = vmul.f32 %v1292, %v520
        %v1296 = vmul.f32 %v1291, %v516
        %v1297 = vmul.f32 %v1293, %v520
        %1298 = vrot.lane.b32.xlu0 %v1200, 112
        %v1299 = vpop.permute.xlu0 %1298
        %1300 = vrot.lane.b32.xlu0 %v992, 112
        %v1301 = vpop.permute.xlu0 %1300
        %1302 = vrot.lane.b32.xlu0 %v1201, 112
        %v1303 = vpop.permute.xlu0 %1302
        %1304 = vrot.lane.b32.xlu0 %v993, 112
        %v1305 = vpop.permute.xlu0 %1304
        %v1306 = vsel %vm531, %v1299, %v1303
        %v1307 = vsel %vm531, %v1301, %v1305
        %v1308 = vsel %vm531, %v1303, %v1299
        %v1309 = vsel %vm531, %v1305, %v1301
        %v1310 = vmul.f32 %v1306, %v537
        %v1311 = vmul.f32 %v1308, %v541
        %v1312 = vmul.f32 %v1307, %v537
        %v1313 = vmul.f32 %v1309, %v541
        %1314 = vrot.lane.b32.xlu0 %v1200, 111
        %v1315 = vpop.permute.xlu0 %1314
        %1316 = vrot.lane.b32.xlu0 %v992, 111
        %v1317 = vpop.permute.xlu0 %1316
        %1318 = vrot.lane.b32.xlu0 %v1201, 111
        %v1319 = vpop.permute.xlu0 %1318
        %1320 = vrot.lane.b32.xlu0 %v993, 111
        %v1321 = vpop.permute.xlu0 %1320
        %v1322 = vsel %vm552, %v1315, %v1319
        %v1323 = vsel %vm552, %v1317, %v1321
        %v1324 = vsel %vm552, %v1319, %v1315
        %v1325 = vsel %vm552, %v1321, %v1317
        %v1326 = vmul.f32 %v1322, %v558
        %v1327 = vmul.f32 %v1324, %v562
        %v1328 = vmul.f32 %v1323, %v558
        %v1329 = vmul.f32 %v1325, %v562
        %1330 = vmatprep.subr.mxu0 %v1215
        %1331 = vmatpush1.msra.mxu0 %v1214
        %1332 = vmatprep.subr.mxu0 %v1217
        %1333 = vmatpush1.msra.mxu0 %v1216
        %1334 = vmatprep.subr.mxu0 %v1231
        %1335 = vmatpush1.msra.mxu0 %v1230
        %1336 = vmatprep.subr.mxu0 %v1233
        %1337 = vmatpush1.msra.mxu0 %v1232
        %1338 = vmatprep.subr.mxu0 %v1247
        %1339 = vmatpush1.msra.mxu0 %v1246
        %1340 = vmatprep.subr.mxu0 %v1249
        %1341 = vmatpush1.msra.mxu0 %v1248
        %1342 = vmatprep.subr.mxu0 %v1263
        %1343 = vmatpush1.msra.mxu0 %v1262
        %1344 = vmatprep.subr.mxu0 %v1265
        %1345 = vmatpush1.msra.mxu0 %v1264
        %1346 = vmatprep.subr.mxu0 %v1201
        %1347 = vmatpush1.msra.mxu0 %v1200
        %1348 = vmatprep.subr.mxu0 %v993
        %1349 = vmatpush1.msra.mxu0 %v992
        %1350 = vmatprep.subr.mxu0 %v1279
        %1351 = vmatpush1.msra.mxu0 %v1278
        %1352 = vmatprep.subr.mxu0 %v1281
        %1353 = vmatpush1.msra.mxu0 %v1280
        %1354 = vmatprep.subr.mxu0 %v1295
        %1355 = vmatpush1.msra.mxu0 %v1294
        %1356 = vmatprep.subr.mxu0 %v1297
        %1357 = vmatpush1.msra.mxu0 %v1296
        %1358 = vmatprep.subr.mxu0 %v1311
        %1359 = vmatpush1.msra.mxu0 %v1310
        %1360 = vmatprep.subr.mxu0 %v1313
        %1361 = vmatpush1.msra.mxu0 %v1312
        %1362 = vmatprep.subr.mxu0 %v1327
        %1363 = vmatpush1.msra.mxu0 %v1326
        %1364 = vmatprep.subr.mxu0 %v1329
        %1365 = vmatpush1.msra.mxu0 %v1328
        %1366 = vmatprep.subr.mxu0 0.0
        %1367 = vmatpush1.msra.mxu0 0.0
        %1368 = vmatprep.subr.mxu0 0.0
        %1369 = vmatpush1.msra.mxu0 0.0
        %1370 = vmatprep.subr.mxu0 0.0
        %1371 = vmatpush1.msra.mxu0 0.0
        %1372 = vmatprep.subr.mxu0 0.0
        %1373 = vmatpush1.msra.mxu0 0.0
        %1374 = vmatprep.subr.mxu0 0.0
        %1375 = vmatpush1.msra.mxu0 0.0
        %1376 = vmatprep.subr.mxu0 0.0
        %1377 = vmatpush1.msra.mxu0 0.0
        %1378 = vmatprep.subr.mxu0 0.0
        %1379 = vmatpush1.msra.mxu0 0.0
        %1380 = vmatprep.subr.mxu0 0.0
        %1381 = vmatpush1.msra.mxu0 0.0
        %1382 = vmatprep.subr.mxu0 0.0
        %1383 = vmatpush1.msra.mxu0 0.0
        %1384 = vmatprep.subr.mxu0 0.0
        %1385 = vmatpush1.msra.mxu0 0.0
        %1386 = vmatprep.subr.mxu0 0.0
        %1387 = vmatpush1.msra.mxu0 0.0
        %1388 = vmatprep.subr.mxu0 0.0
        %1389 = vmatpush1.msra.mxu0 0.0
        %1390 = vmatprep.subr.mxu0 0.0
        %1391 = vmatpush1.msra.mxu0 0.0
        %1392 = vmatprep.subr.mxu0 0.0
        %1393 = vmatpush1.msra.mxu0 0.0
        %1394 = vmatprep.mubr.f32.mxu0 %v846
        %1395 = vmatmul.mubr.f32.gmra.mrb[0].mxu0 %v813
        %v1396 = vpop.f32.mrb[0].mxu0
        %v1397 = vadd.f32 %v828, %v1396
        %v1398 = vpop.f32.mrb[0].mxu0
        %v1399 = vadd.f32 %v828, %v1398
        %1400 = vmatprep.mubr.f32.mxu0 %v849
        %1401 = vmatmul.mubr.f32.gmra.mrb[0].mxu0 %v815
        %v1402 = vpop.f32.mrb[0].mxu0
        %v1403 = vadd.f32 %v833, %v1402
        %v1404 = vpop.f32.mrb[0].mxu0
        %v1405 = vadd.f32 %v833, %v1404
        %1406 = vmatprep.mubr.f32.mxu0 %v852
        %1407 = vmatmul.mubr.f32.gmra.mrb[0].mxu0 %v817
        %v1408 = vpop.f32.mrb[0].mxu0
        %v1409 = vadd.f32 %v838, %v1408
        %v1410 = vpop.f32.mrb[0].mxu0
        %v1411 = vadd.f32 %v838, %v1410
        %1412 = vmatprep.mubr.f32.mxu0 %v855
        %1413 = vmatmul.mubr.f32.gmra.mrb[0].mxu0 %v819
        %v1414 = vpop.f32.mrb[0].mxu0
        %v1415 = vadd.f32 %v843, %v1414
        %v1416 = vpop.f32.mrb[0].mxu0
        %v1417 = vadd.f32 %v843, %v1416
        %1418 = vdwg.mxu0
        %v1419 = vxor.u32 %v1397, 2147483648
        %v1420 = vxor.u32 %v1399, 2147483648
        %v1421 = vmul.f32 %v1419, 1.442695
        %v1422 = vpow.pop %v1421
        %v1423 = vmul.f32 %v1420, 1.442695
        %v1424 = vpow.pop %v1423
        %v1425 = vadd.f32 %v1422, 1.0
        %v1426 = vadd.f32 %v1424, 1.0
        %v1427 = vrcp.pop %v1425
        %v1428 = vmul.f32 1.0, %v1427
        %v1429 = vrcp.pop %v1426
        %v1430 = vmul.f32 1.0, %v1429
        %v1431 = vxor.u32 %v1403, 2147483648
        %v1432 = vxor.u32 %v1405, 2147483648
        %v1433 = vmul.f32 %v1431, 1.442695
        %v1434 = vpow.pop %v1433
        %v1435 = vmul.f32 %v1432, 1.442695
        %v1436 = vpow.pop %v1435
        %v1437 = vadd.f32 %v1434, 1.0
        %v1438 = vadd.f32 %v1436, 1.0
        %v1439 = vrcp.pop %v1437
        %v1440 = vmul.f32 1.0, %v1439
        %v1441 = vrcp.pop %v1438
        %v1442 = vmul.f32 1.0, %v1441
        %v1443 = vtanh.pop %v1409
        %v1444 = vtanh.pop %v1411
        %v1445 = vxor.u32 %v1415, 2147483648
        %v1446 = vxor.u32 %v1417, 2147483648
        %v1447 = vmul.f32 %v1445, 1.442695
        %v1448 = vpow.pop %v1447
        %v1449 = vmul.f32 %v1446, 1.442695
        %v1450 = vpow.pop %v1449
        %v1451 = vadd.f32 %v1448, 1.0
        %v1452 = vadd.f32 %v1450, 1.0
        %v1453 = vrcp.pop %v1451
        %v1454 = vmul.f32 1.0, %v1453
        %v1455 = vrcp.pop %v1452
        %v1456 = vmul.f32 1.0, %v1455
        %v1457 = vmul.f32 %v1440, %v988
        %v1458 = vmul.f32 %v1442, %v989
        %v1459 = vmul.f32 %v1428, %v1443
        %v1460 = vmul.f32 %v1430, %v1444
        %v1461 = vadd.f32 %v1457, %v1459
        %v1462 = vadd.f32 %v1458, %v1460
        %v1463 = vtanh.pop %v1461
        %v1464 = vtanh.pop %v1462
        %v1465 = vmul.f32 %v1454, %v1463
        %v1466 = vmul.f32 %v1456, %v1464
        %s1467 = scalar_lea.vmem %s385, 16
        %v1468 = vld [vmem:[%s1467] sm:$0xff]
        %v1470 = vcombine.high %v1468, %v1468
        %v1472 = vsel %vm394, %v1468, 0.0
        %v1473 = vsel %vm394, %v1470, 0.0
        %1474 = vrot.lane.b32.xlu0 %v1472, 17
        %v1475 = vpop.permute.xlu0 %1474
        %1476 = vrot.lane.b32.xlu0 %v1473, 17
        %v1477 = vpop.permute.xlu0 %1476
        %v1478 = vsel %vm405, %v1475, %v1477
        %v1479 = vsel %vm405, %v1477, %v1475
        %v1480 = vmul.f32 %v1479, %v411
        %v1481 = vmul.f32 %v1478, %v415
        %1482 = vrot.lane.b32.xlu0 %v1472, 16
        %v1483 = vpop.permute.xlu0 %1482
        %1484 = vrot.lane.b32.xlu0 %v1473, 16
        %v1485 = vpop.permute.xlu0 %1484
        %v1486 = vsel %vm426, %v1483, %v1485
        %v1487 = vsel %vm426, %v1485, %v1483
        %v1488 = vmul.f32 %v1487, %v432
        %v1489 = vmul.f32 %v1486, %v436
        %1490 = vrot.lane.b32.xlu0 %v1472, 15
        %v1491 = vpop.permute.xlu0 %1490
        %1492 = vrot.lane.b32.xlu0 %v1473, 15
        %v1493 = vpop.permute.xlu0 %1492
        %v1494 = vsel %vm447, %v1491, %v1493
        %v1495 = vsel %vm447, %v1493, %v1491
        %v1496 = vmul.f32 %v1495, %v453
        %v1497 = vmul.f32 %v1494, %v457
        %1498 = vrot.lane.b32.xlu0 %v1472, 1
        %v1499 = vpop.permute.xlu0 %1498
        %1500 = vrot.lane.b32.xlu0 %v1473, 1
        %v1501 = vpop.permute.xlu0 %1500
        %v1502 = vsel %vm468, %v1499, %v1501
        %v1503 = vsel %vm468, %v1501, %v1499
        %v1504 = vmul.f32 %v1503, %v474
        %v1505 = vmul.f32 %v1502, %v478
        %1506 = vrot.lane.b32.xlu0 %v1472, 127
        %v1507 = vpop.permute.xlu0 %1506
        %1508 = vrot.lane.b32.xlu0 %v1473, 127
        %v1509 = vpop.permute.xlu0 %1508
        %v1510 = vsel %vm489, %v1507, %v1509
        %v1511 = vsel %vm489, %v1509, %v1507
        %v1512 = vmul.f32 %v1510, %v495
        %v1513 = vmul.f32 %v1511, %v499
        %1514 = vrot.lane.b32.xlu0 %v1472, 113
        %v1515 = vpop.permute.xlu0 %1514
        %1516 = vrot.lane.b32.xlu0 %v1473, 113
        %v1517 = vpop.permute.xlu0 %1516
        %v1518 = vsel %vm510, %v1515, %v1517
        %v1519 = vsel %vm510, %v1517, %v1515
        %v1520 = vmul.f32 %v1518, %v516
        %v1521 = vmul.f32 %v1519, %v520
        %1522 = vrot.lane.b32.xlu0 %v1472, 112
        %v1523 = vpop.permute.xlu0 %1522
        %1524 = vrot.lane.b32.xlu0 %v1473, 112
        %v1525 = vpop.permute.xlu0 %1524
        %v1526 = vsel %vm531, %v1523, %v1525
        %v1527 = vsel %vm531, %v1525, %v1523
        %v1528 = vmul.f32 %v1526, %v537
        %v1529 = vmul.f32 %v1527, %v541
        %1530 = vrot.lane.b32.xlu0 %v1472, 111
        %v1531 = vpop.permute.xlu0 %1530
        %1532 = vrot.lane.b32.xlu0 %v1473, 111
        %v1533 = vpop.permute.xlu0 %1532
        %v1534 = vsel %vm552, %v1531, %v1533
        %v1535 = vsel %vm552, %v1533, %v1531
        %v1536 = vmul.f32 %v1534, %v558
        %v1537 = vmul.f32 %v1535, %v562
        %1538 = vmatprep.subr.mxu0 %v1481
        %1539 = vmatpush1.msra.mxu0 %v1480
        %1540 = vmatprep.subr.mxu0 %v1215
        %1541 = vmatpush1.msra.mxu0 %v1214
        %1542 = vmatprep.subr.mxu0 %v1489
        %1543 = vmatpush1.msra.mxu0 %v1488
        %1544 = vmatprep.subr.mxu0 %v1231
        %1545 = vmatpush1.msra.mxu0 %v1230
        %1546 = vmatprep.subr.mxu0 %v1497
        %1547 = vmatpush1.msra.mxu0 %v1496
        %1548 = vmatprep.subr.mxu0 %v1247
        %1549 = vmatpush1.msra.mxu0 %v1246
        %1550 = vmatprep.subr.mxu0 %v1505
        %1551 = vmatpush1.msra.mxu0 %v1504
        %1552 = vmatprep.subr.mxu0 %v1263
        %1553 = vmatpush1.msra.mxu0 %v1262
        %1554 = vmatprep.subr.mxu0 %v1473
        %1555 = vmatpush1.msra.mxu0 %v1472
        %1556 = vmatprep.subr.mxu0 %v1201
        %1557 = vmatpush1.msra.mxu0 %v1200
        %1558 = vmatprep.subr.mxu0 %v1513
        %1559 = vmatpush1.msra.mxu0 %v1512
        %1560 = vmatprep.subr.mxu0 %v1279
        %1561 = vmatpush1.msra.mxu0 %v1278
        %1562 = vmatprep.subr.mxu0 %v1521
        %1563 = vmatpush1.msra.mxu0 %v1520
        %1564 = vmatprep.subr.mxu0 %v1295
        %1565 = vmatpush1.msra.mxu0 %v1294
        %1566 = vmatprep.subr.mxu0 %v1529
        %1567 = vmatpush1.msra.mxu0 %v1528
        %1568 = vmatprep.subr.mxu0 %v1311
        %1569 = vmatpush1.msra.mxu0 %v1310
        %1570 = vmatprep.subr.mxu0 %v1537
        %1571 = vmatpush1.msra.mxu0 %v1536
        %1572 = vmatprep.subr.mxu0 %v1327
        %1573 = vmatpush1.msra.mxu0 %v1326
        %1574 = vmatprep.subr.mxu0 0.0
        %1575 = vmatpush1.msra.mxu0 0.0
        %1576 = vmatprep.subr.mxu0 0.0
        %1577 = vmatpush1.msra.mxu0 0.0
        %1578 = vmatprep.subr.mxu0 0.0
        %1579 = vmatpush1.msra.mxu0 0.0
        %1580 = vmatprep.subr.mxu0 0.0
        %1581 = vmatpush1.msra.mxu0 0.0
        %1582 = vmatprep.subr.mxu0 0.0
        %1583 = vmatpush1.msra.mxu0 0.0
        %1584 = vmatprep.subr.mxu0 0.0
        %1585 = vmatpush1.msra.mxu0 0.0
        %1586 = vmatprep.subr.mxu0 0.0
        %1587 = vmatpush1.msra.mxu0 0.0
        %1588 = vmatprep.subr.mxu0 0.0
        %1589 = vmatpush1.msra.mxu0 0.0
        %1590 = vmatprep.subr.mxu0 0.0
        %1591 = vmatpush1.msra.mxu0 0.0
        %1592 = vmatprep.subr.mxu0 0.0
        %1593 = vmatpush1.msra.mxu0 0.0
        %1594 = vmatprep.subr.mxu0 0.0
        %1595 = vmatpush1.msra.mxu0 0.0
        %1596 = vmatprep.subr.mxu0 0.0
        %1597 = vmatpush1.msra.mxu0 0.0
        %1598 = vmatprep.subr.mxu0 0.0
        %1599 = vmatpush1.msra.mxu0 0.0
        %1600 = vmatprep.subr.mxu0 0.0
        %1601 = vmatpush1.msra.mxu0 0.0
        %1602 = vmatprep.mubr.f32.mxu0 %v601
        %1603 = vmatmul.mubr.f32.gmra.mrb[0].mxu0 %v567
        %v1604 = vpop.f32.mrb[0].mxu0
        %v1605 = vadd.f32 %v582, %v1604
        %v1606 = vpop.f32.mrb[0].mxu0
        %v1607 = vadd.f32 %v582, %v1606
        %1608 = vmatprep.mubr.f32.mxu0 %v604
        %1609 = vmatmul.mubr.f32.gmra.mrb[0].mxu0 %v569
        %v1610 = vpop.f32.mrb[0].mxu0
        %v1611 = vadd.f32 %v587, %v1610
        %v1612 = vpop.f32.mrb[0].mxu0
        %v1613 = vadd.f32 %v587, %v1612
        %1614 = vmatprep.mubr.f32.mxu0 %v607
        %1615 = vmatmul.mubr.f32.gmra.mrb[0].mxu0 %v571
        %v1616 = vpop.f32.mrb[0].mxu0
        %v1617 = vadd.f32 %v592, %v1616
        %v1618 = vpop.f32.mrb[0].mxu0
        %v1619 = vadd.f32 %v592, %v1618
        %1620 = vmatprep.mubr.f32.mxu0 %v610
        %1621 = vmatmul.mubr.f32.gmra.mrb[0].mxu0 %v573
        %v1622 = vpop.f32.mrb[0].mxu0
        %v1623 = vadd.f32 %v597, %v1622
        %v1624 = vpop.f32.mrb[0].mxu0
        %v1625 = vadd.f32 %v597, %v1624
        %1626 = vdwg.mxu0
        %v1627 = vxor.u32 %v1605, 2147483648
        %v1628 = vxor.u32 %v1607, 2147483648
        %v1629 = vmul.f32 %v1627, 1.442695
        %v1630 = vpow.pop %v1629
        %v1631 = vmul.f32 %v1628, 1.442695
        %v1632 = vpow.pop %v1631
        %v1633 = vadd.f32 %v1630, 1.0
        %v1634 = vadd.f32 %v1632, 1.0
        %v1635 = vrcp.pop %v1633
        %v1636 = vmul.f32 1.0, %v1635
        %v1637 = vrcp.pop %v1634
        %v1638 = vmul.f32 1.0, %v1637
        %v1639 = vxor.u32 %v1611, 2147483648
        %v1640 = vxor.u32 %v1613, 2147483648
        %v1641 = vmul.f32 %v1639, 1.442695
        %v1642 = vpow.pop %v1641
        %v1643 = vmul.f32 %v1640, 1.442695
        %v1644 = vpow.pop %v1643
        %v1645 = vadd.f32 %v1642, 1.0
        %v1646 = vadd.f32 %v1644, 1.0
        %v1647 = vrcp.pop %v1645
        %v1648 = vmul.f32 1.0, %v1647
        %v1649 = vrcp.pop %v1646
        %v1650 = vmul.f32 1.0, %v1649
        %v1651 = vtanh.pop %v1617
        %v1652 = vtanh.pop %v1619
        %v1653 = vxor.u32 %v1623, 2147483648
        %v1654 = vxor.u32 %v1625, 2147483648
        %v1655 = vmul.f32 %v1653, 1.442695
        %v1656 = vpow.pop %v1655
        %v1657 = vmul.f32 %v1654, 1.442695
        %v1658 = vpow.pop %v1657
        %v1659 = vadd.f32 %v1656, 1.0
        %v1660 = vadd.f32 %v1658, 1.0
        %v1661 = vrcp.pop %v1659
        %v1662 = vmul.f32 1.0, %v1661
        %v1663 = vrcp.pop %v1660
        %v1664 = vmul.f32 1.0, %v1663
        %v1665 = vmul.f32 %v1648, %v1196
        %v1666 = vmul.f32 %v1650, %v1197
        %v1667 = vmul.f32 %v1636, %v1651
        %v1668 = vmul.f32 %v1638, %v1652
        %v1669 = vadd.f32 %v1665, %v1667
        %v1670 = vadd.f32 %v1666, %v1668
        %v1671 = vtanh.pop %v1669
        %v1672 = vtanh.pop %v1670
        %v1673 = vmul.f32 %v1662, %v1671
        %v1674 = vmul.f32 %v1664, %v1672
        %1675 = vrot.lane.b32.xlu0 %v1673, 17
        %v1676 = vpop.permute.xlu0 %1675
        %1677 = vrot.lane.b32.xlu0 %v1465, 17
        %v1678 = vpop.permute.xlu0 %1677
        %1679 = vrot.lane.b32.xlu0 %v1674, 17
        %v1680 = vpop.permute.xlu0 %1679
        %1681 = vrot.lane.b32.xlu0 %v1466, 17
        %v1682 = vpop.permute.xlu0 %1681
        %v1683 = vsel %vm405, %v1676, %v1680
        %v1684 = vsel %vm405, %v1678, %v1682
        %v1685 = vsel %vm405, %v1680, %v1676
        %v1686 = vsel %vm405, %v1682, %v1678
        %v1687 = vmul.f32 %v1685, %v411
        %v1688 = vmul.f32 %v1683, %v415
        %v1689 = vmul.f32 %v1686, %v411
        %v1690 = vmul.f32 %v1684, %v415
        %1691 = vrot.lane.b32.xlu0 %v1673, 16
        %v1692 = vpop.permute.xlu0 %1691
        %1693 = vrot.lane.b32.xlu0 %v1465, 16
        %v1694 = vpop.permute.xlu0 %1693
        %1695 = vrot.lane.b32.xlu0 %v1674, 16
        %v1696 = vpop.permute.xlu0 %1695
        %1697 = vrot.lane.b32.xlu0 %v1466, 16
        %v1698 = vpop.permute.xlu0 %1697
        %v1699 = vsel %vm426, %v1692, %v1696
        %v1700 = vsel %vm426, %v1694, %v1698
        %v1701 = vsel %vm426, %v1696, %v1692
        %v1702 = vsel %vm426, %v1698, %v1694
        %v1703 = vmul.f32 %v1701, %v432
        %v1704 = vmul.f32 %v1699, %v436
        %v1705 = vmul.f32 %v1702, %v432
        %v1706 = vmul.f32 %v1700, %v436
        %1707 = vrot.lane.b32.xlu0 %v1673, 15
        %v1708 = vpop.permute.xlu0 %1707
        %1709 = vrot.lane.b32.xlu0 %v1465, 15
        %v1710 = vpop.permute.xlu0 %1709
        %1711 = vrot.lane.b32.xlu0 %v1674, 15
        %v1712 = vpop.permute.xlu0 %1711
        %1713 = vrot.lane.b32.xlu0 %v1466, 15
        %v1714 = vpop.permute.xlu0 %1713
        %v1715 = vsel %vm447, %v1708, %v1712
        %v1716 = vsel %vm447, %v1710, %v1714
        %v1717 = vsel %vm447, %v1712, %v1708
        %v1718 = vsel %vm447, %v1714, %v1710
        %v1719 = vmul.f32 %v1717, %v453
        %v1720 = vmul.f32 %v1715, %v457
        %v1721 = vmul.f32 %v1718, %v453
        %v1722 = vmul.f32 %v1716, %v457
        %1723 = vrot.lane.b32.xlu0 %v1673, 1
        %v1724 = vpop.permute.xlu0 %1723
        %1725 = vrot.lane.b32.xlu0 %v1465, 1
        %v1726 = vpop.permute.xlu0 %1725
        %1727 = vrot.lane.b32.xlu0 %v1674, 1
        %v1728 = vpop.permute.xlu0 %1727
        %1729 = vrot.lane.b32.xlu0 %v1466, 1
        %v1730 = vpop.permute.xlu0 %1729
        %v1731 = vsel %vm468, %v1724, %v1728
        %v1732 = vsel %vm468, %v1726, %v1730
        %v1733 = vsel %vm468, %v1728, %v1724
        %v1734 = vsel %vm468, %v1730, %v1726
        %v1735 = vmul.f32 %v1733, %v474
        %v1736 = vmul.f32 %v1731, %v478
        %v1737 = vmul.f32 %v1734, %v474
        %v1738 = vmul.f32 %v1732, %v478
        %1739 = vrot.lane.b32.xlu0 %v1673, 127
        %v1740 = vpop.permute.xlu0 %1739
        %1741 = vrot.lane.b32.xlu0 %v1465, 127
        %v1742 = vpop.permute.xlu0 %1741
        %1743 = vrot.lane.b32.xlu0 %v1674, 127
        %v1744 = vpop.permute.xlu0 %1743
        %1745 = vrot.lane.b32.xlu0 %v1466, 127
        %v1746 = vpop.permute.xlu0 %1745
        %v1747 = vsel %vm489, %v1740, %v1744
        %v1748 = vsel %vm489, %v1742, %v1746
        %v1749 = vsel %vm489, %v1744, %v1740
        %v1750 = vsel %vm489, %v1746, %v1742
        %v1751 = vmul.f32 %v1747, %v495
        %v1752 = vmul.f32 %v1749, %v499
        %v1753 = vmul.f32 %v1748, %v495
        %v1754 = vmul.f32 %v1750, %v499
        %1755 = vrot.lane.b32.xlu0 %v1673, 113
        %v1756 = vpop.permute.xlu0 %1755
        %1757 = vrot.lane.b32.xlu0 %v1465, 113
        %v1758 = vpop.permute.xlu0 %1757
        %1759 = vrot.lane.b32.xlu0 %v1674, 113
        %v1760 = vpop.permute.xlu0 %1759
        %1761 = vrot.lane.b32.xlu0 %v1466, 113
        %v1762 = vpop.permute.xlu0 %1761
        %v1763 = vsel %vm510, %v1756, %v1760
        %v1764 = vsel %vm510, %v1758, %v1762
        %v1765 = vsel %vm510, %v1760, %v1756
        %v1766 = vsel %vm510, %v1762, %v1758
        %v1767 = vmul.f32 %v1763, %v516
        %v1768 = vmul.f32 %v1765, %v520
        %v1769 = vmul.f32 %v1764, %v516
        %v1770 = vmul.f32 %v1766, %v520
        %1771 = vrot.lane.b32.xlu0 %v1673, 112
        %v1772 = vpop.permute.xlu0 %1771
        %1773 = vrot.lane.b32.xlu0 %v1465, 112
        %v1774 = vpop.permute.xlu0 %1773
        %1775 = vrot.lane.b32.xlu0 %v1674, 112
        %v1776 = vpop.permute.xlu0 %1775
        %1777 = vrot.lane.b32.xlu0 %v1466, 112
        %v1778 = vpop.permute.xlu0 %1777
        %v1779 = vsel %vm531, %v1772, %v1776
        %v1780 = vsel %vm531, %v1774, %v1778
        %v1781 = vsel %vm531, %v1776, %v1772
        %v1782 = vsel %vm531, %v1778, %v1774
        %v1783 = vmul.f32 %v1779, %v537
        %v1784 = vmul.f32 %v1781, %v541
        %v1785 = vmul.f32 %v1780, %v537
        %v1786 = vmul.f32 %v1782, %v541
        %1787 = vrot.lane.b32.xlu0 %v1673, 111
        %v1788 = vpop.permute.xlu0 %1787
        %1789 = vrot.lane.b32.xlu0 %v1465, 111
        %v1790 = vpop.permute.xlu0 %1789
        %1791 = vrot.lane.b32.xlu0 %v1674, 111
        %v1792 = vpop.permute.xlu0 %1791
        %1793 = vrot.lane.b32.xlu0 %v1466, 111
        %v1794 = vpop.permute.xlu0 %1793
        %v1795 = vsel %vm552, %v1788, %v1792
        %v1796 = vsel %vm552, %v1790, %v1794
        %v1797 = vsel %vm552, %v1792, %v1788
        %v1798 = vsel %vm552, %v1794, %v1790
        %v1799 = vmul.f32 %v1795, %v558
        %v1800 = vmul.f32 %v1797, %v562
        %v1801 = vmul.f32 %v1796, %v558
        %v1802 = vmul.f32 %v1798, %v562
        %1803 = vmatprep.subr.mxu0 %v1688
        %1804 = vmatpush1.msra.mxu0 %v1687
        %1805 = vmatprep.subr.mxu0 %v1690
        %1806 = vmatpush1.msra.mxu0 %v1689
        %1807 = vmatprep.subr.mxu0 %v1704
        %1808 = vmatpush1.msra.mxu0 %v1703
        %1809 = vmatprep.subr.mxu0 %v1706
        %1810 = vmatpush1.msra.mxu0 %v1705
        %1811 = vmatprep.subr.mxu0 %v1720
        %1812 = vmatpush1.msra.mxu0 %v1719
        %1813 = vmatprep.subr.mxu0 %v1722
        %1814 = vmatpush1.msra.mxu0 %v1721
        %1815 = vmatprep.subr.mxu0 %v1736
        %1816 = vmatpush1.msra.mxu0 %v1735
        %1817 = vmatprep.subr.mxu0 %v1738
        %1818 = vmatpush1.msra.mxu0 %v1737
        %1819 = vmatprep.subr.mxu0 %v1674
        %1820 = vmatpush1.msra.mxu0 %v1673
        %1821 = vmatprep.subr.mxu0 %v1466
        %1822 = vmatpush1.msra.mxu0 %v1465
        %1823 = vmatprep.subr.mxu0 %v1752
        %1824 = vmatpush1.msra.mxu0 %v1751
        %1825 = vmatprep.subr.mxu0 %v1754
        %1826 = vmatpush1.msra.mxu0 %v1753
        %1827 = vmatprep.subr.mxu0 %v1768
        %1828 = vmatpush1.msra.mxu0 %v1767
        %1829 = vmatprep.subr.mxu0 %v1770
        %1830 = vmatpush1.msra.mxu0 %v1769
        %1831 = vmatprep.subr.mxu0 %v1784
        %1832 = vmatpush1.msra.mxu0 %v1783
        %1833 = vmatprep.subr.mxu0 %v1786
        %1834 = vmatpush1.msra.mxu0 %v1785
        %1835 = vmatprep.subr.mxu0 %v1800
        %1836 = vmatpush1.msra.mxu0 %v1799
        %1837 = vmatprep.subr.mxu0 %v1802
        %1838 = vmatpush1.msra.mxu0 %v1801
        %1839 = vmatprep.subr.mxu0 0.0
        %1840 = vmatpush1.msra.mxu0 0.0
        %1841 = vmatprep.subr.mxu0 0.0
        %1842 = vmatpush1.msra.mxu0 0.0
        %1843 = vmatprep.subr.mxu0 0.0
        %1844 = vmatpush1.msra.mxu0 0.0
        %1845 = vmatprep.subr.mxu0 0.0
        %1846 = vmatpush1.msra.mxu0 0.0
        %1847 = vmatprep.subr.mxu0 0.0
        %1848 = vmatpush1.msra.mxu0 0.0
        %1849 = vmatprep.subr.mxu0 0.0
        %1850 = vmatpush1.msra.mxu0 0.0
        %1851 = vmatprep.subr.mxu0 0.0
        %1852 = vmatpush1.msra.mxu0 0.0
        %1853 = vmatprep.subr.mxu0 0.0
        %1854 = vmatpush1.msra.mxu0 0.0
        %1855 = vmatprep.subr.mxu0 0.0
        %1856 = vmatpush1.msra.mxu0 0.0
        %1857 = vmatprep.subr.mxu0 0.0
        %1858 = vmatpush1.msra.mxu0 0.0
        %1859 = vmatprep.subr.mxu0 0.0
        %1860 = vmatpush1.msra.mxu0 0.0
        %1861 = vmatprep.subr.mxu0 0.0
        %1862 = vmatpush1.msra.mxu0 0.0
        %1863 = vmatprep.subr.mxu0 0.0
        %1864 = vmatpush1.msra.mxu0 0.0
        %1865 = vmatprep.subr.mxu0 0.0
        %1866 = vmatpush1.msra.mxu0 0.0
        %1867 = vmatprep.mubr.f32.mxu0 %v846
        %1868 = vmatmul.mubr.f32.gmra.mrb[0].mxu0 %v813
        %v1869 = vpop.f32.mrb[0].mxu0
        %v1870 = vadd.f32 %v828, %v1869
        %v1871 = vpop.f32.mrb[0].mxu0
        %v1872 = vadd.f32 %v828, %v1871
        %1873 = vmatprep.mubr.f32.mxu0 %v849
        %1874 = vmatmul.mubr.f32.gmra.mrb[0].mxu0 %v815
        %v1875 = vpop.f32.mrb[0].mxu0
        %v1876 = vadd.f32 %v833, %v1875
        %v1877 = vpop.f32.mrb[0].mxu0
        %v1878 = vadd.f32 %v833, %v1877
        %1879 = vmatprep.mubr.f32.mxu0 %v852
        %1880 = vmatmul.mubr.f32.gmra.mrb[0].mxu0 %v817
        %v1881 = vpop.f32.mrb[0].mxu0
        %v1882 = vadd.f32 %v838, %v1881
        %v1883 = vpop.f32.mrb[0].mxu0
        %v1884 = vadd.f32 %v838, %v1883
        %1885 = vmatprep.mubr.f32.mxu0 %v855
        %1886 = vmatmul.mubr.f32.gmra.mrb[0].mxu0 %v819
        %v1887 = vpop.f32.mrb[0].mxu0
        %v1888 = vadd.f32 %v843, %v1887
        %v1889 = vpop.f32.mrb[0].mxu0
        %v1890 = vadd.f32 %v843, %v1889
        %1891 = vdwg.mxu0
        %v1892 = vxor.u32 %v1870, 2147483648
        %v1893 = vxor.u32 %v1872, 2147483648
        %v1894 = vmul.f32 %v1892, 1.442695
        %v1895 = vpow.pop %v1894
        %v1896 = vmul.f32 %v1893, 1.442695
        %v1897 = vpow.pop %v1896
        %v1898 = vadd.f32 %v1895, 1.0
        %v1899 = vadd.f32 %v1897, 1.0
        %v1900 = vrcp.pop %v1898
        %v1901 = vmul.f32 1.0, %v1900
        %v1902 = vrcp.pop %v1899
        %v1903 = vmul.f32 1.0, %v1902
        %v1904 = vxor.u32 %v1876, 2147483648
        %v1905 = vxor.u32 %v1878, 2147483648
        %v1906 = vmul.f32 %v1904, 1.442695
        %v1907 = vpow.pop %v1906
        %v1908 = vmul.f32 %v1905, 1.442695
        %v1909 = vpow.pop %v1908
        %v1910 = vadd.f32 %v1907, 1.0
        %v1911 = vadd.f32 %v1909, 1.0
        %v1912 = vrcp.pop %v1910
        %v1913 = vmul.f32 1.0, %v1912
        %v1914 = vrcp.pop %v1911
        %v1915 = vmul.f32 1.0, %v1914
        %v1916 = vtanh.pop %v1882
        %v1917 = vtanh.pop %v1884
        %v1918 = vxor.u32 %v1888, 2147483648
        %v1919 = vxor.u32 %v1890, 2147483648
        %v1920 = vmul.f32 %v1918, 1.442695
        %v1921 = vpow.pop %v1920
        %v1922 = vmul.f32 %v1919, 1.442695
        %v1923 = vpow.pop %v1922
        %v1924 = vadd.f32 %v1921, 1.0
        %v1925 = vadd.f32 %v1923, 1.0
        %v1926 = vrcp.pop %v1924
        %v1927 = vmul.f32 1.0, %v1926
        %v1928 = vrcp.pop %v1925
        %v1929 = vmul.f32 1.0, %v1928
        %v1930 = vmul.f32 %v1913, %v1461
        %v1931 = vmul.f32 %v1915, %v1462
        %v1932 = vmul.f32 %v1901, %v1916
        %v1933 = vmul.f32 %v1903, %v1917
        %v1934 = vadd.f32 %v1930, %v1932
        %v1935 = vadd.f32 %v1931, %v1933
        %v1936 = vtanh.pop %v1934
        %v1937 = vtanh.pop %v1935
        %v1938 = vmul.f32 %v1927, %v1936
        %v1939 = vmul.f32 %v1929, %v1937
        %s1940 = scalar_lea.vmem %s385, 24
        %v1941 = vld [vmem:[%s1940] sm:$0xff]
        %v1943 = vcombine.high %v1941, %v1941
        %v1945 = vsel %vm394, %v1941, 0.0
        %v1946 = vsel %vm394, %v1943, 0.0
        %1947 = vrot.lane.b32.xlu0 %v1945, 17
        %v1948 = vpop.permute.xlu0 %1947
        %1949 = vrot.lane.b32.xlu0 %v1946, 17
        %v1950 = vpop.permute.xlu0 %1949
        %v1951 = vsel %vm405, %v1948, %v1950
        %v1952 = vsel %vm405, %v1950, %v1948
        %v1953 = vmul.f32 %v1952, %v411
        %v1954 = vmul.f32 %v1951, %v415
        %1955 = vrot.lane.b32.xlu0 %v1945, 16
        %v1956 = vpop.permute.xlu0 %1955
        %1957 = vrot.lane.b32.xlu0 %v1946, 16
        %v1958 = vpop.permute.xlu0 %1957
        %v1959 = vsel %vm426, %v1956, %v1958
        %v1960 = vsel %vm426, %v1958, %v1956
        %v1961 = vmul.f32 %v1960, %v432
        %v1962 = vmul.f32 %v1959, %v436
        %1963 = vrot.lane.b32.xlu0 %v1945, 15
        %v1964 = vpop.permute.xlu0 %1963
        %1965 = vrot.lane.b32.xlu0 %v1946, 15
        %v1966 = vpop.permute.xlu0 %1965
        %v1967 = vsel %vm447, %v1964, %v1966
        %v1968 = vsel %vm447, %v1966, %v1964
        %v1969 = vmul.f32 %v1968, %v453
        %v1970 = vmul.f32 %v1967, %v457
        %1971 = vrot.lane.b32.xlu0 %v1945, 1
        %v1972 = vpop.permute.xlu0 %1971
        %1973 = vrot.lane.b32.xlu0 %v1946, 1
        %v1974 = vpop.permute.xlu0 %1973
        %v1975 = vsel %vm468, %v1972, %v1974
        %v1976 = vsel %vm468, %v1974, %v1972
        %v1977 = vmul.f32 %v1976, %v474
        %v1978 = vmul.f32 %v1975, %v478
        %1979 = vrot.lane.b32.xlu0 %v1945, 127
        %v1980 = vpop.permute.xlu0 %1979
        %1981 = vrot.lane.b32.xlu0 %v1946, 127
        %v1982 = vpop.permute.xlu0 %1981
        %v1983 = vsel %vm489, %v1980, %v1982
        %v1984 = vsel %vm489, %v1982, %v1980
        %v1985 = vmul.f32 %v1983, %v495
        %v1986 = vmul.f32 %v1984, %v499
        %1987 = vrot.lane.b32.xlu0 %v1945, 113
        %v1988 = vpop.permute.xlu0 %1987
        %1989 = vrot.lane.b32.xlu0 %v1946, 113
        %v1990 = vpop.permute.xlu0 %1989
        %v1991 = vsel %vm510, %v1988, %v1990
        %v1992 = vsel %vm510, %v1990, %v1988
        %v1993 = vmul.f32 %v1991, %v516
        %v1994 = vmul.f32 %v1992, %v520
        %1995 = vrot.lane.b32.xlu0 %v1945, 112
        %v1996 = vpop.permute.xlu0 %1995
        %1997 = vrot.lane.b32.xlu0 %v1946, 112
        %v1998 = vpop.permute.xlu0 %1997
        %v1999 = vsel %vm531, %v1996, %v1998
        %v2000 = vsel %vm531, %v1998, %v1996
        %v2001 = vmul.f32 %v1999, %v537
        %v2002 = vmul.f32 %v2000, %v541
        %2003 = vrot.lane.b32.xlu0 %v1945, 111
        %v2004 = vpop.permute.xlu0 %2003
        %2005 = vrot.lane.b32.xlu0 %v1946, 111
        %v2006 = vpop.permute.xlu0 %2005
        %v2007 = vsel %vm552, %v2004, %v2006
        %v2008 = vsel %vm552, %v2006, %v2004
        %v2009 = vmul.f32 %v2007, %v558
        %v2010 = vmul.f32 %v2008, %v562
        %2011 = vmatprep.subr.mxu0 %v1954
        %2012 = vmatpush1.msra.mxu0 %v1953
        %2013 = vmatprep.subr.mxu0 %v1688
        %2014 = vmatpush1.msra.mxu0 %v1687
        %2015 = vmatprep.subr.mxu0 %v1962
        %2016 = vmatpush1.msra.mxu0 %v1961
        %2017 = vmatprep.subr.mxu0 %v1704
        %2018 = vmatpush1.msra.mxu0 %v1703
        %2019 = vmatprep.subr.mxu0 %v1970
        %2020 = vmatpush1.msra.mxu0 %v1969
        %2021 = vmatprep.subr.mxu0 %v1720
        %2022 = vmatpush1.msra.mxu0 %v1719
        %2023 = vmatprep.subr.mxu0 %v1978
        %2024 = vmatpush1.msra.mxu0 %v1977
        %2025 = vmatprep.subr.mxu0 %v1736
        %2026 = vmatpush1.msra.mxu0 %v1735
        %2027 = vmatprep.subr.mxu0 %v1946
        %2028 = vmatpush1.msra.mxu0 %v1945
        %2029 = vmatprep.subr.mxu0 %v1674
        %2030 = vmatpush1.msra.mxu0 %v1673
        %2031 = vmatprep.subr.mxu0 %v1986
        %2032 = vmatpush1.msra.mxu0 %v1985
        %2033 = vmatprep.subr.mxu0 %v1752
        %2034 = vmatpush1.msra.mxu0 %v1751
        %2035 = vmatprep.subr.mxu0 %v1994
        %2036 = vmatpush1.msra.mxu0 %v1993
        %2037 = vmatprep.subr.mxu0 %v1768
        %2038 = vmatpush1.msra.mxu0 %v1767
        %2039 = vmatprep.subr.mxu0 %v2002
        %2040 = vmatpush1.msra.mxu0 %v2001
        %2041 = vmatprep.subr.mxu0 %v1784
        %2042 = vmatpush1.msra.mxu0 %v1783
        %2043 = vmatprep.subr.mxu0 %v2010
        %2044 = vmatpush1.msra.mxu0 %v2009
        %2045 = vmatprep.subr.mxu0 %v1800
        %2046 = vmatpush1.msra.mxu0 %v1799
        %2047 = vmatprep.subr.mxu0 0.0
        %2048 = vmatpush1.msra.mxu0 0.0
        %2049 = vmatprep.subr.mxu0 0.0
        %2050 = vmatpush1.msra.mxu0 0.0
        %2051 = vmatprep.subr.mxu0 0.0
        %2052 = vmatpush1.msra.mxu0 0.0
        %2053 = vmatprep.subr.mxu0 0.0
        %2054 = vmatpush1.msra.mxu0 0.0
        %2055 = vmatprep.subr.mxu0 0.0
        %2056 = vmatpush1.msra.mxu0 0.0
        %2057 = vmatprep.subr.mxu0 0.0
        %2058 = vmatpush1.msra.mxu0 0.0
        %2059 = vmatprep.subr.mxu0 0.0
        %2060 = vmatpush1.msra.mxu0 0.0
        %2061 = vmatprep.subr.mxu0 0.0
        %2062 = vmatpush1.msra.mxu0 0.0
        %2063 = vmatprep.subr.mxu0 0.0
        %2064 = vmatpush1.msra.mxu0 0.0
        %2065 = vmatprep.subr.mxu0 0.0
        %2066 = vmatpush1.msra.mxu0 0.0
        %2067 = vmatprep.subr.mxu0 0.0
        %2068 = vmatpush1.msra.mxu0 0.0
        %2069 = vmatprep.subr.mxu0 0.0
        %2070 = vmatpush1.msra.mxu0 0.0
        %2071 = vmatprep.subr.mxu0 0.0
        %2072 = vmatpush1.msra.mxu0 0.0
        %2073 = vmatprep.subr.mxu0 0.0
        %2074 = vmatpush1.msra.mxu0 0.0
        %2075 = vmatprep.mubr.f32.mxu0 %v601
        %2076 = vmatmul.mubr.f32.gmra.mrb[0].mxu0 %v567
        %v2077 = vpop.f32.mrb[0].mxu0
        %v2078 = vadd.f32 %v582, %v2077
        %v2079 = vpop.f32.mrb[0].mxu0
        %v2080 = vadd.f32 %v582, %v2079
        %2081 = vmatprep.mubr.f32.mxu0 %v604
        %2082 = vmatmul.mubr.f32.gmra.mrb[0].mxu0 %v569
        %v2083 = vpop.f32.mrb[0].mxu0
        %v2084 = vadd.f32 %v587, %v2083
        %v2085 = vpop.f32.mrb[0].mxu0
        %v2086 = vadd.f32 %v587, %v2085
        %2087 = vmatprep.mubr.f32.mxu0 %v607
        %2088 = vmatmul.mubr.f32.gmra.mrb[0].mxu0 %v571
        %v2089 = vpop.f32.mrb[0].mxu0
        %v2090 = vadd.f32 %v592, %v2089
        %v2091 = vpop.f32.mrb[0].mxu0
        %v2092 = vadd.f32 %v592, %v2091
        %2093 = vmatprep.mubr.f32.mxu0 %v610
        %2094 = vmatmul.mubr.f32.gmra.mrb[0].mxu0 %v573
        %v2095 = vpop.f32.mrb[0].mxu0
        %v2096 = vadd.f32 %v597, %v2095
        %v2097 = vpop.f32.mrb[0].mxu0
        %v2098 = vadd.f32 %v597, %v2097
        %2099 = vdwg.mxu0
        %v2100 = vxor.u32 %v2078, 2147483648
        %v2101 = vxor.u32 %v2080, 2147483648
        %v2102 = vmul.f32 %v2100, 1.442695
        %v2103 = vpow.pop %v2102
        %v2104 = vmul.f32 %v2101, 1.442695
        %v2105 = vpow.pop %v2104
        %v2106 = vadd.f32 %v2103, 1.0
        %v2107 = vadd.f32 %v2105, 1.0
        %v2108 = vrcp.pop %v2106
        %v2109 = vmul.f32 1.0, %v2108
        %v2110 = vrcp.pop %v2107
        %v2111 = vmul.f32 1.0, %v2110
        %v2112 = vxor.u32 %v2084, 2147483648
        %v2113 = vxor.u32 %v2086, 2147483648
        %v2114 = vmul.f32 %v2112, 1.442695
        %v2115 = vpow.pop %v2114
        %v2116 = vmul.f32 %v2113, 1.442695
        %v2117 = vpow.pop %v2116
        %v2118 = vadd.f32 %v2115, 1.0
        %v2119 = vadd.f32 %v2117, 1.0
        %v2120 = vrcp.pop %v2118
        %v2121 = vmul.f32 1.0, %v2120
        %v2122 = vrcp.pop %v2119
        %v2123 = vmul.f32 1.0, %v2122
        %v2124 = vtanh.pop %v2090
        %v2125 = vtanh.pop %v2092
        %v2126 = vxor.u32 %v2096, 2147483648
        %v2127 = vxor.u32 %v2098, 2147483648
        %v2128 = vmul.f32 %v2126, 1.442695
        %v2129 = vpow.pop %v2128
        %v2130 = vmul.f32 %v2127, 1.442695
        %v2131 = vpow.pop %v2130
        %v2132 = vadd.f32 %v2129, 1.0
        %v2133 = vadd.f32 %v2131, 1.0
        %v2134 = vrcp.pop %v2132
        %v2135 = vmul.f32 1.0, %v2134
        %v2136 = vrcp.pop %v2133
        %v2137 = vmul.f32 1.0, %v2136
        %v2138 = vmul.f32 %v2121, %v1669
        %v2139 = vmul.f32 %v2123, %v1670
        %v2140 = vmul.f32 %v2109, %v2124
        %v2141 = vmul.f32 %v2111, %v2125
        %v2142 = vadd.f32 %v2138, %v2140
        %v2143 = vadd.f32 %v2139, %v2141
        %v2144 = vtanh.pop %v2142
        %v2145 = vtanh.pop %v2143
        %v2146 = vmul.f32 %v2135, %v2144
        %v2147 = vmul.f32 %v2137, %v2145
        %2148 = vrot.lane.b32.xlu0 %v2146, 17
        %v2149 = vpop.permute.xlu0 %2148
        %2150 = vrot.lane.b32.xlu0 %v1938, 17
        %v2151 = vpop.permute.xlu0 %2150
        %2152 = vrot.lane.b32.xlu0 %v2147, 17
        %v2153 = vpop.permute.xlu0 %2152
        %2154 = vrot.lane.b32.xlu0 %v1939, 17
        %v2155 = vpop.permute.xlu0 %2154
        %v2156 = vsel %vm405, %v2149, %v2153
        %v2157 = vsel %vm405, %v2151, %v2155
        %v2158 = vsel %vm405, %v2153, %v2149
        %v2159 = vsel %vm405, %v2155, %v2151
        %v2160 = vmul.f32 %v2158, %v411
        %v2161 = vmul.f32 %v2156, %v415
        %v2162 = vmul.f32 %v2159, %v411
        %v2163 = vmul.f32 %v2157, %v415
        %2164 = vrot.lane.b32.xlu0 %v2146, 16
        %v2165 = vpop.permute.xlu0 %2164
        %2166 = vrot.lane.b32.xlu0 %v1938, 16
        %v2167 = vpop.permute.xlu0 %2166
        %2168 = vrot.lane.b32.xlu0 %v2147, 16
        %v2169 = vpop.permute.xlu0 %2168
        %2170 = vrot.lane.b32.xlu0 %v1939, 16
        %v2171 = vpop.permute.xlu0 %2170
        %v2172 = vsel %vm426, %v2165, %v2169
        %v2173 = vsel %vm426, %v2167, %v2171
        %v2174 = vsel %vm426, %v2169, %v2165
        %v2175 = vsel %vm426, %v2171, %v2167
        %v2176 = vmul.f32 %v2174, %v432
        %v2177 = vmul.f32 %v2172, %v436
        %v2178 = vmul.f32 %v2175, %v432
        %v2179 = vmul.f32 %v2173, %v436
        %2180 = vrot.lane.b32.xlu0 %v2146, 15
        %v2181 = vpop.permute.xlu0 %2180
        %2182 = vrot.lane.b32.xlu0 %v1938, 15
        %v2183 = vpop.permute.xlu0 %2182
        %2184 = vrot.lane.b32.xlu0 %v2147, 15
        %v2185 = vpop.permute.xlu0 %2184
        %2186 = vrot.lane.b32.xlu0 %v1939, 15
        %v2187 = vpop.permute.xlu0 %2186
        %v2188 = vsel %vm447, %v2181, %v2185
        %v2189 = vsel %vm447, %v2183, %v2187
        %v2190 = vsel %vm447, %v2185, %v2181
        %v2191 = vsel %vm447, %v2187, %v2183
        %v2192 = vmul.f32 %v2190, %v453
        %v2193 = vmul.f32 %v2188, %v457
        %v2194 = vmul.f32 %v2191, %v453
        %v2195 = vmul.f32 %v2189, %v457
        %2196 = vrot.lane.b32.xlu0 %v2146, 1
        %v2197 = vpop.permute.xlu0 %2196
        %2198 = vrot.lane.b32.xlu0 %v1938, 1
        %v2199 = vpop.permute.xlu0 %2198
        %2200 = vrot.lane.b32.xlu0 %v2147, 1
        %v2201 = vpop.permute.xlu0 %2200
        %2202 = vrot.lane.b32.xlu0 %v1939, 1
        %v2203 = vpop.permute.xlu0 %2202
        %v2204 = vsel %vm468, %v2197, %v2201
        %v2205 = vsel %vm468, %v2199, %v2203
        %v2206 = vsel %vm468, %v2201, %v2197
        %v2207 = vsel %vm468, %v2203, %v2199
        %v2208 = vmul.f32 %v2206, %v474
        %v2209 = vmul.f32 %v2204, %v478
        %v2210 = vmul.f32 %v2207, %v474
        %v2211 = vmul.f32 %v2205, %v478
        %2212 = vrot.lane.b32.xlu0 %v2146, 127
        %v2213 = vpop.permute.xlu0 %2212
        %2214 = vrot.lane.b32.xlu0 %v1938, 127
        %v2215 = vpop.permute.xlu0 %2214
        %2216 = vrot.lane.b32.xlu0 %v2147, 127
        %v2217 = vpop.permute.xlu0 %2216
        %2218 = vrot.lane.b32.xlu0 %v1939, 127
        %v2219 = vpop.permute.xlu0 %2218
        %v2220 = vsel %vm489, %v2213, %v2217
        %v2221 = vsel %vm489, %v2215, %v2219
        %v2222 = vsel %vm489, %v2217, %v2213
        %v2223 = vsel %vm489, %v2219, %v2215
        %v2224 = vmul.f32 %v2220, %v495
        %v2225 = vmul.f32 %v2222, %v499
        %v2226 = vmul.f32 %v2221, %v495
        %v2227 = vmul.f32 %v2223, %v499
        %2228 = vrot.lane.b32.xlu0 %v2146, 113
        %v2229 = vpop.permute.xlu0 %2228
        %2230 = vrot.lane.b32.xlu0 %v1938, 113
        %v2231 = vpop.permute.xlu0 %2230
        %2232 = vrot.lane.b32.xlu0 %v2147, 113
        %v2233 = vpop.permute.xlu0 %2232
        %2234 = vrot.lane.b32.xlu0 %v1939, 113
        %v2235 = vpop.permute.xlu0 %2234
        %v2236 = vsel %vm510, %v2229, %v2233
        %v2237 = vsel %vm510, %v2231, %v2235
        %v2238 = vsel %vm510, %v2233, %v2229
        %v2239 = vsel %vm510, %v2235, %v2231
        %v2240 = vmul.f32 %v2236, %v516
        %v2241 = vmul.f32 %v2238, %v520
        %v2242 = vmul.f32 %v2237, %v516
        %v2243 = vmul.f32 %v2239, %v520
        %2244 = vrot.lane.b32.xlu0 %v2146, 112
        %v2245 = vpop.permute.xlu0 %2244
        %2246 = vrot.lane.b32.xlu0 %v1938, 112
        %v2247 = vpop.permute.xlu0 %2246
        %2248 = vrot.lane.b32.xlu0 %v2147, 112
        %v2249 = vpop.permute.xlu0 %2248
        %2250 = vrot.lane.b32.xlu0 %v1939, 112
        %v2251 = vpop.permute.xlu0 %2250
        %v2252 = vsel %vm531, %v2245, %v2249
        %v2253 = vsel %vm531, %v2247, %v2251
        %v2254 = vsel %vm531, %v2249, %v2245
        %v2255 = vsel %vm531, %v2251, %v2247
        %v2256 = vmul.f32 %v2252, %v537
        %v2257 = vmul.f32 %v2254, %v541
        %v2258 = vmul.f32 %v2253, %v537
        %v2259 = vmul.f32 %v2255, %v541
        %2260 = vrot.lane.b32.xlu0 %v2146, 111
        %v2261 = vpop.permute.xlu0 %2260
        %2262 = vrot.lane.b32.xlu0 %v1938, 111
        %v2263 = vpop.permute.xlu0 %2262
        %2264 = vrot.lane.b32.xlu0 %v2147, 111
        %v2265 = vpop.permute.xlu0 %2264
        %2266 = vrot.lane.b32.xlu0 %v1939, 111
        %v2267 = vpop.permute.xlu0 %2266
        %v2268 = vsel %vm552, %v2261, %v2265
        %v2269 = vsel %vm552, %v2263, %v2267
        %v2270 = vsel %vm552, %v2265, %v2261
        %v2271 = vsel %vm552, %v2267, %v2263
        %v2272 = vmul.f32 %v2268, %v558
        %v2273 = vmul.f32 %v2270, %v562
        %v2274 = vmul.f32 %v2269, %v558
        %v2275 = vmul.f32 %v2271, %v562
        %2276 = vmatprep.subr.mxu0 %v2161
        %2277 = vmatpush1.msra.mxu0 %v2160
        %2278 = vmatprep.subr.mxu0 %v2163
        %2279 = vmatpush1.msra.mxu0 %v2162
        %2280 = vmatprep.subr.mxu0 %v2177
        %2281 = vmatpush1.msra.mxu0 %v2176
        %2282 = vmatprep.subr.mxu0 %v2179
        %2283 = vmatpush1.msra.mxu0 %v2178
        %2284 = vmatprep.subr.mxu0 %v2193
        %2285 = vmatpush1.msra.mxu0 %v2192
        %2286 = vmatprep.subr.mxu0 %v2195
        %2287 = vmatpush1.msra.mxu0 %v2194
        %2288 = vmatprep.subr.mxu0 %v2209
        %2289 = vmatpush1.msra.mxu0 %v2208
        %2290 = vmatprep.subr.mxu0 %v2211
        %2291 = vmatpush1.msra.mxu0 %v2210
        %2292 = vmatprep.subr.mxu0 %v2147
        %2293 = vmatpush1.msra.mxu0 %v2146
        %2294 = vmatprep.subr.mxu0 %v1939
        %2295 = vmatpush1.msra.mxu0 %v1938
        %2296 = vmatprep.subr.mxu0 %v2225
        %2297 = vmatpush1.msra.mxu0 %v2224
        %2298 = vmatprep.subr.mxu0 %v2227
        %2299 = vmatpush1.msra.mxu0 %v2226
        %2300 = vmatprep.subr.mxu0 %v2241
        %2301 = vmatpush1.msra.mxu0 %v2240
        %2302 = vmatprep.subr.mxu0 %v2243
        %2303 = vmatpush1.msra.mxu0 %v2242
        %2304 = vmatprep.subr.mxu0 %v2257
        %2305 = vmatpush1.msra.mxu0 %v2256
        %2306 = vmatprep.subr.mxu0 %v2259
        %2307 = vmatpush1.msra.mxu0 %v2258
        %2308 = vmatprep.subr.mxu0 %v2273
        %2309 = vmatpush1.msra.mxu0 %v2272
        %2310 = vmatprep.subr.mxu0 %v2275
        %2311 = vmatpush1.msra.mxu0 %v2274
        %2312 = vmatprep.subr.mxu0 0.0
        %2313 = vmatpush1.msra.mxu0 0.0
        %2314 = vmatprep.subr.mxu0 0.0
        %2315 = vmatpush1.msra.mxu0 0.0
        %2316 = vmatprep.subr.mxu0 0.0
        %2317 = vmatpush1.msra.mxu0 0.0
        %2318 = vmatprep.subr.mxu0 0.0
        %2319 = vmatpush1.msra.mxu0 0.0
        %2320 = vmatprep.subr.mxu0 0.0
        %2321 = vmatpush1.msra.mxu0 0.0
        %2322 = vmatprep.subr.mxu0 0.0
        %2323 = vmatpush1.msra.mxu0 0.0
        %2324 = vmatprep.subr.mxu0 0.0
        %2325 = vmatpush1.msra.mxu0 0.0
        %2326 = vmatprep.subr.mxu0 0.0
        %2327 = vmatpush1.msra.mxu0 0.0
        %2328 = vmatprep.subr.mxu0 0.0
        %2329 = vmatpush1.msra.mxu0 0.0
        %2330 = vmatprep.subr.mxu0 0.0
        %2331 = vmatpush1.msra.mxu0 0.0
        %2332 = vmatprep.subr.mxu0 0.0
        %2333 = vmatpush1.msra.mxu0 0.0
        %2334 = vmatprep.subr.mxu0 0.0
        %2335 = vmatpush1.msra.mxu0 0.0
        %2336 = vmatprep.subr.mxu0 0.0
        %2337 = vmatpush1.msra.mxu0 0.0
        %2338 = vmatprep.subr.mxu0 0.0
        %2339 = vmatpush1.msra.mxu0 0.0
        %2340 = vmatprep.mubr.f32.mxu0 %v846
        %2341 = vmatmul.mubr.f32.gmra.mrb[0].mxu0 %v813
        %v2342 = vpop.f32.mrb[0].mxu0
        %v2343 = vadd.f32 %v828, %v2342
        %v2344 = vpop.f32.mrb[0].mxu0
        %v2345 = vadd.f32 %v828, %v2344
        %2346 = vmatprep.mubr.f32.mxu0 %v849
        %2347 = vmatmul.mubr.f32.gmra.mrb[0].mxu0 %v815
        %v2348 = vpop.f32.mrb[0].mxu0
        %v2349 = vadd.f32 %v833, %v2348
        %v2350 = vpop.f32.mrb[0].mxu0
        %v2351 = vadd.f32 %v833, %v2350
        %2352 = vmatprep.mubr.f32.mxu0 %v852
        %2353 = vmatmul.mubr.f32.gmra.mrb[0].mxu0 %v817
        %v2354 = vpop.f32.mrb[0].mxu0
        %v2355 = vadd.f32 %v838, %v2354
        %v2356 = vpop.f32.mrb[0].mxu0
        %v2357 = vadd.f32 %v838, %v2356
        %2358 = vmatprep.mubr.f32.mxu0 %v855
        %2359 = vmatmul.mubr.f32.gmra.mrb[0].mxu0 %v819
        %v2360 = vpop.f32.mrb[0].mxu0
        %v2361 = vadd.f32 %v843, %v2360
        %v2362 = vpop.f32.mrb[0].mxu0
        %v2363 = vadd.f32 %v843, %v2362
        %2364 = vdwg.mxu0
        %v2365 = vxor.u32 %v2343, 2147483648
        %v2366 = vxor.u32 %v2345, 2147483648
        %v2367 = vmul.f32 %v2365, 1.442695
        %v2368 = vpow.pop %v2367
        %v2369 = vmul.f32 %v2366, 1.442695
        %v2370 = vpow.pop %v2369
        %v2371 = vadd.f32 %v2368, 1.0
        %v2372 = vadd.f32 %v2370, 1.0
        %v2373 = vrcp.pop %v2371
        %v2374 = vmul.f32 1.0, %v2373
        %v2375 = vrcp.pop %v2372
        %v2376 = vmul.f32 1.0, %v2375
        %v2377 = vxor.u32 %v2349, 2147483648
        %v2378 = vxor.u32 %v2351, 2147483648
        %v2379 = vmul.f32 %v2377, 1.442695
        %v2380 = vpow.pop %v2379
        %v2381 = vmul.f32 %v2378, 1.442695
        %v2382 = vpow.pop %v2381
        %v2383 = vadd.f32 %v2380, 1.0
        %v2384 = vadd.f32 %v2382, 1.0
        %v2385 = vrcp.pop %v2383
        %v2386 = vmul.f32 1.0, %v2385
        %v2387 = vrcp.pop %v2384
        %v2388 = vmul.f32 1.0, %v2387
        %v2389 = vtanh.pop %v2355
        %v2390 = vtanh.pop %v2357
        %v2391 = vxor.u32 %v2361, 2147483648
        %v2392 = vxor.u32 %v2363, 2147483648
        %v2393 = vmul.f32 %v2391, 1.442695
        %v2394 = vpow.pop %v2393
        %v2395 = vmul.f32 %v2392, 1.442695
        %v2396 = vpow.pop %v2395
        %v2397 = vadd.f32 %v2394, 1.0
        %v2398 = vadd.f32 %v2396, 1.0
        %v2399 = vrcp.pop %v2397
        %v2400 = vmul.f32 1.0, %v2399
        %v2401 = vrcp.pop %v2398
        %v2402 = vmul.f32 1.0, %v2401
        %v2403 = vmul.f32 %v2386, %v1934
        %v2404 = vmul.f32 %v2388, %v1935
        %v2405 = vmul.f32 %v2374, %v2389
        %v2406 = vmul.f32 %v2376, %v2390
        %v2407 = vadd.f32 %v2403, %v2405
        %v2408 = vadd.f32 %v2404, %v2406
        %v2409 = vtanh.pop %v2407
        %v2410 = vtanh.pop %v2408
        %v2411 = vmul.f32 %v2400, %v2409
        %v2412 = vmul.f32 %v2402, %v2410
        %v2413 = vld [vmem:[%s6] sm:$0xf]
        %v2414 = vld [vmem:[%s7] sm:$0xf]
        %2416 = vset.pattern.permute.xlu0 0
        %2417 = vperm.xlu0 %2416, %v2414
        %v2418 = vpop.permute.xlu0 %2417
        %vm2420 = vcmask 261120
        %v2422 = vsel %vm2420, %v2413, 0
        %2424 = vmatprep.subr.mxu0 %v993
        %2425 = vmatpush1.msra.mxu0 %v992
        %2426 = vmatprep.subr.mxu0 %v1466
        %2427 = vmatpush1.msra.mxu0 %v1465
        %2428 = vmatprep.subr.mxu0 %v1939
        %2429 = vmatpush1.msra.mxu0 %v1938
        %2430 = vmatprep.subr.mxu0 %v2412
        %2431 = vmatpush1.msra.mxu0 %v2411
        %2432 = vmatprep.subr.mxu0 0.0
        %2433 = vmatpush1.msra.mxu0 0.0
        %2434 = vmatprep.subr.mxu0 0.0
        %2435 = vmatpush1.msra.mxu0 0.0
        %2436 = vmatprep.subr.mxu0 0.0
        %2437 = vmatpush1.msra.mxu0 0.0
        %2438 = vmatprep.subr.mxu0 0.0
        %2439 = vmatpush1.msra.mxu0 0.0
        %2440 = vmatprep.subr.mxu0 0.0
        %2441 = vmatpush1.msra.mxu0 0.0
        %2442 = vmatprep.subr.mxu0 0.0
        %2443 = vmatpush1.msra.mxu0 0.0
        %2444 = vmatprep.subr.mxu0 0.0
        %2445 = vmatpush1.msra.mxu0 0.0
        %2446 = vmatprep.subr.mxu0 0.0
        %2447 = vmatpush1.msra.mxu0 0.0
        %2448 = vmatprep.subr.mxu0 0.0
        %2449 = vmatpush1.msra.mxu0 0.0
        %2450 = vmatprep.subr.mxu0 0.0
        %2451 = vmatpush1.msra.mxu0 0.0
        %2452 = vmatprep.subr.mxu0 0.0
        %2453 = vmatpush1.msra.mxu0 0.0
        %2454 = vmatprep.subr.mxu0 0.0
        %2455 = vmatpush1.msra.mxu0 0.0
        %2456 = vmatprep.subr.mxu0 0.0
        %2457 = vmatpush1.msra.mxu0 0.0
        %2458 = vmatprep.subr.mxu0 0.0
        %2459 = vmatpush1.msra.mxu0 0.0
        %2460 = vmatprep.subr.mxu0 0.0
        %2461 = vmatpush1.msra.mxu0 0.0
        %2462 = vmatprep.subr.mxu0 0.0
        %2463 = vmatpush1.msra.mxu0 0.0
        %2464 = vmatprep.subr.mxu0 0.0
        %2465 = vmatpush1.msra.mxu0 0.0
        %2466 = vmatprep.subr.mxu0 0.0
        %2467 = vmatpush1.msra.mxu0 0.0
        %2468 = vmatprep.subr.mxu0 0.0
        %2469 = vmatpush1.msra.mxu0 0.0
        %2470 = vmatprep.subr.mxu0 0.0
        %2471 = vmatpush1.msra.mxu0 0.0
        %2472 = vmatprep.subr.mxu0 0.0
        %2473 = vmatpush1.msra.mxu0 0.0
        %2474 = vmatprep.subr.mxu0 0.0
        %2475 = vmatpush1.msra.mxu0 0.0
        %2476 = vmatprep.subr.mxu0 0.0
        %2477 = vmatpush1.msra.mxu0 0.0
        %2478 = vmatprep.subr.mxu0 0.0
        %2479 = vmatpush1.msra.mxu0 0.0
        %2480 = vmatprep.subr.mxu0 0.0
        %2481 = vmatpush1.msra.mxu0 0.0
        %2482 = vmatprep.subr.mxu0 0.0
        %2483 = vmatpush1.msra.mxu0 0.0
        %2484 = vmatprep.subr.mxu0 0.0
        %2485 = vmatpush1.msra.mxu0 0.0
        %2486 = vmatprep.subr.mxu0 0.0
        %2487 = vmatpush1.msra.mxu0 0.0
        %2488 = vmatprep.mubr.f32.mxu0 0.0
        %2489 = vmatmul.mubr.f32.gmra.mrb[0].mxu0 %v2422
        %v2490 = vpop.f32.mrb[0].mxu0
        %v2491 = vadd.f32 %v2418, %v2490
        %v2492 = vpop.f32.mrb[0].mxu0
        %v2493 = vadd.f32 %v2418, %v2492
        %2494 = vdwg.mxu0
        %v2495 = vtanh.pop %v2491
        %v2496 = vtanh.pop %v2493
        %v2499 = vcombine.low %v2495, %v2496
        %2501 = vst [vmem:[%s373] sm:$0xff] %v2499
        %v2502 = vsel %vm394, %v2495, 0.0
        %v2503 = vsel %vm394, %v2496, 0.0
        %2504 = vrot.lane.b32.xlu0 %v2502, 17
        %v2505 = vpop.permute.xlu0 %2504
        %2506 = vrot.lane.b32.xlu0 %v2503, 17
        %v2507 = vpop.permute.xlu0 %2506
        %v2508 = vsel %vm405, %v2505, %v2507
        %v2509 = vsel %vm405, %v2507, %v2505
        %v2510 = vmul.f32 %v2509, %v411
        %v2511 = vmul.f32 %v2508, %v415
        %2512 = vrot.lane.b32.xlu0 %v2502, 16
        %v2513 = vpop.permute.xlu0 %2512
        %2514 = vrot.lane.b32.xlu0 %v2503, 16
        %v2515 = vpop.permute.xlu0 %2514
        %v2516 = vsel %vm426, %v2513, %v2515
        %v2517 = vsel %vm426, %v2515, %v2513
        %v2518 = vmul.f32 %v2517, %v432
        %v2519 = vmul.f32 %v2516, %v436
        %2520 = vrot.lane.b32.xlu0 %v2502, 15
        %v2521 = vpop.permute.xlu0 %2520
        %2522 = vrot.lane.b32.xlu0 %v2503, 15
        %v2523 = vpop.permute.xlu0 %2522
        %v2524 = vsel %vm447, %v2521, %v2523
        %v2525 = vsel %vm447, %v2523, %v2521
        %v2526 = vmul.f32 %v2525, %v453
        %v2527 = vmul.f32 %v2524, %v457
        %2528 = vrot.lane.b32.xlu0 %v2502, 1
        %v2529 = vpop.permute.xlu0 %2528
        %2530 = vrot.lane.b32.xlu0 %v2503, 1
        %v2531 = vpop.permute.xlu0 %2530
        %v2532 = vsel %vm468, %v2529, %v2531
        %v2533 = vsel %vm468, %v2531, %v2529
        %v2534 = vmul.f32 %v2533, %v474
        %v2535 = vmul.f32 %v2532, %v478
        %2536 = vrot.lane.b32.xlu0 %v2502, 127
        %v2537 = vpop.permute.xlu0 %2536
        %2538 = vrot.lane.b32.xlu0 %v2503, 127
        %v2539 = vpop.permute.xlu0 %2538
        %v2540 = vsel %vm489, %v2537, %v2539
        %v2541 = vsel %vm489, %v2539, %v2537
        %v2542 = vmul.f32 %v2540, %v495
        %v2543 = vmul.f32 %v2541, %v499
        %2544 = vrot.lane.b32.xlu0 %v2502, 113
        %v2545 = vpop.permute.xlu0 %2544
        %2546 = vrot.lane.b32.xlu0 %v2503, 113
        %v2547 = vpop.permute.xlu0 %2546
        %v2548 = vsel %vm510, %v2545, %v2547
        %v2549 = vsel %vm510, %v2547, %v2545
        %v2550 = vmul.f32 %v2548, %v516
        %v2551 = vmul.f32 %v2549, %v520
        %2552 = vrot.lane.b32.xlu0 %v2502, 112
        %v2553 = vpop.permute.xlu0 %2552
        %2554 = vrot.lane.b32.xlu0 %v2503, 112
        %v2555 = vpop.permute.xlu0 %2554
        %v2556 = vsel %vm531, %v2553, %v2555
        %v2557 = vsel %vm531, %v2555, %v2553
        %v2558 = vmul.f32 %v2556, %v537
        %v2559 = vmul.f32 %v2557, %v541
        %2560 = vrot.lane.b32.xlu0 %v2502, 111
        %v2561 = vpop.permute.xlu0 %2560
        %2562 = vrot.lane.b32.xlu0 %v2503, 111
        %v2563 = vpop.permute.xlu0 %2562
        %v2564 = vsel %vm552, %v2561, %v2563
        %v2565 = vsel %vm552, %v2563, %v2561
        %v2566 = vmul.f32 %v2564, %v558
        %v2567 = vmul.f32 %v2565, %v562
        %v2568 = vld [vmem:[#allocation5] sm:$0xff]
        %v2569 = vld [vmem:[#allocation5 + $0x8] sm:$0xff]
        %v2570 = vld [vmem:[#allocation5 + $0x10] sm:$0xff]
        %v2571 = vld [vmem:[#allocation5 + $0x18] sm:$0xff]
        %v2572 = vld [vmem:[#allocation5 + $0x20] sm:$0xff]
        %v2573 = vld [vmem:[#allocation5 + $0x28] sm:$0xff]
        %v2574 = vld [vmem:[#allocation5 + $0x30] sm:$0xff]
        %v2575 = vld [vmem:[#allocation5 + $0x38] sm:$0xff]
        %v2576 = vld [vmem:[%s3] sm:$0xff]
        %v2577 = vld [vmem:[%s3 + $0x8] sm:$0xff]
        %v2578 = vld [vmem:[%s3 + $0x10] sm:$0xff]
        %v2579 = vld [vmem:[%s3 + $0x18] sm:$0xff]
        %2581 = vset.pattern.permute.xlu0 0
        %2582 = vperm.xlu0 %2581, %v2576
        %v2583 = vpop.permute.xlu0 %2582
        %2586 = vset.pattern.permute.xlu0 0
        %2587 = vperm.xlu0 %2586, %v2577
        %v2588 = vpop.permute.xlu0 %2587
        %2591 = vset.pattern.permute.xlu0 0
        %2592 = vperm.xlu0 %2591, %v2578
        %v2593 = vpop.permute.xlu0 %2592
        %2596 = vset.pattern.permute.xlu0 0
        %2597 = vperm.xlu0 %2596, %v2579
        %v2598 = vpop.permute.xlu0 %2597
        %v2601 = vsel %vm599, %v2569, 0
        %v2604 = vsel %vm599, %v2571, 0
        %v2607 = vsel %vm599, %v2573, 0
        %v2610 = vsel %vm599, %v2575, 0
        %2612 = vmatprep.subr.mxu0 %v2511
        %2613 = vmatpush1.msra.mxu0 %v2510
        %2614 = vmatprep.subr.mxu0 %v2161
        %2615 = vmatpush1.msra.mxu0 %v2160
        %2616 = vmatprep.subr.mxu0 %v2519
        %2617 = vmatpush1.msra.mxu0 %v2518
        %2618 = vmatprep.subr.mxu0 %v2177
        %2619 = vmatpush1.msra.mxu0 %v2176
        %2620 = vmatprep.subr.mxu0 %v2527
        %2621 = vmatpush1.msra.mxu0 %v2526
        %2622 = vmatprep.subr.mxu0 %v2193
        %2623 = vmatpush1.msra.mxu0 %v2192
        %2624 = vmatprep.subr.mxu0 %v2535
        %2625 = vmatpush1.msra.mxu0 %v2534
        %2626 = vmatprep.subr.mxu0 %v2209
        %2627 = vmatpush1.msra.mxu0 %v2208
        %2628 = vmatprep.subr.mxu0 %v2503
        %2629 = vmatpush1.msra.mxu0 %v2502
        %2630 = vmatprep.subr.mxu0 %v2147
        %2631 = vmatpush1.msra.mxu0 %v2146
        %2632 = vmatprep.subr.mxu0 %v2543
        %2633 = vmatpush1.msra.mxu0 %v2542
        %2634 = vmatprep.subr.mxu0 %v2225
        %2635 = vmatpush1.msra.mxu0 %v2224
        %2636 = vmatprep.subr.mxu0 %v2551
        %2637 = vmatpush1.msra.mxu0 %v2550
        %2638 = vmatprep.subr.mxu0 %v2241
        %2639 = vmatpush1.msra.mxu0 %v2240
        %2640 = vmatprep.subr.mxu0 %v2559
        %2641 = vmatpush1.msra.mxu0 %v2558
        %2642 = vmatprep.subr.mxu0 %v2257
        %2643 = vmatpush1.msra.mxu0 %v2256
        %2644 = vmatprep.subr.mxu0 %v2567
        %2645 = vmatpush1.msra.mxu0 %v2566
        %2646 = vmatprep.subr.mxu0 %v2273
        %2647 = vmatpush1.msra.mxu0 %v2272
        %2648 = vmatprep.subr.mxu0 0.0
        %2649 = vmatpush1.msra.mxu0 0.0
        %2650 = vmatprep.subr.mxu0 0.0
        %2651 = vmatpush1.msra.mxu0 0.0
        %2652 = vmatprep.subr.mxu0 0.0
        %2653 = vmatpush1.msra.mxu0 0.0
        %2654 = vmatprep.subr.mxu0 0.0
        %2655 = vmatpush1.msra.mxu0 0.0
        %2656 = vmatprep.subr.mxu0 0.0
        %2657 = vmatpush1.msra.mxu0 0.0
        %2658 = vmatprep.subr.mxu0 0.0
        %2659 = vmatpush1.msra.mxu0 0.0
        %2660 = vmatprep.subr.mxu0 0.0
        %2661 = vmatpush1.msra.mxu0 0.0
        %2662 = vmatprep.subr.mxu0 0.0
        %2663 = vmatpush1.msra.mxu0 0.0
        %2664 = vmatprep.subr.mxu0 0.0
        %2665 = vmatpush1.msra.mxu0 0.0
        %2666 = vmatprep.subr.mxu0 0.0
        %2667 = vmatpush1.msra.mxu0 0.0
        %2668 = vmatprep.subr.mxu0 0.0
        %2669 = vmatpush1.msra.mxu0 0.0
        %2670 = vmatprep.subr.mxu0 0.0
        %2671 = vmatpush1.msra.mxu0 0.0
        %2672 = vmatprep.subr.mxu0 0.0
        %2673 = vmatpush1.msra.mxu0 0.0
        %2674 = vmatprep.subr.mxu0 0.0
        %2675 = vmatpush1.msra.mxu0 0.0
        %2676 = vmatprep.mubr.f32.mxu0 %v2601
        %2677 = vmatmul.mubr.f32.gmra.mrb[0].mxu0 %v2568
        %v2678 = vpop.f32.mrb[0].mxu0
        %v2679 = vadd.f32 %v2583, %v2678
        %v2680 = vpop.f32.mrb[0].mxu0
        %v2681 = vadd.f32 %v2583, %v2680
        %2682 = vmatprep.mubr.f32.mxu0 %v2604
        %2683 = vmatmul.mubr.f32.gmra.mrb[0].mxu0 %v2570
        %v2684 = vpop.f32.mrb[0].mxu0
        %v2685 = vadd.f32 %v2588, %v2684
        %v2686 = vpop.f32.mrb[0].mxu0
        %v2687 = vadd.f32 %v2588, %v2686
        %2688 = vmatprep.mubr.f32.mxu0 %v2607
        %2689 = vmatmul.mubr.f32.gmra.mrb[0].mxu0 %v2572
        %v2690 = vpop.f32.mrb[0].mxu0
        %v2691 = vadd.f32 %v2593, %v2690
        %v2692 = vpop.f32.mrb[0].mxu0
        %v2693 = vadd.f32 %v2593, %v2692
        %2694 = vmatprep.mubr.f32.mxu0 %v2610
        %2695 = vmatmul.mubr.f32.gmra.mrb[0].mxu0 %v2574
        %v2696 = vpop.f32.mrb[0].mxu0
        %v2697 = vadd.f32 %v2598, %v2696
        %v2698 = vpop.f32.mrb[0].mxu0
        %v2699 = vadd.f32 %v2598, %v2698
        %2700 = vdwg.mxu0
        %v2701 = vxor.u32 %v2679, 2147483648
        %v2702 = vxor.u32 %v2681, 2147483648
        %v2703 = vmul.f32 %v2701, 1.442695
        %v2704 = vpow.pop %v2703
        %v2705 = vmul.f32 %v2702, 1.442695
        %v2706 = vpow.pop %v2705
        %v2707 = vadd.f32 %v2704, 1.0
        %v2708 = vadd.f32 %v2706, 1.0
        %v2709 = vrcp.pop %v2707
        %v2710 = vmul.f32 1.0, %v2709
        %v2711 = vrcp.pop %v2708
        %v2712 = vmul.f32 1.0, %v2711
        %v2713 = vxor.u32 %v2685, 2147483648
        %v2714 = vxor.u32 %v2687, 2147483648
        %v2715 = vmul.f32 %v2713, 1.442695
        %v2716 = vpow.pop %v2715
        %v2717 = vmul.f32 %v2714, 1.442695
        %v2718 = vpow.pop %v2717
        %v2719 = vadd.f32 %v2716, 1.0
        %v2720 = vadd.f32 %v2718, 1.0
        %v2721 = vrcp.pop %v2719
        %v2722 = vmul.f32 1.0, %v2721
        %v2723 = vrcp.pop %v2720
        %v2724 = vmul.f32 1.0, %v2723
        %v2725 = vtanh.pop %v2691
        %v2726 = vtanh.pop %v2693
        %v2727 = vxor.u32 %v2697, 2147483648
        %v2728 = vxor.u32 %v2699, 2147483648
        %v2729 = vmul.f32 %v2727, 1.442695
        %v2730 = vpow.pop %v2729
        %v2731 = vmul.f32 %v2728, 1.442695
        %v2732 = vpow.pop %v2731
        %v2733 = vadd.f32 %v2730, 1.0
        %v2734 = vadd.f32 %v2732, 1.0
        %v2735 = vrcp.pop %v2733
        %v2736 = vmul.f32 1.0, %v2735
        %v2737 = vrcp.pop %v2734
        %v2738 = vmul.f32 1.0, %v2737
        %v2739 = vmul.f32 %v2722, %v2142
        %v2740 = vmul.f32 %v2724, %v2143
        %v2741 = vmul.f32 %v2710, %v2725
        %v2742 = vmul.f32 %v2712, %v2726
        %v2743 = vadd.f32 %v2739, %v2741
        %v2744 = vadd.f32 %v2740, %v2742
        %v2745 = vtanh.pop %v2743
        %v2746 = vtanh.pop %v2744
        %v2747 = vmul.f32 %v2736, %v2745
        %v2748 = vmul.f32 %v2738, %v2746
        %2749 = vrot.lane.b32.xlu0 %v2747, 17
        %v2750 = vpop.permute.xlu0 %2749
        %2751 = vrot.lane.b32.xlu0 %v2411, 17
        %v2752 = vpop.permute.xlu0 %2751
        %2753 = vrot.lane.b32.xlu0 %v2748, 17
        %v2754 = vpop.permute.xlu0 %2753
        %2755 = vrot.lane.b32.xlu0 %v2412, 17
        %v2756 = vpop.permute.xlu0 %2755
        %v2757 = vsel %vm405, %v2750, %v2754
        %v2758 = vsel %vm405, %v2752, %v2756
        %v2759 = vsel %vm405, %v2754, %v2750
        %v2760 = vsel %vm405, %v2756, %v2752
        %v2761 = vmul.f32 %v2759, %v411
        %v2762 = vmul.f32 %v2757, %v415
        %v2763 = vmul.f32 %v2760, %v411
        %v2764 = vmul.f32 %v2758, %v415
        %2765 = vrot.lane.b32.xlu0 %v2747, 16
        %v2766 = vpop.permute.xlu0 %2765
        %2767 = vrot.lane.b32.xlu0 %v2411, 16
        %v2768 = vpop.permute.xlu0 %2767
        %2769 = vrot.lane.b32.xlu0 %v2748, 16
        %v2770 = vpop.permute.xlu0 %2769
        %2771 = vrot.lane.b32.xlu0 %v2412, 16
        %v2772 = vpop.permute.xlu0 %2771
        %v2773 = vsel %vm426, %v2766, %v2770
        %v2774 = vsel %vm426, %v2768, %v2772
        %v2775 = vsel %vm426, %v2770, %v2766
        %v2776 = vsel %vm426, %v2772, %v2768
        %v2777 = vmul.f32 %v2775, %v432
        %v2778 = vmul.f32 %v2773, %v436
        %v2779 = vmul.f32 %v2776, %v432
        %v2780 = vmul.f32 %v2774, %v436
        %2781 = vrot.lane.b32.xlu0 %v2747, 15
        %v2782 = vpop.permute.xlu0 %2781
        %2783 = vrot.lane.b32.xlu0 %v2411, 15
        %v2784 = vpop.permute.xlu0 %2783
        %2785 = vrot.lane.b32.xlu0 %v2748, 15
        %v2786 = vpop.permute.xlu0 %2785
        %2787 = vrot.lane.b32.xlu0 %v2412, 15
        %v2788 = vpop.permute.xlu0 %2787
        %v2789 = vsel %vm447, %v2782, %v2786
        %v2790 = vsel %vm447, %v2784, %v2788
        %v2791 = vsel %vm447, %v2786, %v2782
        %v2792 = vsel %vm447, %v2788, %v2784
        %v2793 = vmul.f32 %v2791, %v453
        %v2794 = vmul.f32 %v2789, %v457
        %v2795 = vmul.f32 %v2792, %v453
        %v2796 = vmul.f32 %v2790, %v457
        %2797 = vrot.lane.b32.xlu0 %v2747, 1
        %v2798 = vpop.permute.xlu0 %2797
        %2799 = vrot.lane.b32.xlu0 %v2411, 1
        %v2800 = vpop.permute.xlu0 %2799
        %2801 = vrot.lane.b32.xlu0 %v2748, 1
        %v2802 = vpop.permute.xlu0 %2801
        %2803 = vrot.lane.b32.xlu0 %v2412, 1
        %v2804 = vpop.permute.xlu0 %2803
        %v2805 = vsel %vm468, %v2798, %v2802
        %v2806 = vsel %vm468, %v2800, %v2804
        %v2807 = vsel %vm468, %v2802, %v2798
        %v2808 = vsel %vm468, %v2804, %v2800
        %v2809 = vmul.f32 %v2807, %v474
        %v2810 = vmul.f32 %v2805, %v478
        %v2811 = vmul.f32 %v2808, %v474
        %v2812 = vmul.f32 %v2806, %v478
        %2813 = vrot.lane.b32.xlu0 %v2747, 127
        %v2814 = vpop.permute.xlu0 %2813
        %2815 = vrot.lane.b32.xlu0 %v2411, 127
        %v2816 = vpop.permute.xlu0 %2815
        %2817 = vrot.lane.b32.xlu0 %v2748, 127
        %v2818 = vpop.permute.xlu0 %2817
        %2819 = vrot.lane.b32.xlu0 %v2412, 127
        %v2820 = vpop.permute.xlu0 %2819
        %v2821 = vsel %vm489, %v2814, %v2818
        %v2822 = vsel %vm489, %v2816, %v2820
        %v2823 = vsel %vm489, %v2818, %v2814
        %v2824 = vsel %vm489, %v2820, %v2816
        %v2825 = vmul.f32 %v2821, %v495
        %v2826 = vmul.f32 %v2823, %v499
        %v2827 = vmul.f32 %v2822, %v495
        %v2828 = vmul.f32 %v2824, %v499
        %2829 = vrot.lane.b32.xlu0 %v2747, 113
        %v2830 = vpop.permute.xlu0 %2829
        %2831 = vrot.lane.b32.xlu0 %v2411, 113
        %v2832 = vpop.permute.xlu0 %2831
        %2833 = vrot.lane.b32.xlu0 %v2748, 113
        %v2834 = vpop.permute.xlu0 %2833
        %2835 = vrot.lane.b32.xlu0 %v2412, 113
        %v2836 = vpop.permute.xlu0 %2835
        %v2837 = vsel %vm510, %v2830, %v2834
        %v2838 = vsel %vm510, %v2832, %v2836
        %v2839 = vsel %vm510, %v2834, %v2830
        %v2840 = vsel %vm510, %v2836, %v2832
        %v2841 = vmul.f32 %v2837, %v516
        %v2842 = vmul.f32 %v2839, %v520
        %v2843 = vmul.f32 %v2838, %v516
        %v2844 = vmul.f32 %v2840, %v520
        %2845 = vrot.lane.b32.xlu0 %v2747, 112
        %v2846 = vpop.permute.xlu0 %2845
        %2847 = vrot.lane.b32.xlu0 %v2411, 112
        %v2848 = vpop.permute.xlu0 %2847
        %2849 = vrot.lane.b32.xlu0 %v2748, 112
        %v2850 = vpop.permute.xlu0 %2849
        %2851 = vrot.lane.b32.xlu0 %v2412, 112
        %v2852 = vpop.permute.xlu0 %2851
        %v2853 = vsel %vm531, %v2846, %v2850
        %v2854 = vsel %vm531, %v2848, %v2852
        %v2855 = vsel %vm531, %v2850, %v2846
        %v2856 = vsel %vm531, %v2852, %v2848
        %v2857 = vmul.f32 %v2853, %v537
        %v2858 = vmul.f32 %v2855, %v541
        %v2859 = vmul.f32 %v2854, %v537
        %v2860 = vmul.f32 %v2856, %v541
        %2861 = vrot.lane.b32.xlu0 %v2747, 111
        %v2862 = vpop.permute.xlu0 %2861
        %2863 = vrot.lane.b32.xlu0 %v2411, 111
        %v2864 = vpop.permute.xlu0 %2863
        %2865 = vrot.lane.b32.xlu0 %v2748, 111
        %v2866 = vpop.permute.xlu0 %2865
        %2867 = vrot.lane.b32.xlu0 %v2412, 111
        %v2868 = vpop.permute.xlu0 %2867
        %v2869 = vsel %vm552, %v2862, %v2866
        %v2870 = vsel %vm552, %v2864, %v2868
        %v2871 = vsel %vm552, %v2866, %v2862
        %v2872 = vsel %vm552, %v2868, %v2864
        %v2873 = vmul.f32 %v2869, %v558
        %v2874 = vmul.f32 %v2871, %v562
        %v2875 = vmul.f32 %v2870, %v558
        %v2876 = vmul.f32 %v2872, %v562
        %v2877 = vld [vmem:[#allocation7] sm:$0xff]
        %v2878 = vld [vmem:[#allocation7 + $0x8] sm:$0xff]
        %v2879 = vld [vmem:[#allocation7 + $0x10] sm:$0xff]
        %v2880 = vld [vmem:[#allocation7 + $0x18] sm:$0xff]
        %v2881 = vld [vmem:[#allocation7 + $0x20] sm:$0xff]
        %v2882 = vld [vmem:[#allocation7 + $0x28] sm:$0xff]
        %v2883 = vld [vmem:[#allocation7 + $0x30] sm:$0xff]
        %v2884 = vld [vmem:[#allocation7 + $0x38] sm:$0xff]
        %v2885 = vld [vmem:[%s5] sm:$0xff]
        %v2886 = vld [vmem:[%s5 + $0x8] sm:$0xff]
        %v2887 = vld [vmem:[%s5 + $0x10] sm:$0xff]
        %v2888 = vld [vmem:[%s5 + $0x18] sm:$0xff]
        %2890 = vset.pattern.permute.xlu0 0
        %2891 = vperm.xlu0 %2890, %v2885
        %v2892 = vpop.permute.xlu0 %2891
        %2895 = vset.pattern.permute.xlu0 0
        %2896 = vperm.xlu0 %2895, %v2886
        %v2897 = vpop.permute.xlu0 %2896
        %2900 = vset.pattern.permute.xlu0 0
        %2901 = vperm.xlu0 %2900, %v2887
        %v2902 = vpop.permute.xlu0 %2901
        %2905 = vset.pattern.permute.xlu0 0
        %2906 = vperm.xlu0 %2905, %v2888
        %v2907 = vpop.permute.xlu0 %2906
        %v2910 = vsel %vm599, %v2878, 0
        %v2913 = vsel %vm599, %v2880, 0
        %v2916 = vsel %vm599, %v2882, 0
        %v2919 = vsel %vm599, %v2884, 0
        %2921 = vmatprep.subr.mxu0 %v2762
        %2922 = vmatpush1.msra.mxu0 %v2761
        %2923 = vmatprep.subr.mxu0 %v2764
        %2924 = vmatpush1.msra.mxu0 %v2763
        %2925 = vmatprep.subr.mxu0 %v2778
        %2926 = vmatpush1.msra.mxu0 %v2777
        %2927 = vmatprep.subr.mxu0 %v2780
        %2928 = vmatpush1.msra.mxu0 %v2779
        %2929 = vmatprep.subr.mxu0 %v2794
        %2930 = vmatpush1.msra.mxu0 %v2793
        %2931 = vmatprep.subr.mxu0 %v2796
        %2932 = vmatpush1.msra.mxu0 %v2795
        %2933 = vmatprep.subr.mxu0 %v2810
        %2934 = vmatpush1.msra.mxu0 %v2809
        %2935 = vmatprep.subr.mxu0 %v2812
        %2936 = vmatpush1.msra.mxu0 %v2811
        %2937 = vmatprep.subr.mxu0 %v2748
        %2938 = vmatpush1.msra.mxu0 %v2747
        %2939 = vmatprep.subr.mxu0 %v2412
        %2940 = vmatpush1.msra.mxu0 %v2411
        %2941 = vmatprep.subr.mxu0 %v2826
        %2942 = vmatpush1.msra.mxu0 %v2825
        %2943 = vmatprep.subr.mxu0 %v2828
        %2944 = vmatpush1.msra.mxu0 %v2827
        %2945 = vmatprep.subr.mxu0 %v2842
        %2946 = vmatpush1.msra.mxu0 %v2841
        %2947 = vmatprep.subr.mxu0 %v2844
        %2948 = vmatpush1.msra.mxu0 %v2843
        %2949 = vmatprep.subr.mxu0 %v2858
        %2950 = vmatpush1.msra.mxu0 %v2857
        %2951 = vmatprep.subr.mxu0 %v2860
        %2952 = vmatpush1.msra.mxu0 %v2859
        %2953 = vmatprep.subr.mxu0 %v2874
        %2954 = vmatpush1.msra.mxu0 %v2873
        %2955 = vmatprep.subr.mxu0 %v2876
        %2956 = vmatpush1.msra.mxu0 %v2875
        %2957 = vmatprep.subr.mxu0 0.0
        %2958 = vmatpush1.msra.mxu0 0.0
        %2959 = vmatprep.subr.mxu0 0.0
        %2960 = vmatpush1.msra.mxu0 0.0
        %2961 = vmatprep.subr.mxu0 0.0
        %2962 = vmatpush1.msra.mxu0 0.0
        %2963 = vmatprep.subr.mxu0 0.0
        %2964 = vmatpush1.msra.mxu0 0.0
        %2965 = vmatprep.subr.mxu0 0.0
        %2966 = vmatpush1.msra.mxu0 0.0
        %2967 = vmatprep.subr.mxu0 0.0
        %2968 = vmatpush1.msra.mxu0 0.0
        %2969 = vmatprep.subr.mxu0 0.0
        %2970 = vmatpush1.msra.mxu0 0.0
        %2971 = vmatprep.subr.mxu0 0.0
        %2972 = vmatpush1.msra.mxu0 0.0
        %2973 = vmatprep.subr.mxu0 0.0
        %2974 = vmatpush1.msra.mxu0 0.0
        %2975 = vmatprep.subr.mxu0 0.0
        %2976 = vmatpush1.msra.mxu0 0.0
        %2977 = vmatprep.subr.mxu0 0.0
        %2978 = vmatpush1.msra.mxu0 0.0
        %2979 = vmatprep.subr.mxu0 0.0
        %2980 = vmatpush1.msra.mxu0 0.0
        %2981 = vmatprep.subr.mxu0 0.0
        %2982 = vmatpush1.msra.mxu0 0.0
        %2983 = vmatprep.subr.mxu0 0.0
        %2984 = vmatpush1.msra.mxu0 0.0
        %2985 = vmatprep.mubr.f32.mxu0 %v2910
        %2986 = vmatmul.mubr.f32.gmra.mrb[0].mxu0 %v2877
        %v2987 = vpop.f32.mrb[0].mxu0
        %v2988 = vadd.f32 %v2892, %v2987
        %v2989 = vpop.f32.mrb[0].mxu0
        %v2990 = vadd.f32 %v2892, %v2989
        %2991 = vmatprep.mubr.f32.mxu0 %v2913
        %2992 = vmatmul.mubr.f32.gmra.mrb[0].mxu0 %v2879
        %v2993 = vpop.f32.mrb[0].mxu0
        %v2994 = vadd.f32 %v2897, %v2993
        %v2995 = vpop.f32.mrb[0].mxu0
        %v2996 = vadd.f32 %v2897, %v2995
        %2997 = vmatprep.mubr.f32.mxu0 %v2916
        %2998 = vmatmul.mubr.f32.gmra.mrb[0].mxu0 %v2881
        %v2999 = vpop.f32.mrb[0].mxu0
        %v3000 = vadd.f32 %v2902, %v2999
        %v3001 = vpop.f32.mrb[0].mxu0
        %v3002 = vadd.f32 %v2902, %v3001
        %3003 = vmatprep.mubr.f32.mxu0 %v2919
        %3004 = vmatmul.mubr.f32.gmra.mrb[0].mxu0 %v2883
        %v3005 = vpop.f32.mrb[0].mxu0
        %v3006 = vadd.f32 %v2907, %v3005
        %v3007 = vpop.f32.mrb[0].mxu0
        %v3008 = vadd.f32 %v2907, %v3007
        %3009 = vdwg.mxu0
        %v3010 = vxor.u32 %v2988, 2147483648
        %v3011 = vxor.u32 %v2990, 2147483648
        %v3012 = vmul.f32 %v3010, 1.442695
        %v3013 = vpow.pop %v3012
        %v3014 = vmul.f32 %v3011, 1.442695
        %v3015 = vpow.pop %v3014
        %v3016 = vadd.f32 %v3013, 1.0
        %v3017 = vadd.f32 %v3015, 1.0
        %v3018 = vrcp.pop %v3016
        %v3019 = vmul.f32 1.0, %v3018
        %v3020 = vrcp.pop %v3017
        %v3021 = vmul.f32 1.0, %v3020
        %v3022 = vxor.u32 %v2994, 2147483648
        %v3023 = vxor.u32 %v2996, 2147483648
        %v3024 = vmul.f32 %v3022, 1.442695
        %v3025 = vpow.pop %v3024
        %v3026 = vmul.f32 %v3023, 1.442695
        %v3027 = vpow.pop %v3026
        %v3028 = vadd.f32 %v3025, 1.0
        %v3029 = vadd.f32 %v3027, 1.0
        %v3030 = vrcp.pop %v3028
        %v3031 = vmul.f32 1.0, %v3030
        %v3032 = vrcp.pop %v3029
        %v3033 = vmul.f32 1.0, %v3032
        %v3034 = vtanh.pop %v3000
        %v3035 = vtanh.pop %v3002
        %v3036 = vxor.u32 %v3006, 2147483648
        %v3037 = vxor.u32 %v3008, 2147483648
        %v3038 = vmul.f32 %v3036, 1.442695
        %v3039 = vpow.pop %v3038
        %v3040 = vmul.f32 %v3037, 1.442695
        %v3041 = vpow.pop %v3040
        %v3042 = vadd.f32 %v3039, 1.0
        %v3043 = vadd.f32 %v3041, 1.0
        %v3044 = vrcp.pop %v3042
        %v3045 = vmul.f32 1.0, %v3044
        %v3046 = vrcp.pop %v3043
        %v3047 = vmul.f32 1.0, %v3046
        %v3048 = vmul.f32 %v3031, %v2407
        %v3049 = vmul.f32 %v3033, %v2408
        %v3050 = vmul.f32 %v3019, %v3034
        %v3051 = vmul.f32 %v3021, %v3035
        %v3052 = vadd.f32 %v3048, %v3050
        %v3053 = vadd.f32 %v3049, %v3051
        %v3054 = vtanh.pop %v3052
        %v3055 = vtanh.pop %v3053
        %v3056 = vmul.f32 %v3045, %v3054
        %v3057 = vmul.f32 %v3047, %v3055
        %v3058 = vld [vmem:[%s6] sm:$0xf]
        %v3059 = vld [vmem:[%s7] sm:$0xf]
        %3061 = vset.pattern.permute.xlu0 0
        %3062 = vperm.xlu0 %3061, %v3059
        %v3063 = vpop.permute.xlu0 %3062
        %v3066 = vsel %vm2420, %v3058, 0
        %3068 = vmatprep.subr.mxu0 %v1466
        %3069 = vmatpush1.msra.mxu0 %v1465
        %3070 = vmatprep.subr.mxu0 %v1939
        %3071 = vmatpush1.msra.mxu0 %v1938
        %3072 = vmatprep.subr.mxu0 %v2412
        %3073 = vmatpush1.msra.mxu0 %v2411
        %3074 = vmatprep.subr.mxu0 %v3057
        %3075 = vmatpush1.msra.mxu0 %v3056
        %3076 = vmatprep.subr.mxu0 0.0
        %3077 = vmatpush1.msra.mxu0 0.0
        %3078 = vmatprep.subr.mxu0 0.0
        %3079 = vmatpush1.msra.mxu0 0.0
        %3080 = vmatprep.subr.mxu0 0.0
        %3081 = vmatpush1.msra.mxu0 0.0
        %3082 = vmatprep.subr.mxu0 0.0
        %3083 = vmatpush1.msra.mxu0 0.0
        %3084 = vmatprep.subr.mxu0 0.0
        %3085 = vmatpush1.msra.mxu0 0.0
        %3086 = vmatprep.subr.mxu0 0.0
        %3087 = vmatpush1.msra.mxu0 0.0
        %3088 = vmatprep.subr.mxu0 0.0
        %3089 = vmatpush1.msra.mxu0 0.0
        %3090 = vmatprep.subr.mxu0 0.0
        %3091 = vmatpush1.msra.mxu0 0.0
        %3092 = vmatprep.subr.mxu0 0.0
        %3093 = vmatpush1.msra.mxu0 0.0
        %3094 = vmatprep.subr.mxu0 0.0
        %3095 = vmatpush1.msra.mxu0 0.0
        %3096 = vmatprep.subr.mxu0 0.0
        %3097 = vmatpush1.msra.mxu0 0.0
        %3098 = vmatprep.subr.mxu0 0.0
        %3099 = vmatpush1.msra.mxu0 0.0
        %3100 = vmatprep.subr.mxu0 0.0
        %3101 = vmatpush1.msra.mxu0 0.0
        %3102 = vmatprep.subr.mxu0 0.0
        %3103 = vmatpush1.msra.mxu0 0.0
        %3104 = vmatprep.subr.mxu0 0.0
        %3105 = vmatpush1.msra.mxu0 0.0
        %3106 = vmatprep.subr.mxu0 0.0
        %3107 = vmatpush1.msra.mxu0 0.0
        %3108 = vmatprep.subr.mxu0 0.0
        %3109 = vmatpush1.msra.mxu0 0.0
        %3110 = vmatprep.subr.mxu0 0.0
        %3111 = vmatpush1.msra.mxu0 0.0
        %3112 = vmatprep.subr.mxu0 0.0
        %3113 = vmatpush1.msra.mxu0 0.0
        %3114 = vmatprep.subr.mxu0 0.0
        %3115 = vmatpush1.msra.mxu0 0.0
        %3116 = vmatprep.subr.mxu0 0.0
        %3117 = vmatpush1.msra.mxu0 0.0
        %3118 = vmatprep.subr.mxu0 0.0
        %3119 = vmatpush1.msra.mxu0 0.0
        %3120 = vmatprep.subr.mxu0 0.0
        %3121 = vmatpush1.msra.mxu0 0.0
        %3122 = vmatprep.subr.mxu0 0.0
        %3123 = vmatpush1.msra.mxu0 0.0
        %3124 = vmatprep.subr.mxu0 0.0
        %3125 = vmatpush1.msra.mxu0 0.0
        %3126 = vmatprep.subr.mxu0 0.0
        %3127 = vmatpush1.msra.mxu0 0.0
        %3128 = vmatprep.subr.mxu0 0.0
        %3129 = vmatpush1.msra.mxu0 0.0
        %3130 = vmatprep.subr.mxu0 0.0
        %3131 = vmatpush1.msra.mxu0 0.0
        %3132 = vmatprep.mubr.f32.mxu0 0.0
        %3133 = vmatmul.mubr.f32.gmra.mrb[0].mxu0 %v3066
        %v3134 = vpop.f32.mrb[0].mxu0
        %v3135 = vadd.f32 %v3063, %v3134
        %v3136 = vpop.f32.mrb[0].mxu0
        %v3137 = vadd.f32 %v3063, %v3136
        %3138 = vdwg.mxu0
        %v3139 = vtanh.pop %v3135
        %v3140 = vtanh.pop %v3137
        %v3143 = vcombine.low %v3139, %v3140
        %s3145 = scalar_lea.vmem %s373, 8 [#allocation8]
        %3146 = vst [vmem:[%s3145] sm:$0xff] %v3143
        %v3147 = vsel %vm394, %v3139, 0.0
        %v3148 = vsel %vm394, %v3140, 0.0
        %3149 = vrot.lane.b32.xlu0 %v3147, 17
        %v3150 = vpop.permute.xlu0 %3149
        %3151 = vrot.lane.b32.xlu0 %v3148, 17
        %v3152 = vpop.permute.xlu0 %3151
        %v3153 = vsel %vm405, %v3150, %v3152
        %v3154 = vsel %vm405, %v3152, %v3150
        %v3155 = vmul.f32 %v3154, %v411
        %v3156 = vmul.f32 %v3153, %v415
        %3157 = vrot.lane.b32.xlu0 %v3147, 16
        %v3158 = vpop.permute.xlu0 %3157
        %3159 = vrot.lane.b32.xlu0 %v3148, 16
        %v3160 = vpop.permute.xlu0 %3159
        %v3161 = vsel %vm426, %v3158, %v3160
        %v3162 = vsel %vm426, %v3160, %v3158
        %v3163 = vmul.f32 %v3162, %v432
        %v3164 = vmul.f32 %v3161, %v436
        %3165 = vrot.lane.b32.xlu0 %v3147, 15
        %v3166 = vpop.permute.xlu0 %3165
        %3167 = vrot.lane.b32.xlu0 %v3148, 15
        %v3168 = vpop.permute.xlu0 %3167
        %v3169 = vsel %vm447, %v3166, %v3168
        %v3170 = vsel %vm447, %v3168, %v3166
        %v3171 = vmul.f32 %v3170, %v453
        %v3172 = vmul.f32 %v3169, %v457
        %3173 = vrot.lane.b32.xlu0 %v3147, 1
        %v3174 = vpop.permute.xlu0 %3173
        %3175 = vrot.lane.b32.xlu0 %v3148, 1
        %v3176 = vpop.permute.xlu0 %3175
        %v3177 = vsel %vm468, %v3174, %v3176
        %v3178 = vsel %vm468, %v3176, %v3174
        %v3179 = vmul.f32 %v3178, %v474
        %v3180 = vmul.f32 %v3177, %v478
        %3181 = vrot.lane.b32.xlu0 %v3147, 127
        %v3182 = vpop.permute.xlu0 %3181
        %3183 = vrot.lane.b32.xlu0 %v3148, 127
        %v3184 = vpop.permute.xlu0 %3183
        %v3185 = vsel %vm489, %v3182, %v3184
        %v3186 = vsel %vm489, %v3184, %v3182
        %v3187 = vmul.f32 %v3185, %v495
        %v3188 = vmul.f32 %v3186, %v499
        %3189 = vrot.lane.b32.xlu0 %v3147, 113
        %v3190 = vpop.permute.xlu0 %3189
        %3191 = vrot.lane.b32.xlu0 %v3148, 113
        %v3192 = vpop.permute.xlu0 %3191
        %v3193 = vsel %vm510, %v3190, %v3192
        %v3194 = vsel %vm510, %v3192, %v3190
        %v3195 = vmul.f32 %v3193, %v516
        %v3196 = vmul.f32 %v3194, %v520
        %3197 = vrot.lane.b32.xlu0 %v3147, 112
        %v3198 = vpop.permute.xlu0 %3197
        %3199 = vrot.lane.b32.xlu0 %v3148, 112
        %v3200 = vpop.permute.xlu0 %3199
        %v3201 = vsel %vm531, %v3198, %v3200
        %v3202 = vsel %vm531, %v3200, %v3198
        %v3203 = vmul.f32 %v3201, %v537
        %v3204 = vmul.f32 %v3202, %v541
        %3205 = vrot.lane.b32.xlu0 %v3147, 111
        %v3206 = vpop.permute.xlu0 %3205
        %3207 = vrot.lane.b32.xlu0 %v3148, 111
        %v3208 = vpop.permute.xlu0 %3207
        %v3209 = vsel %vm552, %v3206, %v3208
        %v3210 = vsel %vm552, %v3208, %v3206
        %v3211 = vmul.f32 %v3209, %v558
        %v3212 = vmul.f32 %v3210, %v562
        %v3213 = vld [vmem:[#allocation5] sm:$0xff]
        %v3214 = vld [vmem:[#allocation5 + $0x8] sm:$0xff]
        %v3215 = vld [vmem:[#allocation5 + $0x10] sm:$0xff]
        %v3216 = vld [vmem:[#allocation5 + $0x18] sm:$0xff]
        %v3217 = vld [vmem:[#allocation5 + $0x20] sm:$0xff]
        %v3218 = vld [vmem:[#allocation5 + $0x28] sm:$0xff]
        %v3219 = vld [vmem:[#allocation5 + $0x30] sm:$0xff]
        %v3220 = vld [vmem:[#allocation5 + $0x38] sm:$0xff]
        %v3221 = vld [vmem:[%s3] sm:$0xff]
        %v3222 = vld [vmem:[%s3 + $0x8] sm:$0xff]
        %v3223 = vld [vmem:[%s3 + $0x10] sm:$0xff]
        %v3224 = vld [vmem:[%s3 + $0x18] sm:$0xff]
        %3226 = vset.pattern.permute.xlu0 0
        %3227 = vperm.xlu0 %3226, %v3221
        %v3228 = vpop.permute.xlu0 %3227
        %3231 = vset.pattern.permute.xlu0 0
        %3232 = vperm.xlu0 %3231, %v3222
        %v3233 = vpop.permute.xlu0 %3232
        %3236 = vset.pattern.permute.xlu0 0
        %3237 = vperm.xlu0 %3236, %v3223
        %v3238 = vpop.permute.xlu0 %3237
        %3241 = vset.pattern.permute.xlu0 0
        %3242 = vperm.xlu0 %3241, %v3224
        %v3243 = vpop.permute.xlu0 %3242
        %v3246 = vsel %vm599, %v3214, 0
        %v3249 = vsel %vm599, %v3216, 0
        %v3252 = vsel %vm599, %v3218, 0
        %v3255 = vsel %vm599, %v3220, 0
        %3257 = vmatprep.subr.mxu0 %v3156
        %3258 = vmatpush1.msra.mxu0 %v3155
        %3259 = vmatprep.subr.mxu0 %v2762
        %3260 = vmatpush1.msra.mxu0 %v2761
        %3261 = vmatprep.subr.mxu0 %v3164
        %3262 = vmatpush1.msra.mxu0 %v3163
        %3263 = vmatprep.subr.mxu0 %v2778
        %3264 = vmatpush1.msra.mxu0 %v2777
        %3265 = vmatprep.subr.mxu0 %v3172
        %3266 = vmatpush1.msra.mxu0 %v3171
        %3267 = vmatprep.subr.mxu0 %v2794
        %3268 = vmatpush1.msra.mxu0 %v2793
        %3269 = vmatprep.subr.mxu0 %v3180
        %3270 = vmatpush1.msra.mxu0 %v3179
        %3271 = vmatprep.subr.mxu0 %v2810
        %3272 = vmatpush1.msra.mxu0 %v2809
        %3273 = vmatprep.subr.mxu0 %v3148
        %3274 = vmatpush1.msra.mxu0 %v3147
        %3275 = vmatprep.subr.mxu0 %v2748
        %3276 = vmatpush1.msra.mxu0 %v2747
        %3277 = vmatprep.subr.mxu0 %v3188
        %3278 = vmatpush1.msra.mxu0 %v3187
        %3279 = vmatprep.subr.mxu0 %v2826
        %3280 = vmatpush1.msra.mxu0 %v2825
        %3281 = vmatprep.subr.mxu0 %v3196
        %3282 = vmatpush1.msra.mxu0 %v3195
        %3283 = vmatprep.subr.mxu0 %v2842
        %3284 = vmatpush1.msra.mxu0 %v2841
        %3285 = vmatprep.subr.mxu0 %v3204
        %3286 = vmatpush1.msra.mxu0 %v3203
        %3287 = vmatprep.subr.mxu0 %v2858
        %3288 = vmatpush1.msra.mxu0 %v2857
        %3289 = vmatprep.subr.mxu0 %v3212
        %3290 = vmatpush1.msra.mxu0 %v3211
        %3291 = vmatprep.subr.mxu0 %v2874
        %3292 = vmatpush1.msra.mxu0 %v2873
        %3293 = vmatprep.subr.mxu0 0.0
        %3294 = vmatpush1.msra.mxu0 0.0
        %3295 = vmatprep.subr.mxu0 0.0
        %3296 = vmatpush1.msra.mxu0 0.0
        %3297 = vmatprep.subr.mxu0 0.0
        %3298 = vmatpush1.msra.mxu0 0.0
        %3299 = vmatprep.subr.mxu0 0.0
        %3300 = vmatpush1.msra.mxu0 0.0
        %3301 = vmatprep.subr.mxu0 0.0
        %3302 = vmatpush1.msra.mxu0 0.0
        %3303 = vmatprep.subr.mxu0 0.0
        %3304 = vmatpush1.msra.mxu0 0.0
        %3305 = vmatprep.subr.mxu0 0.0
        %3306 = vmatpush1.msra.mxu0 0.0
        %3307 = vmatprep.subr.mxu0 0.0
        %3308 = vmatpush1.msra.mxu0 0.0
        %3309 = vmatprep.subr.mxu0 0.0
        %3310 = vmatpush1.msra.mxu0 0.0
        %3311 = vmatprep.subr.mxu0 0.0
        %3312 = vmatpush1.msra.mxu0 0.0
        %3313 = vmatprep.subr.mxu0 0.0
        %3314 = vmatpush1.msra.mxu0 0.0
        %3315 = vmatprep.subr.mxu0 0.0
        %3316 = vmatpush1.msra.mxu0 0.0
        %3317 = vmatprep.subr.mxu0 0.0
        %3318 = vmatpush1.msra.mxu0 0.0
        %3319 = vmatprep.subr.mxu0 0.0
        %3320 = vmatpush1.msra.mxu0 0.0
        %3321 = vmatprep.mubr.f32.mxu0 %v3246
        %3322 = vmatmul.mubr.f32.gmra.mrb[0].mxu0 %v3213
        %v3323 = vpop.f32.mrb[0].mxu0
        %v3324 = vadd.f32 %v3228, %v3323
        %v3325 = vpop.f32.mrb[0].mxu0
        %v3326 = vadd.f32 %v3228, %v3325
        %3327 = vmatprep.mubr.f32.mxu0 %v3249
        %3328 = vmatmul.mubr.f32.gmra.mrb[0].mxu0 %v3215
        %v3329 = vpop.f32.mrb[0].mxu0
        %v3330 = vadd.f32 %v3233, %v3329
        %v3331 = vpop.f32.mrb[0].mxu0
        %v3332 = vadd.f32 %v3233, %v3331
        %3333 = vmatprep.mubr.f32.mxu0 %v3252
        %3334 = vmatmul.mubr.f32.gmra.mrb[0].mxu0 %v3217
        %v3335 = vpop.f32.mrb[0].mxu0
        %v3336 = vadd.f32 %v3238, %v3335
        %v3337 = vpop.f32.mrb[0].mxu0
        %v3338 = vadd.f32 %v3238, %v3337
        %3339 = vmatprep.mubr.f32.mxu0 %v3255
        %3340 = vmatmul.mubr.f32.gmra.mrb[0].mxu0 %v3219
        %v3341 = vpop.f32.mrb[0].mxu0
        %v3342 = vadd.f32 %v3243, %v3341
        %v3343 = vpop.f32.mrb[0].mxu0
        %v3344 = vadd.f32 %v3243, %v3343
        %3345 = vdwg.mxu0
        %v3346 = vxor.u32 %v3324, 2147483648
        %v3347 = vxor.u32 %v3326, 2147483648
        %v3348 = vmul.f32 %v3346, 1.442695
        %v3349 = vpow.pop %v3348
        %v3350 = vmul.f32 %v3347, 1.442695
        %v3351 = vpow.pop %v3350
        %v3352 = vadd.f32 %v3349, 1.0
        %v3353 = vadd.f32 %v3351, 1.0
        %v3354 = vrcp.pop %v3352
        %v3355 = vmul.f32 1.0, %v3354
        %v3356 = vrcp.pop %v3353
        %v3357 = vmul.f32 1.0, %v3356
        %v3358 = vxor.u32 %v3330, 2147483648
        %v3359 = vxor.u32 %v3332, 2147483648
        %v3360 = vmul.f32 %v3358, 1.442695
        %v3361 = vpow.pop %v3360
        %v3362 = vmul.f32 %v3359, 1.442695
        %v3363 = vpow.pop %v3362
        %v3364 = vadd.f32 %v3361, 1.0
        %v3365 = vadd.f32 %v3363, 1.0
        %v3366 = vrcp.pop %v3364
        %v3367 = vmul.f32 1.0, %v3366
        %v3368 = vrcp.pop %v3365
        %v3369 = vmul.f32 1.0, %v3368
        %v3370 = vtanh.pop %v3336
        %v3371 = vtanh.pop %v3338
        %v3372 = vxor.u32 %v3342, 2147483648
        %v3373 = vxor.u32 %v3344, 2147483648
        %v3374 = vmul.f32 %v3372, 1.442695
        %v3375 = vpow.pop %v3374
        %v3376 = vmul.f32 %v3373, 1.442695
        %v3377 = vpow.pop %v3376
        %v3378 = vadd.f32 %v3375, 1.0
        %v3379 = vadd.f32 %v3377, 1.0
        %v3380 = vrcp.pop %v3378
        %v3381 = vmul.f32 1.0, %v3380
        %v3382 = vrcp.pop %v3379
        %v3383 = vmul.f32 1.0, %v3382
        %v3384 = vmul.f32 %v3367, %v2743
        %v3385 = vmul.f32 %v3369, %v2744
        %v3386 = vmul.f32 %v3355, %v3370
        %v3387 = vmul.f32 %v3357, %v3371
        %v3388 = vadd.f32 %v3384, %v3386
        %v3389 = vadd.f32 %v3385, %v3387
        %v3390 = vtanh.pop %v3388
        %v3391 = vtanh.pop %v3389
        %v3392 = vmul.f32 %v3381, %v3390
        %v3393 = vmul.f32 %v3383, %v3391
        %3394 = vrot.lane.b32.xlu0 %v3392, 17
        %v3395 = vpop.permute.xlu0 %3394
        %3396 = vrot.lane.b32.xlu0 %v3056, 17
        %v3397 = vpop.permute.xlu0 %3396
        %3398 = vrot.lane.b32.xlu0 %v3393, 17
        %v3399 = vpop.permute.xlu0 %3398
        %3400 = vrot.lane.b32.xlu0 %v3057, 17
        %v3401 = vpop.permute.xlu0 %3400
        %v3402 = vsel %vm405, %v3395, %v3399
        %v3403 = vsel %vm405, %v3397, %v3401
        %v3404 = vsel %vm405, %v3399, %v3395
        %v3405 = vsel %vm405, %v3401, %v3397
        %v3406 = vmul.f32 %v3404, %v411
        %v3407 = vmul.f32 %v3402, %v415
        %v3408 = vmul.f32 %v3405, %v411
        %v3409 = vmul.f32 %v3403, %v415
        %3410 = vrot.lane.b32.xlu0 %v3392, 16
        %v3411 = vpop.permute.xlu0 %3410
        %3412 = vrot.lane.b32.xlu0 %v3056, 16
        %v3413 = vpop.permute.xlu0 %3412
        %3414 = vrot.lane.b32.xlu0 %v3393, 16
        %v3415 = vpop.permute.xlu0 %3414
        %3416 = vrot.lane.b32.xlu0 %v3057, 16
        %v3417 = vpop.permute.xlu0 %3416
        %v3418 = vsel %vm426, %v3411, %v3415
        %v3419 = vsel %vm426, %v3413, %v3417
        %v3420 = vsel %vm426, %v3415, %v3411
        %v3421 = vsel %vm426, %v3417, %v3413
        %v3422 = vmul.f32 %v3420, %v432
        %v3423 = vmul.f32 %v3418, %v436
        %v3424 = vmul.f32 %v3421, %v432
        %v3425 = vmul.f32 %v3419, %v436
        %3426 = vrot.lane.b32.xlu0 %v3392, 15
        %v3427 = vpop.permute.xlu0 %3426
        %3428 = vrot.lane.b32.xlu0 %v3056, 15
        %v3429 = vpop.permute.xlu0 %3428
        %3430 = vrot.lane.b32.xlu0 %v3393, 15
        %v3431 = vpop.permute.xlu0 %3430
        %3432 = vrot.lane.b32.xlu0 %v3057, 15
        %v3433 = vpop.permute.xlu0 %3432
        %v3434 = vsel %vm447, %v3427, %v3431
        %v3435 = vsel %vm447, %v3429, %v3433
        %v3436 = vsel %vm447, %v3431, %v3427
        %v3437 = vsel %vm447, %v3433, %v3429
        %v3438 = vmul.f32 %v3436, %v453
        %v3439 = vmul.f32 %v3434, %v457
        %v3440 = vmul.f32 %v3437, %v453
        %v3441 = vmul.f32 %v3435, %v457
        %3442 = vrot.lane.b32.xlu0 %v3392, 1
        %v3443 = vpop.permute.xlu0 %3442
        %3444 = vrot.lane.b32.xlu0 %v3056, 1
        %v3445 = vpop.permute.xlu0 %3444
        %3446 = vrot.lane.b32.xlu0 %v3393, 1
        %v3447 = vpop.permute.xlu0 %3446
        %3448 = vrot.lane.b32.xlu0 %v3057, 1
        %v3449 = vpop.permute.xlu0 %3448
        %v3450 = vsel %vm468, %v3443, %v3447
        %v3451 = vsel %vm468, %v3445, %v3449
        %v3452 = vsel %vm468, %v3447, %v3443
        %v3453 = vsel %vm468, %v3449, %v3445
        %v3454 = vmul.f32 %v3452, %v474
        %v3455 = vmul.f32 %v3450, %v478
        %v3456 = vmul.f32 %v3453, %v474
        %v3457 = vmul.f32 %v3451, %v478
        %3458 = vrot.lane.b32.xlu0 %v3392, 127
        %v3459 = vpop.permute.xlu0 %3458
        %3460 = vrot.lane.b32.xlu0 %v3056, 127
        %v3461 = vpop.permute.xlu0 %3460
        %3462 = vrot.lane.b32.xlu0 %v3393, 127
        %v3463 = vpop.permute.xlu0 %3462
        %3464 = vrot.lane.b32.xlu0 %v3057, 127
        %v3465 = vpop.permute.xlu0 %3464
        %v3466 = vsel %vm489, %v3459, %v3463
        %v3467 = vsel %vm489, %v3461, %v3465
        %v3468 = vsel %vm489, %v3463, %v3459
        %v3469 = vsel %vm489, %v3465, %v3461
        %v3470 = vmul.f32 %v3466, %v495
        %v3471 = vmul.f32 %v3468, %v499
        %v3472 = vmul.f32 %v3467, %v495
        %v3473 = vmul.f32 %v3469, %v499
        %3474 = vrot.lane.b32.xlu0 %v3392, 113
        %v3475 = vpop.permute.xlu0 %3474
        %3476 = vrot.lane.b32.xlu0 %v3056, 113
        %v3477 = vpop.permute.xlu0 %3476
        %3478 = vrot.lane.b32.xlu0 %v3393, 113
        %v3479 = vpop.permute.xlu0 %3478
        %3480 = vrot.lane.b32.xlu0 %v3057, 113
        %v3481 = vpop.permute.xlu0 %3480
        %v3482 = vsel %vm510, %v3475, %v3479
        %v3483 = vsel %vm510, %v3477, %v3481
        %v3484 = vsel %vm510, %v3479, %v3475
        %v3485 = vsel %vm510, %v3481, %v3477
        %v3486 = vmul.f32 %v3482, %v516
        %v3487 = vmul.f32 %v3484, %v520
        %v3488 = vmul.f32 %v3483, %v516
        %v3489 = vmul.f32 %v3485, %v520
        %3490 = vrot.lane.b32.xlu0 %v3392, 112
        %v3491 = vpop.permute.xlu0 %3490
        %3492 = vrot.lane.b32.xlu0 %v3056, 112
        %v3493 = vpop.permute.xlu0 %3492
        %3494 = vrot.lane.b32.xlu0 %v3393, 112
        %v3495 = vpop.permute.xlu0 %3494
        %3496 = vrot.lane.b32.xlu0 %v3057, 112
        %v3497 = vpop.permute.xlu0 %3496
        %v3498 = vsel %vm531, %v3491, %v3495
        %v3499 = vsel %vm531, %v3493, %v3497
        %v3500 = vsel %vm531, %v3495, %v3491
        %v3501 = vsel %vm531, %v3497, %v3493
        %v3502 = vmul.f32 %v3498, %v537
        %v3503 = vmul.f32 %v3500, %v541
        %v3504 = vmul.f32 %v3499, %v537
        %v3505 = vmul.f32 %v3501, %v541
        %3506 = vrot.lane.b32.xlu0 %v3392, 111
        %v3507 = vpop.permute.xlu0 %3506
        %3508 = vrot.lane.b32.xlu0 %v3056, 111
        %v3509 = vpop.permute.xlu0 %3508
        %3510 = vrot.lane.b32.xlu0 %v3393, 111
        %v3511 = vpop.permute.xlu0 %3510
        %3512 = vrot.lane.b32.xlu0 %v3057, 111
        %v3513 = vpop.permute.xlu0 %3512
        %v3514 = vsel %vm552, %v3507, %v3511
        %v3515 = vsel %vm552, %v3509, %v3513
        %v3516 = vsel %vm552, %v3511, %v3507
        %v3517 = vsel %vm552, %v3513, %v3509
        %v3518 = vmul.f32 %v3514, %v558
        %v3519 = vmul.f32 %v3516, %v562
        %v3520 = vmul.f32 %v3515, %v558
        %v3521 = vmul.f32 %v3517, %v562
        %v3522 = vld [vmem:[#allocation7] sm:$0xff]
        %v3523 = vld [vmem:[#allocation7 + $0x8] sm:$0xff]
        %v3524 = vld [vmem:[#allocation7 + $0x10] sm:$0xff]
        %v3525 = vld [vmem:[#allocation7 + $0x18] sm:$0xff]
        %v3526 = vld [vmem:[#allocation7 + $0x20] sm:$0xff]
        %v3527 = vld [vmem:[#allocation7 + $0x28] sm:$0xff]
        %v3528 = vld [vmem:[#allocation7 + $0x30] sm:$0xff]
        %v3529 = vld [vmem:[#allocation7 + $0x38] sm:$0xff]
        %v3530 = vld [vmem:[%s5] sm:$0xff]
        %v3531 = vld [vmem:[%s5 + $0x8] sm:$0xff]
        %v3532 = vld [vmem:[%s5 + $0x10] sm:$0xff]
        %v3533 = vld [vmem:[%s5 + $0x18] sm:$0xff]
        %3535 = vset.pattern.permute.xlu0 0
        %3536 = vperm.xlu0 %3535, %v3530
        %v3537 = vpop.permute.xlu0 %3536
        %3540 = vset.pattern.permute.xlu0 0
        %3541 = vperm.xlu0 %3540, %v3531
        %v3542 = vpop.permute.xlu0 %3541
        %3545 = vset.pattern.permute.xlu0 0
        %3546 = vperm.xlu0 %3545, %v3532
        %v3547 = vpop.permute.xlu0 %3546
        %3550 = vset.pattern.permute.xlu0 0
        %3551 = vperm.xlu0 %3550, %v3533
        %v3552 = vpop.permute.xlu0 %3551
        %v3555 = vsel %vm599, %v3523, 0
        %v3558 = vsel %vm599, %v3525, 0
        %v3561 = vsel %vm599, %v3527, 0
        %v3564 = vsel %vm599, %v3529, 0
        %3566 = vmatprep.subr.mxu0 %v3407
        %3567 = vmatpush1.msra.mxu0 %v3406
        %3568 = vmatprep.subr.mxu0 %v3409
        %3569 = vmatpush1.msra.mxu0 %v3408
        %3570 = vmatprep.subr.mxu0 %v3423
        %3571 = vmatpush1.msra.mxu0 %v3422
        %3572 = vmatprep.subr.mxu0 %v3425
        %3573 = vmatpush1.msra.mxu0 %v3424
        %3574 = vmatprep.subr.mxu0 %v3439
        %3575 = vmatpush1.msra.mxu0 %v3438
        %3576 = vmatprep.subr.mxu0 %v3441
        %3577 = vmatpush1.msra.mxu0 %v3440
        %3578 = vmatprep.subr.mxu0 %v3455
        %3579 = vmatpush1.msra.mxu0 %v3454
        %3580 = vmatprep.subr.mxu0 %v3457
        %3581 = vmatpush1.msra.mxu0 %v3456
        %3582 = vmatprep.subr.mxu0 %v3393
        %3583 = vmatpush1.msra.mxu0 %v3392
        %3584 = vmatprep.subr.mxu0 %v3057
        %3585 = vmatpush1.msra.mxu0 %v3056
        %3586 = vmatprep.subr.mxu0 %v3471
        %3587 = vmatpush1.msra.mxu0 %v3470
        %3588 = vmatprep.subr.mxu0 %v3473
        %3589 = vmatpush1.msra.mxu0 %v3472
        %3590 = vmatprep.subr.mxu0 %v3487
        %3591 = vmatpush1.msra.mxu0 %v3486
        %3592 = vmatprep.subr.mxu0 %v3489
        %3593 = vmatpush1.msra.mxu0 %v3488
        %3594 = vmatprep.subr.mxu0 %v3503
        %3595 = vmatpush1.msra.mxu0 %v3502
        %3596 = vmatprep.subr.mxu0 %v3505
        %3597 = vmatpush1.msra.mxu0 %v3504
        %3598 = vmatprep.subr.mxu0 %v3519
        %3599 = vmatpush1.msra.mxu0 %v3518
        %3600 = vmatprep.subr.mxu0 %v3521
        %3601 = vmatpush1.msra.mxu0 %v3520
        %3602 = vmatprep.subr.mxu0 0.0
        %3603 = vmatpush1.msra.mxu0 0.0
        %3604 = vmatprep.subr.mxu0 0.0
        %3605 = vmatpush1.msra.mxu0 0.0
        %3606 = vmatprep.subr.mxu0 0.0
        %3607 = vmatpush1.msra.mxu0 0.0
        %3608 = vmatprep.subr.mxu0 0.0
        %3609 = vmatpush1.msra.mxu0 0.0
        %3610 = vmatprep.subr.mxu0 0.0
        %3611 = vmatpush1.msra.mxu0 0.0
        %3612 = vmatprep.subr.mxu0 0.0
        %3613 = vmatpush1.msra.mxu0 0.0
        %3614 = vmatprep.subr.mxu0 0.0
        %3615 = vmatpush1.msra.mxu0 0.0
        %3616 = vmatprep.subr.mxu0 0.0
        %3617 = vmatpush1.msra.mxu0 0.0
        %3618 = vmatprep.subr.mxu0 0.0
        %3619 = vmatpush1.msra.mxu0 0.0
        %3620 = vmatprep.subr.mxu0 0.0
        %3621 = vmatpush1.msra.mxu0 0.0
        %3622 = vmatprep.subr.mxu0 0.0
        %3623 = vmatpush1.msra.mxu0 0.0
        %3624 = vmatprep.subr.mxu0 0.0
        %3625 = vmatpush1.msra.mxu0 0.0
        %3626 = vmatprep.subr.mxu0 0.0
        %3627 = vmatpush1.msra.mxu0 0.0
        %3628 = vmatprep.subr.mxu0 0.0
        %3629 = vmatpush1.msra.mxu0 0.0
        %3630 = vmatprep.mubr.f32.mxu0 %v3555
        %3631 = vmatmul.mubr.f32.gmra.mrb[0].mxu0 %v3522
        %v3632 = vpop.f32.mrb[0].mxu0
        %v3633 = vadd.f32 %v3537, %v3632
        %v3634 = vpop.f32.mrb[0].mxu0
        %v3635 = vadd.f32 %v3537, %v3634
        %3636 = vmatprep.mubr.f32.mxu0 %v3558
        %3637 = vmatmul.mubr.f32.gmra.mrb[0].mxu0 %v3524
        %v3638 = vpop.f32.mrb[0].mxu0
        %v3639 = vadd.f32 %v3542, %v3638
        %v3640 = vpop.f32.mrb[0].mxu0
        %v3641 = vadd.f32 %v3542, %v3640
        %3642 = vmatprep.mubr.f32.mxu0 %v3561
        %3643 = vmatmul.mubr.f32.gmra.mrb[0].mxu0 %v3526
        %v3644 = vpop.f32.mrb[0].mxu0
        %v3645 = vadd.f32 %v3547, %v3644
        %v3646 = vpop.f32.mrb[0].mxu0
        %v3647 = vadd.f32 %v3547, %v3646
        %3648 = vmatprep.mubr.f32.mxu0 %v3564
        %3649 = vmatmul.mubr.f32.gmra.mrb[0].mxu0 %v3528
        %v3650 = vpop.f32.mrb[0].mxu0
        %v3651 = vadd.f32 %v3552, %v3650
        %v3652 = vpop.f32.mrb[0].mxu0
        %v3653 = vadd.f32 %v3552, %v3652
        %3654 = vdwg.mxu0
        %v3655 = vxor.u32 %v3633, 2147483648
        %v3656 = vxor.u32 %v3635, 2147483648
        %v3657 = vmul.f32 %v3655, 1.442695
        %v3658 = vpow.pop %v3657
        %v3659 = vmul.f32 %v3656, 1.442695
        %v3660 = vpow.pop %v3659
        %v3661 = vadd.f32 %v3658, 1.0
        %v3662 = vadd.f32 %v3660, 1.0
        %v3663 = vrcp.pop %v3661
        %v3664 = vmul.f32 1.0, %v3663
        %v3665 = vrcp.pop %v3662
        %v3666 = vmul.f32 1.0, %v3665
        %v3667 = vxor.u32 %v3639, 2147483648
        %v3668 = vxor.u32 %v3641, 2147483648
        %v3669 = vmul.f32 %v3667, 1.442695
        %v3670 = vpow.pop %v3669
        %v3671 = vmul.f32 %v3668, 1.442695
        %v3672 = vpow.pop %v3671
        %v3673 = vadd.f32 %v3670, 1.0
        %v3674 = vadd.f32 %v3672, 1.0
        %v3675 = vrcp.pop %v3673
        %v3676 = vmul.f32 1.0, %v3675
        %v3677 = vrcp.pop %v3674
        %v3678 = vmul.f32 1.0, %v3677
        %v3679 = vtanh.pop %v3645
        %v3680 = vtanh.pop %v3647
        %v3681 = vxor.u32 %v3651, 2147483648
        %v3682 = vxor.u32 %v3653, 2147483648
        %v3683 = vmul.f32 %v3681, 1.442695
        %v3684 = vpow.pop %v3683
        %v3685 = vmul.f32 %v3682, 1.442695
        %v3686 = vpow.pop %v3685
        %v3687 = vadd.f32 %v3684, 1.0
        %v3688 = vadd.f32 %v3686, 1.0
        %v3689 = vrcp.pop %v3687
        %v3690 = vmul.f32 1.0, %v3689
        %v3691 = vrcp.pop %v3688
        %v3692 = vmul.f32 1.0, %v3691
        %v3693 = vmul.f32 %v3676, %v3052
        %v3694 = vmul.f32 %v3678, %v3053
        %v3695 = vmul.f32 %v3664, %v3679
        %v3696 = vmul.f32 %v3666, %v3680
        %v3697 = vadd.f32 %v3693, %v3695
        %v3698 = vadd.f32 %v3694, %v3696
        %v3699 = vtanh.pop %v3697
        %v3700 = vtanh.pop %v3698
        %v3701 = vmul.f32 %v3690, %v3699
        %v3702 = vmul.f32 %v3692, %v3700
        %3703 = vst [vmem:[%s380] sm:$0xff] %v1938
        %3704 = vst [vmem:[%s380 + $0x8] sm:$0xff] %v1939
        %s3705 = scalar_lea.vmem %s380, 16 [#allocation9]
        %3706 = vst [vmem:[%s3705] sm:$0xff] %v2411
        %3707 = vst [vmem:[%s3705 + $0x8] sm:$0xff] %v2412
        %s3708 = scalar_lea.vmem %s380, 32 [#allocation9]
        %3709 = vst [vmem:[%s3708] sm:$0xff] %v3056
        %3710 = vst [vmem:[%s3708 + $0x8] sm:$0xff] %v3057
        %s3711 = scalar_lea.vmem %s380, 48 [#allocation9]
        %3712 = vst [vmem:[%s3711] sm:$0xff] %v3701
        %3713 = vst [vmem:[%s3711 + $0x8] sm:$0xff] %v3702
        %s3714 = sand.u32 %s210, 1
        %s3715 = scalar_lea.sflag [#allocation4], %s3714
        %s3716 = sand.u32 %s210, 1
        %s3717 = smul.addr %s3716, 16
        %s3718 = scalar_lea.vmem [#allocation8], %s3717
        %s3719 = sand.u32 %s236, 1
        %s3720 = scalar_lea.sflag [#allocation10], %s3719
        %s3721 = sand.u32 %s236, 1
        %s3722 = smul.addr %s3721, 64
        %s3723 = scalar_lea.vmem [#allocation9], %s3722
        // Predicated region
        $region65: #{tpu_custom_call.1} parent=51 // pred_check
          %p3724 = pneg %p220
        $region66: #{tpu_custom_call.1} parent=51 // pred_check_branch
          %3726 = sbr.rel (%p3724) target = $region68
        $region67: #{tpu_custom_call.1} parent=51 // pred_region
          %s3728 = ssub.s32 256, 256
          %3729 = vsyncadd %s3715, %s3728
          %s3730 = smul.addr %s29, 4
          %s3731 = smul.addr %s3730, 64
          %s3732 = scalar_lea.hbm %s8, %s3731
          %s3733 = sshll.u32 %s3718, 4
          %s3734 = int_to_ptr.vmem [resolvable:$true] %s3733
          %3739 = dma.vmem_to_hbm [thread:$0]  %s3734, 256, %s3732, %s3715, 128, 128, 8
        $region68: #{tpu_custom_call.1} parent=51 // pred_fallthru
          _
        // Predicated region
        $region69: #{tpu_custom_call.1} parent=51 // pred_check
          %p3740 = pneg %p246
        $region70: #{tpu_custom_call.1} parent=51 // pred_check_branch
          %3742 = sbr.rel (%p3740) target = $region72
        $region71: #{tpu_custom_call.1} parent=51 // pred_region
          %s3744 = ssub.s32 1024, 1024
          %3745 = vsyncadd %s3720, %s3744
          %s3746 = smul.addr %s29, 8
          %s3747 = smul.addr %s3746, 128
          %s3748 = scalar_lea.hbm %s9, %s3747
          %s3749 = sshll.u32 %s3723, 4
          %s3750 = int_to_ptr.vmem [resolvable:$true] %s3749
          %3755 = dma.vmem_to_hbm [thread:$0]  %s3750, 1024, %s3748, %s3720, 256, 256, 16
        $region72: #{tpu_custom_call.1} parent=51 // pred_fallthru
          _
      $region52: #{tpu_custom_call.1} parent=5 // pred_fallthru
        _
      %p3756 = scmp.le.s32.totalorder 2, %s24
      // Predicated region
      $region73: #{tpu_custom_call.1} parent=5 // pred_check
        %p3757 = pneg %p3756
      $region74: #{tpu_custom_call.1} parent=5 // pred_check_branch
        %3759 = sbr.rel (%p3757) target = $region76
      $region75: #{tpu_custom_call.1} parent=5 // pred_region
        %s3760 = ssub.s32 %s24, 2
        // Predicated region
        $region77: #{tpu_custom_call.1} parent=75 // pred_check
          %p3761 = pneg %p226
        $region78: #{tpu_custom_call.1} parent=75 // pred_check_branch
          %3763 = sbr.rel (%p3761) target = $region80
        $region79: #{tpu_custom_call.1} parent=75 // pred_region
          %s3764 = sand.u32 %s211, 1
          %s3765 = scalar_lea.sflag [#allocation4], %s3764
          %s3766 = sand.u32 %s211, 1
          %s3767 = smul.addr %s3766, 16
          %s3768 = scalar_lea.vmem [#allocation8], %s3767
          %3769 = dma.done %s3765, 256
        $region80: #{tpu_custom_call.1} parent=75 // pred_fallthru
          _
        // Predicated region
        $region81: #{tpu_custom_call.1} parent=75 // pred_check
          %p3770 = pneg %p252
        $region82: #{tpu_custom_call.1} parent=75 // pred_check_branch
          %3772 = sbr.rel (%p3770) target = $region84
        $region83: #{tpu_custom_call.1} parent=75 // pred_region
          %s3773 = sand.u32 %s237, 1
          %s3774 = scalar_lea.sflag [#allocation10], %s3773
          %s3775 = sand.u32 %s237, 1
          %s3776 = smul.addr %s3775, 64
          %s3777 = scalar_lea.vmem [#allocation9], %s3776
          %3778 = dma.done %s3774, 1024
        $region84: #{tpu_custom_call.1} parent=75 // pred_fallthru
          _
      $region76: #{tpu_custom_call.1} parent=5 // pred_fallthru
        _
    $region6: #{tpu_custom_call.1} parent=1 // loop_footer
      %s28 = sadd.s32 1, %s24
    $region7: #{tpu_custom_call.1} parent=1 // loop_footer_branch
      %23 = sbr.rel target = $region3
    $region8: #{tpu_custom_call.1} parent=1 // loop_exit
      _
    %3779 = vsyncpa [#allocation3], 1
    %s3780 = scalar_lea.sflag [#allocation3], 1
    %3781 = vsyncpa %s3780, 1
    %3782 = vsyncpa [#allocation6], 1
    %3783 = vsyncpa [#allocation4], 1
    %s3784 = scalar_lea.sflag [#allocation4], 1
    %3785 = vsyncpa %s3784, 1
    %3786 = vsyncpa [#allocation10], 1
    %s3787 = scalar_lea.sflag [#allocation10], 1
    %3788 = vsyncpa %s3787, 1

</llo_original>
